<compile_context>
chip_gen: v7x
topology: tpu7x:2x2x1
jax: 0.10.0
libtpu: 0.0.40
codegen_flags: <defaults>
</compile_context>

<pallas_src>
import jax
import jax.numpy as jnp
from jax.experimental import pallas as pl
from jax.experimental.pallas import tpu as pltpu

EPS = 1e-5  # same eps as HSNet-style multilayer_correlation


# --------------------------------------------------------------------------
# Pallas kernel: fused mask + cosine correlation + relu + support-mean
#   == mask_feature + inner loop of Correlation.multilayer_correlation[_dense]
#      with the (unused here) full corr volume reduced to its support mean.
# --------------------------------------------------------------------------
def _make_corr_pooled_kernel(inv_ls: float):
    """Blocks seen by the kernel:
         q_ref   : (1, 1, lq_t, C)   query feats, (Lq, C) layout -> canonical MXU LHS
         s_ref   : (1, 1, C, ls_t)   support feats
         m_ref   : (1, 1, 1, ls_t)   support mask (ones on the unmasked/dense branch)
         out_ref : (1, 1, 1, lq_t)   pooled corr, lane-dense, accumulated over ls tiles
    """

    def kernel(q_ref, s_ref, m_ref, out_ref):
        si = pl.program_id(3)

        q = q_ref[0, 0].astype(jnp.float32)              # (lq_t, C)
        s = s_ref[0, 0].astype(jnp.float32)              # (C, ls_t)
        s = s * m_ref[0, 0]                              # fused mask_feature (bcast over C)

        # L2 normalize over the channel axis; HSNet eps semantics x / (||x|| + eps).
        # approx reciprocal goes to the (otherwise idle) EUP slot; math kept in f32.
        q_inv = pl.reciprocal(
            jnp.sqrt(jnp.sum(q * q, axis=1, keepdims=True)) + EPS, approx=True)
        s_inv = pl.reciprocal(
            jnp.sqrt(jnp.sum(s * s, axis=0, keepdims=True)) + EPS, approx=True)
        qn = (q * q_inv).astype(jnp.bfloat16)            # bf16 operands -> full-rate MXU
        sn = (s * s_inv).astype(jnp.bfloat16)

        corr = jax.lax.dot_general(                      # (lq_t, ls_t), f32 accumulation
            qn, sn, (((1,), (0,)), ((), ())), preferred_element_type=jnp.float32)
        corr = jnp.maximum(corr, 0.0)                    # .clamp(min=0)

        partial = jnp.sum(corr, axis=1)[None, :] * inv_ls   # (1, lq_t), lane-dense

        @pl.when(si == 0)
        def _init():
            out_ref[...] = jnp.zeros_like(out_ref)

        out_ref[0, 0] += partial

    return kernel


def _pick_tile(dim: int, cap: int = 512) -> int:
    """Largest 128-aligned tile <= cap dividing dim; fall back to the full dim."""
    if dim <= cap:
        return dim
    t = (cap // 128) * 128
    while t >= 128:
        if dim % t == 0:
            return t
        t -= 128
    return dim


def correlation_pooled(qfeat, sfeat, mask):
    """qfeat/sfeat: (B, n, C, H*, W*); mask: (B, n, Hs, Ws) already bilinear-resized
    (ones where no masking is wanted).  Returns (B, n, Lq): mean over support
    positions of relu(cosine(q, s*mask)).
    """
    B, n, C, Hq, Wq = qfeat.shape
    _, _, _, Hs, Ws = sfeat.shape
    Lq, Ls = Hq * Wq, Hs * Ws

    # Wrapper-side layout fix (free at trace level): q as (Lq, C) so the kernel
    # runs a plain (Lq,C)@(C,Ls) contraction without an in-kernel XLU transpose.
    q = qfeat.reshape(B, n, C, Lq).transpose(0, 1, 3, 2)      # (B, n, Lq, C)
    s = sfeat.reshape(B, n, C, Ls)                            # (B, n, C, Ls)
    m = mask.reshape(B, n, 1, Ls).astype(jnp.float32)         # (B, n, 1, Ls)

    lq_t = _pick_tile(Lq)
    ls_t = _pick_tile(Ls)
    grid = (B, n, Lq // lq_t, Ls // ls_t)

    pooled = pl.pallas_call(
        _make_corr_pooled_kernel(1.0 / float(Ls)),
        out_shape=jax.ShapeDtypeStruct((B, n, 1, Lq), jnp.float32),
        grid=grid,
        in_specs=[
            pl.BlockSpec((1, 1, lq_t, C), lambda b, ni, qi, si: (b, ni, qi, 0)),
            pl.BlockSpec((1, 1, C, ls_t), lambda b, ni, qi, si: (b, ni, 0, si)),
            pl.BlockSpec((1, 1, 1, ls_t), lambda b, ni, qi, si: (b, ni, 0, si)),
        ],
        out_specs=pl.BlockSpec((1, 1, 1, lq_t), lambda b, ni, qi, si: (b, ni, 0, qi)),
        compiler_params=pltpu.CompilerParams(
            dimension_semantics=("parallel", "parallel", "parallel", "arbitrary"),
            vmem_limit_bytes=48 * 1024 * 1024,
        ),
    )(q, s, m)
    return pooled[:, :, 0, :]  # (B, n, Lq)


# --------------------------------------------------------------------------
# Plain-JAX glue: bilinear resize with align_corners=True (matches F.interpolate)
# --------------------------------------------------------------------------
def bilinear_align_corners(x, out_hw):
    B, C, H, W = x.shape
    oh, ow = out_hw
    ys = jnp.linspace(0.0, H - 1.0, oh)
    xs = jnp.linspace(0.0, W - 1.0, ow)
    y0 = jnp.clip(jnp.floor(ys).astype(jnp.int32), 0, H - 1)
    y1 = jnp.clip(y0 + 1, 0, H - 1)
    x0 = jnp.clip(jnp.floor(xs).astype(jnp.int32), 0, W - 1)
    x1 = jnp.clip(x0 + 1, 0, W - 1)
    wy = (ys - y0.astype(jnp.float32))[:, None]   # (oh, 1)
    wx = (xs - x0.astype(jnp.float32))[None, :]   # (1, ow)

    def gather(yi, xi):
        return x[:, :, yi][:, :, :, xi]           # (B, C, oh, ow)

    top = gather(y0, x0) * (1.0 - wx) + gather(y0, x1) * wx
    bot = gather(y1, x0) * (1.0 - wx) + gather(y1, x1) * wx
    return top * (1.0 - wy) + bot * wy


# --------------------------------------------------------------------------
# Stand-in backbone feature extraction (glue).
# TODO(synk): pretrained resnet50/vgg16 backbone (extract_feat_res / _chossed)
#             cannot be reproduced in-script; deterministic avg-pool + 1x1
#             projection per pyramid level is used instead.
# --------------------------------------------------------------------------
STRIDES = (2, 4, 8)
LEVEL_CHANNELS = (32, 64, 64)
N_DENSE_PER_LEVEL = 2


def _pool(img, s):
    p = jax.lax.reduce_window(img, 0.0, jax.lax.add, (1, 1, s, s), (1, 1, s, s), "VALID")
    return p / float(s * s)


def extract_feats(img, proj_weights):
    feats = []
    for w, s in zip(proj_weights, STRIDES):
        x = _pool(img, s)                              # (B, 3, h, w)
        f = jnp.einsum("bchw,oc->bohw", x, w)          # (B, C, h, w)
        feats.append(jnp.tanh(f))
    return feats


def extract_feats_dense(img, proj_weights_dense):
    feats = []
    for lvl, s in enumerate(STRIDES):
        x = _pool(img, s)
        feats.append([jnp.tanh(jnp.einsum("bchw,oc->bohw", x, w))
                      for w in proj_weights_dense[lvl]])
    return feats


def init_params(key):
    keys = jax.random.split(key, 32)
    ki = iter(keys)
    proj = [0.1 * jax.random.normal(next(ki), (c, 3), jnp.float32) for c in LEVEL_CHANNELS]
    proj_dense = [
        [0.1 * jax.random.normal(next(ki), (c, 3), jnp.float32) for _ in range(N_DENSE_PER_LEVEL)]
        for c in LEVEL_CHANNELS
    ]
    n_head_in = 3 * (N_DENSE_PER_LEVEL + 1) + 2  # pooled corr maps + history prior
    head_w = 0.1 * jax.random.normal(next(ki), (2, n_head_in), jnp.float32)
    head_b = jnp.zeros((2, 1), jnp.float32)
    return {"proj": proj, "proj_dense": proj_dense, "head_w": head_w, "head_b": head_b}


# --------------------------------------------------------------------------
# FECANet.forward (resnet50 branch semantics)
# --------------------------------------------------------------------------
def fecanet_forward(params, query_img, support_img, support_mask, history_mask_pred):
    # --- frozen backbone features (stand-in, see TODO above) ---
    query_feats = extract_feats(query_img, params["proj"])
    support_feats = extract_feats(support_img, params["proj"])
    query_feats_dense = extract_feats_dense(query_img, params["proj_dense"])
    support_feats_dense = extract_feats_dense(support_img, params["proj_dense"])

    B = query_img.shape[0]
    sm = support_mask[:, None].astype(jnp.float32)  # (B, 1, H, W)

    # --- fused mask_feature + Correlation.multilayer_correlation[_dense] ---
    # One pallas_call per pyramid level handles all dense layers AND the
    # self-similarity branch (stacked along a size-(n+1) grid axis); the
    # support-mask multiply is done inside the kernel for the self-sim entry.
    # TODO(synk): FEM and GCCG(3, 64) are not defined in the given source; the
    #             self-similarity branch uses the backbone features directly.
    # TODO(synk): HPNLearner consumes the full 4-D hypercorrelation in the
    #             reference; here only the support-pooled map is produced, so
    #             the (B, Lq, Ls) volume is never written to HBM.
    pooled = []
    for lvl in range(3):
        h, w = query_feats[lvl].shape[2:]
        q_all = jnp.stack(query_feats_dense[lvl] + [query_feats[lvl]], axis=1)      # (B,n+1,C,h,w)
        s_all = jnp.stack(support_feats_dense[lvl] + [support_feats[lvl]], axis=1)  # (B,n+1,C,h,w)
        m_sim = bilinear_align_corners(sm, (h, w))                                  # (B,1,h,w)
        m_all = jnp.concatenate(
            [jnp.ones((B, N_DENSE_PER_LEVEL, h, w), jnp.float32), m_sim], axis=1)   # (B,n+1,h,w)
        pooled.append(correlation_pooled(q_all, s_all, m_all))                      # (B,n+1,Lq)

    # --- stand-in head: per-level pooled corr maps + history prior -> 2 logits ---
    H0, W0 = query_feats[0].shape[2:]
    maps = []
    for lvl in range(3):
        Bb, nch, _ = pooled[lvl].shape
        hq, wq = query_feats[lvl].shape[2:]
        maps.append(bilinear_align_corners(pooled[lvl].reshape(Bb, nch, hq, wq), (H0, W0)))
    hist = bilinear_align_corners(history_mask_pred.astype(jnp.float32), (H0, W0))
    head_in = jnp.concatenate(maps + [hist], axis=1)  # (B, F, H0, W0)

    # 1x1-conv head left to XLA (2xF contraction ~11K FLOPs: launch/HBM dominated
    # as a separate Pallas call, per performance review).
    logit_mask = jnp.einsum("of,bfhw->bohw", params["head_w"], head_in)
    logit_mask = logit_mask + params["head_b"].reshape(1, 2, 1, 1)
    return logit_mask  # (B, 2, H0, W0)


# --------------------------------------------------------------------------
if __name__ == "__main__":
    key = jax.random.PRNGKey(0)
    k_img_q, k_img_s, k_mask, k_hist, k_params = jax.random.split(key, 5)

    B, Himg, Wimg = 2, 32, 32
    query_img = jax.random.normal(k_img_q, (B, 3, Himg, Wimg), jnp.float32)
    support_img = jax.random.normal(k_img_s, (B, 3, Himg, Wimg), jnp.float32)
    support_mask = (jax.random.uniform(k_mask, (B, Himg, Wimg)) > 0.5).astype(jnp.float32)
    history_mask_pred = jax.random.uniform(k_hist, (B, 2, 16, 16), dtype=jnp.float32)

    params = init_params(k_params)

    fwd = jax.jit(fecanet_forward)
    logit_mask = fwd(params, query_img, support_img, support_mask, history_mask_pred)
    logit_mask = jax.block_until_ready(logit_mask)

    assert logit_mask.shape == (B, 2, 16, 16), logit_mask.shape
    assert bool(jnp.all(jnp.isfinite(logit_mask)))
    print("KERNEL_OK")
</pallas_src>

<mosaic_0001>
module attributes {stable_mosaic.version = 11 : i64} {
  func.func @kernel(%arg0: i32, %arg1: i32, %arg2: i32, %arg3: i32, %arg4: memref<1x1x256x32xf32, #tpu.memory_space<vmem>>, %arg5: memref<1x1x32x256xf32, #tpu.memory_space<vmem>>, %arg6: memref<1x1x1x256xf32, #tpu.memory_space<vmem>>, %arg7: memref<1x1x1x256xf32, #tpu.memory_space<vmem>>) attributes {dimension_semantics = [#tpu.dimension_semantics<parallel>, #tpu.dimension_semantics<parallel>, #tpu.dimension_semantics<parallel>, #tpu.dimension_semantics<arbitrary>], iteration_bounds = array<i64: 2, 3, 1, 1>, scalar_prefetch = 0 : i64, scratch_operands = 0 : i64, tpu.core_type = #tpu.core_type<tc>, window_params = [{transform_indices = @transform_0, window_bounds = array<i64: 1, 1, 256, 32>}, {transform_indices = @transform_1, window_bounds = array<i64: 1, 1, 32, 256>}, {transform_indices = @transform_2, window_bounds = array<i64: 1, 1, 1, 256>}, {transform_indices = @transform_3, window_bounds = array<i64: 1, 1, 1, 256>}]} {
    %c0 = arith.constant 0 : index
    %c0_0 = arith.constant 0 : index
    %c0_1 = arith.constant 0 : index
    %c0_2 = arith.constant 0 : index
    %0 = vector.load %arg4[%c0, %c0_0, %c0_1, %c0_2] : memref<1x1x256x32xf32, #tpu.memory_space<vmem>>, vector<1x1x256x32xf32>
    %1 = vector.shape_cast %0 : vector<1x1x256x32xf32> to vector<256x32xf32>
    %c0_3 = arith.constant 0 : index
    %c0_4 = arith.constant 0 : index
    %c0_5 = arith.constant 0 : index
    %c0_6 = arith.constant 0 : index
    %2 = vector.load %arg5[%c0_3, %c0_4, %c0_5, %c0_6] : memref<1x1x32x256xf32, #tpu.memory_space<vmem>>, vector<1x1x32x256xf32>
    %3 = vector.shape_cast %2 : vector<1x1x32x256xf32> to vector<32x256xf32>
    %c0_7 = arith.constant 0 : index
    %c0_8 = arith.constant 0 : index
    %c0_9 = arith.constant 0 : index
    %c0_10 = arith.constant 0 : index
    %4 = vector.load %arg6[%c0_7, %c0_8, %c0_9, %c0_10] : memref<1x1x1x256xf32, #tpu.memory_space<vmem>>, vector<1x1x1x256xf32>
    %5 = vector.shape_cast %4 : vector<1x1x1x256xf32> to vector<1x256xf32>
    %6 = vector.broadcast %5 : vector<1x256xf32> to vector<32x256xf32>
    %7 = arith.mulf %3, %6 : vector<32x256xf32>
    %8 = arith.mulf %1, %1 : vector<256x32xf32>
    %cst = arith.constant dense<0.000000e+00> : vector<256xf32>
    %9 = vector.multi_reduction <add>, %8, %cst [1] : vector<256x32xf32> to vector<256xf32>
    %10 = vector.shape_cast %9 : vector<256xf32> to vector<256x1xf32>
    %11 = math.sqrt %10 : vector<256x1xf32>
    %cst_11 = arith.constant 9.99999974E-6 : f32
    %12 = vector.broadcast %cst_11 : f32 to vector<256x1xf32>
    %13 = arith.addf %11, %12 : vector<256x1xf32>
    %14 = tpu.reciprocal %13 {approx = true} : vector<256x1xf32> -> vector<256x1xf32>
    %15 = arith.mulf %7, %7 : vector<32x256xf32>
    %cst_12 = arith.constant dense<0.000000e+00> : vector<256xf32>
    %16 = vector.multi_reduction <add>, %15, %cst_12 [0] : vector<32x256xf32> to vector<256xf32>
    %17 = vector.shape_cast %16 : vector<256xf32> to vector<1x256xf32>
    %18 = math.sqrt %17 : vector<1x256xf32>
    %cst_13 = arith.constant 9.99999974E-6 : f32
    %19 = vector.broadcast %cst_13 : f32 to vector<1x256xf32>
    %20 = arith.addf %18, %19 : vector<1x256xf32>
    %21 = tpu.reciprocal %20 {approx = true} : vector<1x256xf32> -> vector<1x256xf32>
    %22 = vector.broadcast %14 : vector<256x1xf32> to vector<256x32xf32>
    %23 = arith.mulf %1, %22 : vector<256x32xf32>
    %24 = arith.truncf %23 : vector<256x32xf32> to vector<256x32xbf16>
    %25 = vector.broadcast %21 : vector<1x256xf32> to vector<32x256xf32>
    %26 = arith.mulf %7, %25 : vector<32x256xf32>
    %27 = arith.truncf %26 : vector<32x256xf32> to vector<32x256xbf16>
    %cst_14 = arith.constant dense<0.000000e+00> : vector<256x256xf32>
    %28 = tpu.matmul %24, %27, %cst_14 {dimension_numbers = #tpu.dot_dimension_numbers<[1], [0], [0], [1], [0, 0, 1, 1], [], []>} : vector<256x32xbf16>, vector<32x256xbf16>, vector<256x256xf32> -> vector<256x256xf32>
    %cst_15 = arith.constant 0.000000e+00 : f32
    %29 = vector.broadcast %cst_15 : f32 to vector<256x256xf32>
    %30 = arith.maximumf %28, %29 : vector<256x256xf32>
    %cst_16 = arith.constant dense<0.000000e+00> : vector<256xf32>
    %31 = vector.multi_reduction <add>, %30, %cst_16 [1] : vector<256x256xf32> to vector<256xf32>
    %32 = vector.shape_cast %31 : vector<256xf32> to vector<1x256xf32>
    %cst_17 = arith.constant 3.906250e-03 : f32
    %33 = vector.broadcast %cst_17 : f32 to vector<1x256xf32>
    %34 = arith.mulf %32, %33 : vector<1x256xf32>
    %c0_i32 = arith.constant 0 : i32
    %35 = arith.cmpi eq, %arg3, %c0_i32 : i32
    %36 = arith.extui %35 : i1 to i32
    %c0_i32_18 = arith.constant 0 : i32
    %37 = arith.cmpi ne, %36, %c0_i32_18 : i32
    scf.if %37 {
      %cst_27 = arith.constant 0.000000e+00 : f32
      %44 = vector.broadcast %cst_27 : f32 to vector<1x1x1x256xf32>
      %c0_28 = arith.constant 0 : index
      %c0_29 = arith.constant 0 : index
      %c0_30 = arith.constant 0 : index
      %c0_31 = arith.constant 0 : index
      %45 = vector.load %arg7[%c0_28, %c0_29, %c0_30, %c0_31] : memref<1x1x1x256xf32, #tpu.memory_space<vmem>>, vector<1x1x1x256xf32>
      tpu.vector_store %arg7[%c0_28, %c0_29, %c0_30, %c0_31], %44 {strides = array<i32>} : memref<1x1x1x256xf32, #tpu.memory_space<vmem>>, vector<1x1x1x256xf32>,
    } else {
    }
    %c0_19 = arith.constant 0 : index
    %c0_20 = arith.constant 0 : index
    %c0_21 = arith.constant 0 : index
    %c0_22 = arith.constant 0 : index
    %38 = vector.load %arg7[%c0_19, %c0_20, %c0_21, %c0_22] : memref<1x1x1x256xf32, #tpu.memory_space<vmem>>, vector<1x1x1x256xf32>
    %39 = vector.shape_cast %38 : vector<1x1x1x256xf32> to vector<1x256xf32>
    %40 = arith.addf %39, %34 : vector<1x256xf32>
    %c0_23 = arith.constant 0 : index
    %c0_24 = arith.constant 0 : index
    %c0_25 = arith.constant 0 : index
    %c0_26 = arith.constant 0 : index
    %41 = vector.load %arg7[%c0_23, %c0_24, %c0_25, %c0_26] : memref<1x1x1x256xf32, #tpu.memory_space<vmem>>, vector<1x1x1x256xf32>
    %42 = vector.shape_cast %41 : vector<1x1x1x256xf32> to vector<1x256xf32>
    %43 = vector.shape_cast %40 : vector<1x256xf32> to vector<1x1x1x256xf32>
    tpu.vector_store %arg7[%c0_23, %c0_24, %c0_25, %c0_26], %43 {strides = array<i32>} : memref<1x1x1x256xf32, #tpu.memory_space<vmem>>, vector<1x1x1x256xf32>,
    return
  }
  func.func @transform_0(%arg0: i32, %arg1: i32, %arg2: i32, %arg3: i32) -> (i32, i32, i32, i32) {
    %c0_i32 = arith.constant 0 : i32
    %c0_i32_0 = arith.constant 0 : i32
    return %arg0, %arg1, %arg2, %c0_i32 : i32, i32, i32, i32
  }
  func.func @transform_1(%arg0: i32, %arg1: i32, %arg2: i32, %arg3: i32) -> (i32, i32, i32, i32) {
    %c0_i32 = arith.constant 0 : i32
    %c0_i32_0 = arith.constant 0 : i32
    return %arg0, %arg1, %c0_i32, %arg3 : i32, i32, i32, i32
  }
  func.func @transform_2(%arg0: i32, %arg1: i32, %arg2: i32, %arg3: i32) -> (i32, i32, i32, i32) {
    %c0_i32 = arith.constant 0 : i32
    %c0_i32_0 = arith.constant 0 : i32
    return %arg0, %arg1, %c0_i32, %arg3 : i32, i32, i32, i32
  }
  func.func @transform_3(%arg0: i32, %arg1: i32, %arg2: i32, %arg3: i32) -> (i32, i32, i32, i32) {
    %c0_i32 = arith.constant 0 : i32
    %c0_i32_0 = arith.constant 0 : i32
    return %arg0, %arg1, %c0_i32, %arg2 : i32, i32, i32, i32
  }
}

module attributes {stable_mosaic.version = 11 : i64} {
  func.func @kernel(%arg0: i32, %arg1: i32, %arg2: i32, %arg3: i32, %arg4: memref<1x1x64x64xf32, #tpu.memory_space<vmem>>, %arg5: memref<1x1x64x64xf32, #tpu.memory_space<vmem>>, %arg6: memref<1x1x1x64xf32, #tpu.memory_space<vmem>>, %arg7: memref<1x1x1x64xf32, #tpu.memory_space<vmem>>) attributes {dimension_semantics = [#tpu.dimension_semantics<parallel>, #tpu.dimension_semantics<parallel>, #tpu.dimension_semantics<parallel>, #tpu.dimension_semantics<arbitrary>], iteration_bounds = array<i64: 2, 3, 1, 1>, scalar_prefetch = 0 : i64, scratch_operands = 0 : i64, tpu.core_type = #tpu.core_type<tc>, window_params = [{transform_indices = @transform_0, window_bounds = array<i64: 1, 1, 64, 64>}, {transform_indices = @transform_1, window_bounds = array<i64: 1, 1, 64, 64>}, {transform_indices = @transform_2, window_bounds = array<i64: 1, 1, 1, 64>}, {transform_indices = @transform_3, window_bounds = array<i64: 1, 1, 1, 64>}]} {
    %c0 = arith.constant 0 : index
    %c0_0 = arith.constant 0 : index
    %c0_1 = arith.constant 0 : index
    %c0_2 = arith.constant 0 : index
    %0 = vector.load %arg4[%c0, %c0_0, %c0_1, %c0_2] : memref<1x1x64x64xf32, #tpu.memory_space<vmem>>, vector<1x1x64x64xf32>
    %1 = vector.shape_cast %0 : vector<1x1x64x64xf32> to vector<64x64xf32>
    %c0_3 = arith.constant 0 : index
    %c0_4 = arith.constant 0 : index
    %c0_5 = arith.constant 0 : index
    %c0_6 = arith.constant 0 : index
    %2 = vector.load %arg5[%c0_3, %c0_4, %c0_5, %c0_6] : memref<1x1x64x64xf32, #tpu.memory_space<vmem>>, vector<1x1x64x64xf32>
    %3 = vector.shape_cast %2 : vector<1x1x64x64xf32> to vector<64x64xf32>
    %c0_7 = arith.constant 0 : index
    %c0_8 = arith.constant 0 : index
    %c0_9 = arith.constant 0 : index
    %c0_10 = arith.constant 0 : index
    %4 = vector.load %arg6[%c0_7, %c0_8, %c0_9, %c0_10] : memref<1x1x1x64xf32, #tpu.memory_space<vmem>>, vector<1x1x1x64xf32>
    %5 = vector.shape_cast %4 : vector<1x1x1x64xf32> to vector<1x64xf32>
    %6 = vector.broadcast %5 : vector<1x64xf32> to vector<64x64xf32>
    %7 = arith.mulf %3, %6 : vector<64x64xf32>
    %8 = arith.mulf %1, %1 : vector<64x64xf32>
    %cst = arith.constant dense<0.000000e+00> : vector<64xf32>
    %9 = vector.multi_reduction <add>, %8, %cst [1] : vector<64x64xf32> to vector<64xf32>
    %10 = vector.shape_cast %9 : vector<64xf32> to vector<64x1xf32>
    %11 = math.sqrt %10 : vector<64x1xf32>
    %cst_11 = arith.constant 9.99999974E-6 : f32
    %12 = vector.broadcast %cst_11 : f32 to vector<64x1xf32>
    %13 = arith.addf %11, %12 : vector<64x1xf32>
    %14 = tpu.reciprocal %13 {approx = true} : vector<64x1xf32> -> vector<64x1xf32>
    %15 = arith.mulf %7, %7 : vector<64x64xf32>
    %cst_12 = arith.constant dense<0.000000e+00> : vector<64xf32>
    %16 = vector.multi_reduction <add>, %15, %cst_12 [0] : vector<64x64xf32> to vector<64xf32>
    %17 = vector.shape_cast %16 : vector<64xf32> to vector<1x64xf32>
    %18 = math.sqrt %17 : vector<1x64xf32>
    %cst_13 = arith.constant 9.99999974E-6 : f32
    %19 = vector.broadcast %cst_13 : f32 to vector<1x64xf32>
    %20 = arith.addf %18, %19 : vector<1x64xf32>
    %21 = tpu.reciprocal %20 {approx = true} : vector<1x64xf32> -> vector<1x64xf32>
    %22 = vector.broadcast %14 : vector<64x1xf32> to vector<64x64xf32>
    %23 = arith.mulf %1, %22 : vector<64x64xf32>
    %24 = arith.truncf %23 : vector<64x64xf32> to vector<64x64xbf16>
    %25 = vector.broadcast %21 : vector<1x64xf32> to vector<64x64xf32>
    %26 = arith.mulf %7, %25 : vector<64x64xf32>
    %27 = arith.truncf %26 : vector<64x64xf32> to vector<64x64xbf16>
    %cst_14 = arith.constant dense<0.000000e+00> : vector<64x64xf32>
    %28 = tpu.matmul %24, %27, %cst_14 {dimension_numbers = #tpu.dot_dimension_numbers<[1], [0], [0], [1], [0, 0, 1, 1], [], []>} : vector<64x64xbf16>, vector<64x64xbf16>, vector<64x64xf32> -> vector<64x64xf32>
    %cst_15 = arith.constant 0.000000e+00 : f32
    %29 = vector.broadcast %cst_15 : f32 to vector<64x64xf32>
    %30 = arith.maximumf %28, %29 : vector<64x64xf32>
    %cst_16 = arith.constant dense<0.000000e+00> : vector<64xf32>
    %31 = vector.multi_reduction <add>, %30, %cst_16 [1] : vector<64x64xf32> to vector<64xf32>
    %32 = vector.shape_cast %31 : vector<64xf32> to vector<1x64xf32>
    %cst_17 = arith.constant 1.562500e-02 : f32
    %33 = vector.broadcast %cst_17 : f32 to vector<1x64xf32>
    %34 = arith.mulf %32, %33 : vector<1x64xf32>
    %c0_i32 = arith.constant 0 : i32
    %35 = arith.cmpi eq, %arg3, %c0_i32 : i32
    %36 = arith.extui %35 : i1 to i32
    %c0_i32_18 = arith.constant 0 : i32
    %37 = arith.cmpi ne, %36, %c0_i32_18 : i32
    scf.if %37 {
      %cst_27 = arith.constant 0.000000e+00 : f32
      %44 = vector.broadcast %cst_27 : f32 to vector<1x1x1x64xf32>
      %c0_28 = arith.constant 0 : index
      %c0_29 = arith.constant 0 : index
      %c0_30 = arith.constant 0 : index
      %c0_31 = arith.constant 0 : index
      %45 = vector.load %arg7[%c0_28, %c0_29, %c0_30, %c0_31] : memref<1x1x1x64xf32, #tpu.memory_space<vmem>>, vector<1x1x1x64xf32>
      tpu.vector_store %arg7[%c0_28, %c0_29, %c0_30, %c0_31], %44 {strides = array<i32>} : memref<1x1x1x64xf32, #tpu.memory_space<vmem>>, vector<1x1x1x64xf32>,
    } else {
    }
    %c0_19 = arith.constant 0 : index
    %c0_20 = arith.constant 0 : index
    %c0_21 = arith.constant 0 : index
    %c0_22 = arith.constant 0 : index
    %38 = vector.load %arg7[%c0_19, %c0_20, %c0_21, %c0_22] : memref<1x1x1x64xf32, #tpu.memory_space<vmem>>, vector<1x1x1x64xf32>
    %39 = vector.shape_cast %38 : vector<1x1x1x64xf32> to vector<1x64xf32>
    %40 = arith.addf %39, %34 : vector<1x64xf32>
    %c0_23 = arith.constant 0 : index
    %c0_24 = arith.constant 0 : index
    %c0_25 = arith.constant 0 : index
    %c0_26 = arith.constant 0 : index
    %41 = vector.load %arg7[%c0_23, %c0_24, %c0_25, %c0_26] : memref<1x1x1x64xf32, #tpu.memory_space<vmem>>, vector<1x1x1x64xf32>
    %42 = vector.shape_cast %41 : vector<1x1x1x64xf32> to vector<1x64xf32>
    %43 = vector.shape_cast %40 : vector<1x64xf32> to vector<1x1x1x64xf32>
    tpu.vector_store %arg7[%c0_23, %c0_24, %c0_25, %c0_26], %43 {strides = array<i32>} : memref<1x1x1x64xf32, #tpu.memory_space<vmem>>, vector<1x1x1x64xf32>,
    return
  }
  func.func @transform_0(%arg0: i32, %arg1: i32, %arg2: i32, %arg3: i32) -> (i32, i32, i32, i32) {
    %c0_i32 = arith.constant 0 : i32
    %c0_i32_0 = arith.constant 0 : i32
    return %arg0, %arg1, %arg2, %c0_i32 : i32, i32, i32, i32
  }
  func.func @transform_1(%arg0: i32, %arg1: i32, %arg2: i32, %arg3: i32) -> (i32, i32, i32, i32) {
    %c0_i32 = arith.constant 0 : i32
    %c0_i32_0 = arith.constant 0 : i32
    return %arg0, %arg1, %c0_i32, %arg3 : i32, i32, i32, i32
  }
  func.func @transform_2(%arg0: i32, %arg1: i32, %arg2: i32, %arg3: i32) -> (i32, i32, i32, i32) {
    %c0_i32 = arith.constant 0 : i32
    %c0_i32_0 = arith.constant 0 : i32
    return %arg0, %arg1, %c0_i32, %arg3 : i32, i32, i32, i32
  }
  func.func @transform_3(%arg0: i32, %arg1: i32, %arg2: i32, %arg3: i32) -> (i32, i32, i32, i32) {
    %c0_i32 = arith.constant 0 : i32
    %c0_i32_0 = arith.constant 0 : i32
    return %arg0, %arg1, %c0_i32, %arg2 : i32, i32, i32, i32
  }
}

module attributes {stable_mosaic.version = 11 : i64} {
  func.func @kernel(%arg0: i32, %arg1: i32, %arg2: i32, %arg3: i32, %arg4: memref<1x1x16x64xf32, #tpu.memory_space<vmem>>, %arg5: memref<1x1x64x16xf32, #tpu.memory_space<vmem>>, %arg6: memref<1x1x1x16xf32, #tpu.memory_space<vmem>>, %arg7: memref<1x1x1x16xf32, #tpu.memory_space<vmem>>) attributes {dimension_semantics = [#tpu.dimension_semantics<parallel>, #tpu.dimension_semantics<parallel>, #tpu.dimension_semantics<parallel>, #tpu.dimension_semantics<arbitrary>], iteration_bounds = array<i64: 2, 3, 1, 1>, scalar_prefetch = 0 : i64, scratch_operands = 0 : i64, tpu.core_type = #tpu.core_type<tc>, window_params = [{transform_indices = @transform_0, window_bounds = array<i64: 1, 1, 16, 64>}, {transform_indices = @transform_1, window_bounds = array<i64: 1, 1, 64, 16>}, {transform_indices = @transform_2, window_bounds = array<i64: 1, 1, 1, 16>}, {transform_indices = @transform_3, window_bounds = array<i64: 1, 1, 1, 16>}]} {
    %c0 = arith.constant 0 : index
    %c0_0 = arith.constant 0 : index
    %c0_1 = arith.constant 0 : index
    %c0_2 = arith.constant 0 : index
    %0 = vector.load %arg4[%c0, %c0_0, %c0_1, %c0_2] : memref<1x1x16x64xf32, #tpu.memory_space<vmem>>, vector<1x1x16x64xf32>
    %1 = vector.shape_cast %0 : vector<1x1x16x64xf32> to vector<16x64xf32>
    %c0_3 = arith.constant 0 : index
    %c0_4 = arith.constant 0 : index
    %c0_5 = arith.constant 0 : index
    %c0_6 = arith.constant 0 : index
    %2 = vector.load %arg5[%c0_3, %c0_4, %c0_5, %c0_6] : memref<1x1x64x16xf32, #tpu.memory_space<vmem>>, vector<1x1x64x16xf32>
    %3 = vector.shape_cast %2 : vector<1x1x64x16xf32> to vector<64x16xf32>
    %c0_7 = arith.constant 0 : index
    %c0_8 = arith.constant 0 : index
    %c0_9 = arith.constant 0 : index
    %c0_10 = arith.constant 0 : index
    %4 = vector.load %arg6[%c0_7, %c0_8, %c0_9, %c0_10] : memref<1x1x1x16xf32, #tpu.memory_space<vmem>>, vector<1x1x1x16xf32>
    %5 = vector.shape_cast %4 : vector<1x1x1x16xf32> to vector<1x16xf32>
    %6 = vector.broadcast %5 : vector<1x16xf32> to vector<64x16xf32>
    %7 = arith.mulf %3, %6 : vector<64x16xf32>
    %8 = arith.mulf %1, %1 : vector<16x64xf32>
    %cst = arith.constant dense<0.000000e+00> : vector<16xf32>
    %9 = vector.multi_reduction <add>, %8, %cst [1] : vector<16x64xf32> to vector<16xf32>
    %10 = vector.shape_cast %9 : vector<16xf32> to vector<16x1xf32>
    %11 = math.sqrt %10 : vector<16x1xf32>
    %cst_11 = arith.constant 9.99999974E-6 : f32
    %12 = vector.broadcast %cst_11 : f32 to vector<16x1xf32>
    %13 = arith.addf %11, %12 : vector<16x1xf32>
    %14 = tpu.reciprocal %13 {approx = true} : vector<16x1xf32> -> vector<16x1xf32>
    %15 = arith.mulf %7, %7 : vector<64x16xf32>
    %cst_12 = arith.constant dense<0.000000e+00> : vector<16xf32>
    %16 = vector.multi_reduction <add>, %15, %cst_12 [0] : vector<64x16xf32> to vector<16xf32>
    %17 = vector.shape_cast %16 : vector<16xf32> to vector<1x16xf32>
    %18 = math.sqrt %17 : vector<1x16xf32>
    %cst_13 = arith.constant 9.99999974E-6 : f32
    %19 = vector.broadcast %cst_13 : f32 to vector<1x16xf32>
    %20 = arith.addf %18, %19 : vector<1x16xf32>
    %21 = tpu.reciprocal %20 {approx = true} : vector<1x16xf32> -> vector<1x16xf32>
    %22 = vector.broadcast %14 : vector<16x1xf32> to vector<16x64xf32>
    %23 = arith.mulf %1, %22 : vector<16x64xf32>
    %24 = arith.truncf %23 : vector<16x64xf32> to vector<16x64xbf16>
    %25 = vector.broadcast %21 : vector<1x16xf32> to vector<64x16xf32>
    %26 = arith.mulf %7, %25 : vector<64x16xf32>
    %27 = arith.truncf %26 : vector<64x16xf32> to vector<64x16xbf16>
    %cst_14 = arith.constant dense<0.000000e+00> : vector<16x16xf32>
    %28 = tpu.matmul %24, %27, %cst_14 {dimension_numbers = #tpu.dot_dimension_numbers<[1], [0], [0], [1], [0, 0, 1, 1], [], []>} : vector<16x64xbf16>, vector<64x16xbf16>, vector<16x16xf32> -> vector<16x16xf32>
    %cst_15 = arith.constant 0.000000e+00 : f32
    %29 = vector.broadcast %cst_15 : f32 to vector<16x16xf32>
    %30 = arith.maximumf %28, %29 : vector<16x16xf32>
    %cst_16 = arith.constant dense<0.000000e+00> : vector<16xf32>
    %31 = vector.multi_reduction <add>, %30, %cst_16 [1] : vector<16x16xf32> to vector<16xf32>
    %32 = vector.shape_cast %31 : vector<16xf32> to vector<1x16xf32>
    %cst_17 = arith.constant 6.250000e-02 : f32
    %33 = vector.broadcast %cst_17 : f32 to vector<1x16xf32>
    %34 = arith.mulf %32, %33 : vector<1x16xf32>
    %c0_i32 = arith.constant 0 : i32
    %35 = arith.cmpi eq, %arg3, %c0_i32 : i32
    %36 = arith.extui %35 : i1 to i32
    %c0_i32_18 = arith.constant 0 : i32
    %37 = arith.cmpi ne, %36, %c0_i32_18 : i32
    scf.if %37 {
      %cst_27 = arith.constant 0.000000e+00 : f32
      %44 = vector.broadcast %cst_27 : f32 to vector<1x1x1x16xf32>
      %c0_28 = arith.constant 0 : index
      %c0_29 = arith.constant 0 : index
      %c0_30 = arith.constant 0 : index
      %c0_31 = arith.constant 0 : index
      %45 = vector.load %arg7[%c0_28, %c0_29, %c0_30, %c0_31] : memref<1x1x1x16xf32, #tpu.memory_space<vmem>>, vector<1x1x1x16xf32>
      tpu.vector_store %arg7[%c0_28, %c0_29, %c0_30, %c0_31], %44 {strides = array<i32>} : memref<1x1x1x16xf32, #tpu.memory_space<vmem>>, vector<1x1x1x16xf32>,
    } else {
    }
    %c0_19 = arith.constant 0 : index
    %c0_20 = arith.constant 0 : index
    %c0_21 = arith.constant 0 : index
    %c0_22 = arith.constant 0 : index
    %38 = vector.load %arg7[%c0_19, %c0_20, %c0_21, %c0_22] : memref<1x1x1x16xf32, #tpu.memory_space<vmem>>, vector<1x1x1x16xf32>
    %39 = vector.shape_cast %38 : vector<1x1x1x16xf32> to vector<1x16xf32>
    %40 = arith.addf %39, %34 : vector<1x16xf32>
    %c0_23 = arith.constant 0 : index
    %c0_24 = arith.constant 0 : index
    %c0_25 = arith.constant 0 : index
    %c0_26 = arith.constant 0 : index
    %41 = vector.load %arg7[%c0_23, %c0_24, %c0_25, %c0_26] : memref<1x1x1x16xf32, #tpu.memory_space<vmem>>, vector<1x1x1x16xf32>
    %42 = vector.shape_cast %41 : vector<1x1x1x16xf32> to vector<1x16xf32>
    %43 = vector.shape_cast %40 : vector<1x16xf32> to vector<1x1x1x16xf32>
    tpu.vector_store %arg7[%c0_23, %c0_24, %c0_25, %c0_26], %43 {strides = array<i32>} : memref<1x1x1x16xf32, #tpu.memory_space<vmem>>, vector<1x1x1x16xf32>,
    return
  }
  func.func @transform_0(%arg0: i32, %arg1: i32, %arg2: i32, %arg3: i32) -> (i32, i32, i32, i32) {
    %c0_i32 = arith.constant 0 : i32
    %c0_i32_0 = arith.constant 0 : i32
    return %arg0, %arg1, %arg2, %c0_i32 : i32, i32, i32, i32
  }
  func.func @transform_1(%arg0: i32, %arg1: i32, %arg2: i32, %arg3: i32) -> (i32, i32, i32, i32) {
    %c0_i32 = arith.constant 0 : i32
    %c0_i32_0 = arith.constant 0 : i32
    return %arg0, %arg1, %c0_i32, %arg3 : i32, i32, i32, i32
  }
  func.func @transform_2(%arg0: i32, %arg1: i32, %arg2: i32, %arg3: i32) -> (i32, i32, i32, i32) {
    %c0_i32 = arith.constant 0 : i32
    %c0_i32_0 = arith.constant 0 : i32
    return %arg0, %arg1, %c0_i32, %arg3 : i32, i32, i32, i32
  }
  func.func @transform_3(%arg0: i32, %arg1: i32, %arg2: i32, %arg3: i32) -> (i32, i32, i32, i32) {
    %c0_i32 = arith.constant 0 : i32
    %c0_i32_0 = arith.constant 0 : i32
    return %arg0, %arg1, %c0_i32, %arg2 : i32, i32, i32, i32
  }
}

</mosaic_0001>

<llo_original>
// kernel: squeeze.3
$region0: #{squeeze.3}
  %s0 = inlined_call_operand.vmem [shape: f32[2,3,256], index: 0, kind: input, shape index: {}]
  %s1 = inlined_call_operand.vmem [shape: f32[2,3,16,16], index: 1, kind: output, shape index: {}]
  $region1: #{squeeze.3} parent=0
    #allocation0 [shape = 'u8[16384]{0}', space=vmem, size = 0x4000, scoped, tag = 'scoped mem for input reshape']
    %s3 = sshllo.u32 0, 4
    %s4 = smul.addr 4, 3
    %s5 = scalar_lea.vmem %s0, %s4
    %v6 = vld [vmem:[%s5] sm:%s3]
    %s7 = scalar_lea.vmem [#allocation0], 24
    %8 = vst [vmem:[%s7] sm:%s3] %v6
    %s9 = smul.addr 4, 2
    %s10 = scalar_lea.vmem %s0, %s9
    %v11 = vld [vmem:[%s10] sm:%s3]
    %s12 = scalar_lea.vmem [#allocation0], 16
    %13 = vst [vmem:[%s12] sm:%s3] %v11
    %s14 = scalar_lea.vmem %s0, 4
    %v15 = vld [vmem:[%s14] sm:%s3]
    %s16 = scalar_lea.vmem [#allocation0], 8
    %17 = vst [vmem:[%s16] sm:%s3] %v15
    %v18 = vld [vmem:[%s0] sm:%s3]
    %19 = vst [vmem:[#allocation0] sm:%s3] %v18
    %v20 = vld [vmem:[#allocation0] sm:$0x7]
    %vm21 = vcmask 130048
    %22 = vst.msk [vmem:[%s1] ss:$16 sm:$0x3] %vm21, %v20
    %s23 = scalar_lea.vmem %s1, 30
    %24 = vst.msk [vmem:[%s23] sm:$0x4] %vm21, %v20
    %s25 = scalar_lea.vmem [#allocation0], 8
    %v26 = vld [vmem:[%s25] sm:$0x7]
    %vm27 = vcmask 130048
    %s28 = scalar_lea.vmem %s1, 8
    %29 = vst.msk [vmem:[%s28] ss:$16 sm:$0x3] %vm27, %v26
    %s30 = scalar_lea.vmem %s1, 38
    %31 = vst.msk [vmem:[%s30] sm:$0x4] %vm27, %v26
    %s32 = scalar_lea.vmem [#allocation0], 16
    %v33 = vld [vmem:[%s32] sm:$0x7]
    %vm34 = vcmask 130048
    %s35 = scalar_lea.vmem %s1, 48
    %36 = vst.msk [vmem:[%s35] ss:$16 sm:$0x3] %vm34, %v33
    %s37 = scalar_lea.vmem %s1, 78
    %38 = vst.msk [vmem:[%s37] sm:$0x4] %vm34, %v33
    %s39 = scalar_lea.vmem [#allocation0], 24
    %v40 = vld [vmem:[%s39] sm:$0x7]
    %vm41 = vcmask 130048
    %s42 = scalar_lea.vmem %s1, 56
    %43 = vst.msk [vmem:[%s42] ss:$16 sm:$0x3] %vm41, %v40
    %s44 = scalar_lea.vmem %s1, 86
    %45 = vst.msk [vmem:[%s44] sm:$0x4] %vm41, %v40
    %v46 = vld.sshfl [vmem:[#allocation0] sm:$0xff pattern:$0xaaa29180]
    %s47 = scalar_lea.vmem [#allocation0], 4294967264
    %s48 = smov 192
    %v49 = vld [vmem:[%s47] ss:$8 sm:%s48]
    %vm50 = vcmask 1047558
    %v51 = vsel %vm50, %v49, %v46
    %52 = vrot.lane.b32.xlu0 %v51, 112
    %v53 = vpop.permute.xlu0 %52
    %vm54 = vcmask 130048
    %s55 = scalar_lea.vmem %s1, 1
    %56 = vst.msk [vmem:[%s55] ss:$8 sm:$0xf] %vm54, %v53
    %s57 = scalar_lea.vmem %s1, 1
    %58 = vst.msk [vmem:[%s57] ss:$8 sm:$0xf0] %vm54, %v53
    %s59 = scalar_lea.vmem [#allocation0], 17
    %v60 = vld.sshfl [vmem:[%s59] sm:$0xff pattern:$0x99999180]
    %61 = vrot.lane.b32.xlu0 %v60, 112
    %v62 = vpop.permute.xlu0 %61
    %vm63 = vcmask 130048
    %s64 = scalar_lea.vmem %s1, 65
    %65 = vst.msk [vmem:[%s64] ss:$8 sm:$0xf] %vm63, %v62
    %v66 = vld.sshfl [vmem:[#allocation0] sm:$0xff pattern:$0xaaa29180]
    %s67 = scalar_lea.vmem [#allocation0], 4294967264
    %s68 = smov 192
    %v69 = vld [vmem:[%s67] ss:$8 sm:%s68]
    %vm70 = vcmask 1047558
    %v71 = vsel %vm70, %v69, %v66
    %72 = vrot.lane.b32.xlu0 %v71, 96
    %v73 = vpop.permute.xlu0 %72
    %vm74 = vcmask 130048
    %s75 = scalar_lea.vmem %s1, 2
    %76 = vst.msk [vmem:[%s75] ss:$8 sm:$0xf] %vm74, %v73
    %s77 = scalar_lea.vmem %s1, 2
    %78 = vst.msk [vmem:[%s77] ss:$8 sm:$0xf0] %vm74, %v73
    %s79 = scalar_lea.vmem [#allocation0], 17
    %v80 = vld.sshfl [vmem:[%s79] sm:$0xff pattern:$0x99999180]
    %81 = vrot.lane.b32.xlu0 %v80, 96
    %v82 = vpop.permute.xlu0 %81
    %vm83 = vcmask 130048
    %s84 = scalar_lea.vmem %s1, 66
    %85 = vst.msk [vmem:[%s84] ss:$8 sm:$0xf] %vm83, %v82
    %v86 = vld.sshfl [vmem:[#allocation0] sm:$0xff pattern:$0xaaa29180]
    %s87 = scalar_lea.vmem [#allocation0], 4294967264
    %s88 = smov 192
    %v89 = vld [vmem:[%s87] ss:$8 sm:%s88]
    %vm90 = vcmask 1047558
    %v91 = vsel %vm90, %v89, %v86
    %92 = vrot.lane.b32.xlu0 %v91, 80
    %v93 = vpop.permute.xlu0 %92
    %vm94 = vcmask 130048
    %s95 = scalar_lea.vmem %s1, 3
    %96 = vst.msk [vmem:[%s95] ss:$8 sm:$0xf] %vm94, %v93
    %s97 = scalar_lea.vmem %s1, 3
    %98 = vst.msk [vmem:[%s97] ss:$8 sm:$0xf0] %vm94, %v93
    %s99 = scalar_lea.vmem [#allocation0], 17
    %v100 = vld.sshfl [vmem:[%s99] sm:$0xff pattern:$0x99999180]
    %101 = vrot.lane.b32.xlu0 %v100, 80
    %v102 = vpop.permute.xlu0 %101
    %vm103 = vcmask 130048
    %s104 = scalar_lea.vmem %s1, 67
    %105 = vst.msk [vmem:[%s104] ss:$8 sm:$0xf] %vm103, %v102
    %v106 = vld.sshfl [vmem:[#allocation0] sm:$0xff pattern:$0xaaa29180]
    %s107 = scalar_lea.vmem [#allocation0], 4294967264
    %s108 = smov 192
    %v109 = vld [vmem:[%s107] ss:$8 sm:%s108]
    %vm110 = vcmask 1047558
    %v111 = vsel %vm110, %v109, %v106
    %112 = vrot.lane.b32.xlu0 %v111, 64
    %v113 = vpop.permute.xlu0 %112
    %vm114 = vcmask 130048
    %s115 = scalar_lea.vmem %s1, 4
    %116 = vst.msk [vmem:[%s115] ss:$8 sm:$0xf] %vm114, %v113
    %s117 = scalar_lea.vmem %s1, 4
    %118 = vst.msk [vmem:[%s117] ss:$8 sm:$0xf0] %vm114, %v113
    %s119 = scalar_lea.vmem [#allocation0], 17
    %v120 = vld.sshfl [vmem:[%s119] sm:$0xff pattern:$0x99999180]
    %121 = vrot.lane.b32.xlu0 %v120, 64
    %v122 = vpop.permute.xlu0 %121
    %vm123 = vcmask 130048
    %s124 = scalar_lea.vmem %s1, 68
    %125 = vst.msk [vmem:[%s124] ss:$8 sm:$0xf] %vm123, %v122
    %v126 = vld.sshfl [vmem:[#allocation0] sm:$0xff pattern:$0xaaa29180]
    %s127 = scalar_lea.vmem [#allocation0], 4294967264
    %s128 = smov 192
    %v129 = vld [vmem:[%s127] ss:$8 sm:%s128]
    %vm130 = vcmask 1047558
    %v131 = vsel %vm130, %v129, %v126
    %132 = vrot.lane.b32.xlu0 %v131, 48
    %v133 = vpop.permute.xlu0 %132
    %vm134 = vcmask 130048
    %s135 = scalar_lea.vmem %s1, 5
    %136 = vst.msk [vmem:[%s135] ss:$8 sm:$0xf] %vm134, %v133
    %s137 = scalar_lea.vmem %s1, 5
    %138 = vst.msk [vmem:[%s137] ss:$8 sm:$0xf0] %vm134, %v133
    %s139 = scalar_lea.vmem [#allocation0], 17
    %v140 = vld.sshfl [vmem:[%s139] sm:$0xff pattern:$0x99999180]
    %141 = vrot.lane.b32.xlu0 %v140, 48
    %v142 = vpop.permute.xlu0 %141
    %vm143 = vcmask 130048
    %s144 = scalar_lea.vmem %s1, 69
    %145 = vst.msk [vmem:[%s144] ss:$8 sm:$0xf] %vm143, %v142
    %v146 = vld.sshfl [vmem:[#allocation0] sm:$0xff pattern:$0xaaa29180]
    %s147 = scalar_lea.vmem [#allocation0], 4294967264
    %s148 = smov 192
    %v149 = vld [vmem:[%s147] ss:$8 sm:%s148]
    %vm150 = vcmask 1047558
    %v151 = vsel %vm150, %v149, %v146
    %152 = vrot.lane.b32.xlu0 %v151, 32
    %v153 = vpop.permute.xlu0 %152
    %vm154 = vcmask 130048
    %s155 = scalar_lea.vmem %s1, 6
    %156 = vst.msk [vmem:[%s155] ss:$8 sm:$0xf] %vm154, %v153
    %s157 = scalar_lea.vmem %s1, 6
    %158 = vst.msk [vmem:[%s157] ss:$8 sm:$0xf0] %vm154, %v153
    %s159 = scalar_lea.vmem [#allocation0], 17
    %v160 = vld.sshfl [vmem:[%s159] sm:$0xff pattern:$0x99999180]
    %161 = vrot.lane.b32.xlu0 %v160, 32
    %v162 = vpop.permute.xlu0 %161
    %vm163 = vcmask 130048
    %s164 = scalar_lea.vmem %s1, 70
    %165 = vst.msk [vmem:[%s164] ss:$8 sm:$0xf] %vm163, %v162
    %v166 = vld.sshfl [vmem:[#allocation0] sm:$0xff pattern:$0xaaa29180]
    %s167 = scalar_lea.vmem [#allocation0], 4294967264
    %s168 = smov 192
    %v169 = vld [vmem:[%s167] ss:$8 sm:%s168]
    %vm170 = vcmask 1047558
    %v171 = vsel %vm170, %v169, %v166
    %172 = vrot.lane.b32.xlu0 %v171, 16
    %v173 = vpop.permute.xlu0 %172
    %vm174 = vcmask 130048
    %s175 = scalar_lea.vmem %s1, 7
    %176 = vst.msk [vmem:[%s175] ss:$8 sm:$0xf] %vm174, %v173
    %s177 = scalar_lea.vmem %s1, 7
    %178 = vst.msk [vmem:[%s177] ss:$8 sm:$0xf0] %vm174, %v173
    %s179 = scalar_lea.vmem [#allocation0], 17
    %v180 = vld.sshfl [vmem:[%s179] sm:$0xff pattern:$0x99999180]
    %181 = vrot.lane.b32.xlu0 %v180, 16
    %v182 = vpop.permute.xlu0 %181
    %vm183 = vcmask 130048
    %s184 = scalar_lea.vmem %s1, 71
    %185 = vst.msk [vmem:[%s184] ss:$8 sm:$0xf] %vm183, %v182

// kernel: squeeze.4
$region0: #{squeeze.4}
  %s0 = inlined_call_operand.vmem [shape: f32[2,3,64], index: 0, kind: input, shape index: {}]
  %s1 = inlined_call_operand.vmem [shape: f32[2,3,8,8], index: 1, kind: output, shape index: {}]
  $region1: #{squeeze.4} parent=0
    #allocation0 [shape = 'u8[8192]{0}', space=vmem, size = 0x2000, scoped, tag = 'scoped mem for input reshape']
    %s3 = sshllo.u32 0, 4
    %s4 = scalar_lea.vmem %s0, 4
    %v5 = vld [vmem:[%s4] sm:%s3]
    %s6 = scalar_lea.vmem [#allocation0], 8
    %7 = vst [vmem:[%s6] sm:%s3] %v5
    %v8 = vld [vmem:[%s0] sm:%s3]
    %9 = vst [vmem:[#allocation0] sm:%s3] %v8
    %v10 = vld [vmem:[#allocation0] sm:$0x7]
    %vm11 = vcmask 64512
    %12 = vst.msk [vmem:[%s1] ss:$8 sm:$0x7] %vm11, %v10
    %s13 = scalar_lea.vmem [#allocation0], 8
    %v14 = vld [vmem:[%s13] sm:$0x7]
    %vm15 = vcmask 64512
    %s16 = scalar_lea.vmem %s1, 24
    %17 = vst.msk [vmem:[%s16] ss:$8 sm:$0x7] %vm15, %v14
    %v18 = vld.sshfl [vmem:[#allocation0] sm:$0xff pattern:$0xaaa98210]
    %19 = vrot.lane.b32.xlu0 %v18, 120
    %v20 = vpop.permute.xlu0 %19
    %vm21 = vcmask 64512
    %s22 = scalar_lea.vmem %s1, 1
    %23 = vst.msk [vmem:[%s22] ss:$8 sm:$0xf] %vm21, %v20
    %s24 = scalar_lea.vmem %s1, 1
    %25 = vst.msk [vmem:[%s24] ss:$8 sm:$0x30] %vm21, %v20
    %v26 = vld.sshfl [vmem:[#allocation0] sm:$0xff pattern:$0xaaa98210]
    %27 = vrot.lane.b32.xlu0 %v26, 112
    %v28 = vpop.permute.xlu0 %27
    %vm29 = vcmask 64512
    %s30 = scalar_lea.vmem %s1, 2
    %31 = vst.msk [vmem:[%s30] ss:$8 sm:$0xf] %vm29, %v28
    %s32 = scalar_lea.vmem %s1, 2
    %33 = vst.msk [vmem:[%s32] ss:$8 sm:$0x30] %vm29, %v28
    %v34 = vld.sshfl [vmem:[#allocation0] sm:$0xff pattern:$0xaaa98210]
    %35 = vrot.lane.b32.xlu0 %v34, 104
    %v36 = vpop.permute.xlu0 %35
    %vm37 = vcmask 64512
    %s38 = scalar_lea.vmem %s1, 3
    %39 = vst.msk [vmem:[%s38] ss:$8 sm:$0xf] %vm37, %v36
    %s40 = scalar_lea.vmem %s1, 3
    %41 = vst.msk [vmem:[%s40] ss:$8 sm:$0x30] %vm37, %v36
    %v42 = vld.sshfl [vmem:[#allocation0] sm:$0xff pattern:$0xaaa98210]
    %43 = vrot.lane.b32.xlu0 %v42, 96
    %v44 = vpop.permute.xlu0 %43
    %vm45 = vcmask 64512
    %s46 = scalar_lea.vmem %s1, 4
    %47 = vst.msk [vmem:[%s46] ss:$8 sm:$0xf] %vm45, %v44
    %s48 = scalar_lea.vmem %s1, 4
    %49 = vst.msk [vmem:[%s48] ss:$8 sm:$0x30] %vm45, %v44
    %v50 = vld.sshfl [vmem:[#allocation0] sm:$0xff pattern:$0xaaa98210]
    %51 = vrot.lane.b32.xlu0 %v50, 88
    %v52 = vpop.permute.xlu0 %51
    %vm53 = vcmask 64512
    %s54 = scalar_lea.vmem %s1, 5
    %55 = vst.msk [vmem:[%s54] ss:$8 sm:$0xf] %vm53, %v52
    %s56 = scalar_lea.vmem %s1, 5
    %57 = vst.msk [vmem:[%s56] ss:$8 sm:$0x30] %vm53, %v52
    %v58 = vld.sshfl [vmem:[#allocation0] sm:$0xff pattern:$0xaaa98210]
    %59 = vrot.lane.b32.xlu0 %v58, 80
    %v60 = vpop.permute.xlu0 %59
    %vm61 = vcmask 64512
    %s62 = scalar_lea.vmem %s1, 6
    %63 = vst.msk [vmem:[%s62] ss:$8 sm:$0xf] %vm61, %v60
    %s64 = scalar_lea.vmem %s1, 6
    %65 = vst.msk [vmem:[%s64] ss:$8 sm:$0x30] %vm61, %v60
    %v66 = vld.sshfl [vmem:[#allocation0] sm:$0xff pattern:$0xaaa98210]
    %67 = vrot.lane.b32.xlu0 %v66, 72
    %v68 = vpop.permute.xlu0 %67
    %vm69 = vcmask 64512
    %s70 = scalar_lea.vmem %s1, 7
    %71 = vst.msk [vmem:[%s70] ss:$8 sm:$0xf] %vm69, %v68
    %s72 = scalar_lea.vmem %s1, 7
    %73 = vst.msk [vmem:[%s72] ss:$8 sm:$0x30] %vm69, %v68

// kernel: fecanet_forward.3
$region0: #{fecanet_forward.3}
  #allocation0 [shape = 'u32[]', space=smem, size = 0x4, offset = 0x4, fixed_abs, tag = 'smem constant byte address 0x4 - core index']
  #allocation1 [shape = 'u32[144,128]{1,0:T(1,128)}', space=vmem, size = 0x12000, scoped, tag = 'internal scratch']
  %s0 = inlined_call_operand.vmem [shape: f32[2,3,256,32], index: 0, kind: input, shape index: {}]
  %s1 = inlined_call_operand.vmem [shape: f32[2,3,32,256], index: 1, kind: input, shape index: {}]
  %s2 = inlined_call_operand.vmem [shape: f32[2,3,1,256], index: 2, kind: input, shape index: {}]
  %s3 = inlined_call_operand.vmem [shape: f32[2,3,1,256], index: 3, kind: output, shape index: {}]
  %s4 = sld [smem:[#allocation0]]
  $region49: #{fecanet_forward.3} parent=0
    _
  %s6 = ssub.s32 1, %s4
  %s7 = scalar_select 0, %s6, %s4
  loop: start=0, step=1, limit=8
  $region2: #{fecanet_forward.3} parent=0 // loop_pre_header
    _
  $region3: #{fecanet_forward.3} parent=0 // loop_header
    %s9 = sphi 0, %s13
    %p10 = scmp.ge.s32.totalorder %s9, 8
    %s16 = sphi 0, %s42
    %s17 = sphi 0, %s38
    %s18 = sphi 0, %s34
    %s19 = sphi 0, %s30
    %s20 = sphi 0, %s16
    %s21 = sphi 0, %s17
    %s22 = sphi 0, %s18
    %s23 = sphi 0, %s19
    %s24 = sphi 0, %s20
    %s25 = sphi 0, %s21
    %s26 = sphi 0, %s22
    %s27 = sphi 0, %s23
    %s49 = sphi 0, %s51
    %s52 = sphi 0, %s49
    %s53 = sphi 0, %s52
    %s69 = sphi 0, %s53
    %s79 = sphi 0, %s81
    %s82 = sphi 0, %s79
    %s83 = sphi 0, %s82
    %s99 = sphi 0, %s83
    %s109 = sphi 0, %s111
    %s112 = sphi 0, %s109
    %s113 = sphi 0, %s112
    %s129 = sphi 0, %s113
    %s139 = sphi 0, %s141
    %s142 = sphi 0, %s139
    %s143 = sphi 0, %s142
    %s159 = sphi 0, %s143
  $region4: #{fecanet_forward.3} parent=0 // loop_header_branch
    %12 = sbr.rel (%p10) target = $region8
  $region5: #{fecanet_forward.3} parent=0 // loop_body
    %s14 = ssub.s32 %s9, 1
    %s15 = ssub.s32 %s9, 2
    %s28 = sadd.s32 1, %s19
    %p29 = scmp.ge.s32.totalorder %s28, 1
    %s30 = scalar_select %p29, 0, %s28
    %s31 = sadd.s32 1, %s18
    %s32 = scalar_select %p29, %s31, %s18
    %p33 = scmp.ge.s32.totalorder %s32, 1
    %s34 = scalar_select %p33, 0, %s32
    %s35 = sadd.s32 1, %s17
    %s36 = scalar_select %p33, %s35, %s17
    %p37 = scmp.ge.s32.totalorder %s36, 3
    %s38 = scalar_select %p37, 0, %s36
    %s39 = sadd.s32 1, %s16
    %s40 = scalar_select %p37, %s39, %s16
    %p41 = scmp.ge.s32.totalorder %s40, 2
    %s42 = scalar_select %p41, 0, %s40
    %s43 = ssub.s32 %s16, %s42
    %s44 = ssub.s32 %s17, %s38
    %s45 = sor.u32 %s43, %s44
    %s46 = ssub.s32 %s18, %s34
    %s47 = sor.u32 %s45, %s46
    %p48 = scmp.eq.s32.totalorder %s47, 0
    %s50 = sadd.s32 %s49, 1
    %s51 = scalar_select %p48, %s49, %s50
    %p54 = pneg %p48
    %p55 = scmp.eq.s32.totalorder %s9, 5
    %p56 = por %p54, %p55
    %p57 = scmp.ne.s32.totalorder %s49, %s52
    %p58 = scmp.eq.s32.totalorder %s9, 0
    %p59 = por %p57, %p58
    %p60 = scmp.ne.s32.totalorder %s49, %s52
    %p61 = scmp.eq.s32.totalorder %s14, 5
    %p62 = por %p60, %p61
    %p63 = scmp.ne.s32.totalorder %s52, %s53
    %p64 = scmp.eq.s32.totalorder %s14, 0
    %p65 = por %p63, %p64
    %p66 = scmp.ne.s32.totalorder %s52, %s53
    %p67 = scmp.eq.s32.totalorder %s15, 5
    %p68 = por %p66, %p67
    %p70 = scmp.ne.s32.totalorder %s53, %s69
    %p71 = scmp.eq.s32.totalorder %s15, 0
    %p72 = por %p70, %p71
    %s73 = ssub.s32 %s16, %s42
    %s74 = ssub.s32 %s17, %s38
    %s75 = sor.u32 %s73, %s74
    %s76 = ssub.s32 %s19, %s30
    %s77 = sor.u32 %s75, %s76
    %p78 = scmp.eq.s32.totalorder %s77, 0
    %s80 = sadd.s32 %s79, 1
    %s81 = scalar_select %p78, %s79, %s80
    %p84 = pneg %p78
    %p85 = scmp.eq.s32.totalorder %s9, 5
    %p86 = por %p84, %p85
    %p87 = scmp.ne.s32.totalorder %s79, %s82
    %p88 = scmp.eq.s32.totalorder %s9, 0
    %p89 = por %p87, %p88
    %p90 = scmp.ne.s32.totalorder %s79, %s82
    %p91 = scmp.eq.s32.totalorder %s14, 5
    %p92 = por %p90, %p91
    %p93 = scmp.ne.s32.totalorder %s82, %s83
    %p94 = scmp.eq.s32.totalorder %s14, 0
    %p95 = por %p93, %p94
    %p96 = scmp.ne.s32.totalorder %s82, %s83
    %p97 = scmp.eq.s32.totalorder %s15, 5
    %p98 = por %p96, %p97
    %p100 = scmp.ne.s32.totalorder %s83, %s99
    %p101 = scmp.eq.s32.totalorder %s15, 0
    %p102 = por %p100, %p101
    %s103 = ssub.s32 %s16, %s42
    %s104 = ssub.s32 %s17, %s38
    %s105 = sor.u32 %s103, %s104
    %s106 = ssub.s32 %s19, %s30
    %s107 = sor.u32 %s105, %s106
    %p108 = scmp.eq.s32.totalorder %s107, 0
    %s110 = sadd.s32 %s109, 1
    %s111 = scalar_select %p108, %s109, %s110
    %p114 = pneg %p108
    %p115 = scmp.eq.s32.totalorder %s9, 5
    %p116 = por %p114, %p115
    %p117 = scmp.ne.s32.totalorder %s109, %s112
    %p118 = scmp.eq.s32.totalorder %s9, 0
    %p119 = por %p117, %p118
    %p120 = scmp.ne.s32.totalorder %s109, %s112
    %p121 = scmp.eq.s32.totalorder %s14, 5
    %p122 = por %p120, %p121
    %p123 = scmp.ne.s32.totalorder %s112, %s113
    %p124 = scmp.eq.s32.totalorder %s14, 0
    %p125 = por %p123, %p124
    %p126 = scmp.ne.s32.totalorder %s112, %s113
    %p127 = scmp.eq.s32.totalorder %s15, 5
    %p128 = por %p126, %p127
    %p130 = scmp.ne.s32.totalorder %s113, %s129
    %p131 = scmp.eq.s32.totalorder %s15, 0
    %p132 = por %p130, %p131
    %s133 = ssub.s32 %s16, %s42
    %s134 = ssub.s32 %s17, %s38
    %s135 = sor.u32 %s133, %s134
    %s136 = ssub.s32 %s18, %s34
    %s137 = sor.u32 %s135, %s136
    %p138 = scmp.eq.s32.totalorder %s137, 0
    %s140 = sadd.s32 %s139, 1
    %s141 = scalar_select %p138, %s139, %s140
    %p144 = pneg %p138
    %p145 = scmp.eq.s32.totalorder %s9, 5
    %p146 = por %p144, %p145
    %p147 = scmp.ne.s32.totalorder %s139, %s142
    %p148 = scmp.eq.s32.totalorder %s9, 0
    %p149 = por %p147, %p148
    %p150 = scmp.ne.s32.totalorder %s139, %s142
    %p151 = scmp.eq.s32.totalorder %s14, 5
    %p152 = por %p150, %p151
    %p153 = scmp.ne.s32.totalorder %s142, %s143
    %p154 = scmp.eq.s32.totalorder %s14, 0
    %p155 = por %p153, %p154
    %p156 = scmp.ne.s32.totalorder %s142, %s143
    %p157 = scmp.eq.s32.totalorder %s15, 5
    %p158 = por %p156, %p157
    %p160 = scmp.ne.s32.totalorder %s143, %s159
    %p161 = scmp.eq.s32.totalorder %s15, 0
    %p162 = por %p160, %p161
    %p163 = scmp.le.s32.totalorder 1, %s9
    %p164 = scmp.lt.s32.totalorder %s9, 7
    %p165 = pnand %p163, %p164
    %p166 = pneg %p165
    // Predicated region
    $region9: #{fecanet_forward.3} parent=5 // pred_check
      _
    $region10: #{fecanet_forward.3} parent=5 // pred_check_branch
      %168 = sbr.rel (%p165) target = $region12
    $region11: #{fecanet_forward.3} parent=5 // pred_region
      %s169 = ssub.s32 %s9, 1
    $region12: #{fecanet_forward.3} parent=5 // pred_fallthru
      _
    %p170 = scmp.lt.s32.totalorder %s9, 6
    // Predicated region
    $region13: #{fecanet_forward.3} parent=5 // pred_check
      %p171 = pneg %p170
    $region14: #{fecanet_forward.3} parent=5 // pred_check_branch
      %173 = sbr.rel (%p171) target = $region16
    $region15: #{fecanet_forward.3} parent=5 // pred_region
      // Predicated region
      $region17: #{fecanet_forward.3} parent=15 // pred_check
        %p174 = pneg %p59
      $region18: #{fecanet_forward.3} parent=15 // pred_check_branch
        %176 = sbr.rel (%p174) target = $region20
      $region19: #{fecanet_forward.3} parent=15 // pred_region
        %s177 = smul.u32 32, %s18
        %p178 = scmp.lt.s32.totalorder %s16, 1
        %s179 = scalar_select %p178, %s16, 1
        %p180 = scmp.lt.s32.totalorder %s17, 2
        %s181 = scalar_select %p180, %s17, 2
        %p182 = scmp.lt.s32.totalorder %s177, 31
        %s183 = scalar_select %p182, %s177, 31
        %s184 = smul.addr %s181, 32
        %s185 = sadd.s32 %s183, %s184
        %s186 = smul.addr %s179, 96
        %s187 = sadd.s32 %s185, %s186
        %s188 = smul.addr %s187, 8
        %s189 = scalar_lea.vmem %s0, %s188
        %s190 = smul.u32 32, %s18
      $region20: #{fecanet_forward.3} parent=15 // pred_fallthru
        _
      // Predicated region
      $region21: #{fecanet_forward.3} parent=15 // pred_check
        %p191 = pneg %p89
      $region22: #{fecanet_forward.3} parent=15 // pred_check_branch
        %193 = sbr.rel (%p191) target = $region24
      $region23: #{fecanet_forward.3} parent=15 // pred_region
        %s194 = smul.u32 2, %s19
        %p195 = scmp.lt.s32.totalorder %s16, 1
        %s196 = scalar_select %p195, %s16, 1
        %p197 = scmp.lt.s32.totalorder %s17, 2
        %s198 = scalar_select %p197, %s17, 2
        %p199 = scmp.lt.s32.totalorder %s194, 1
        %s200 = scalar_select %p199, %s194, 1
        %s201 = smul.addr %s198, 8
        %s202 = sadd.s32 %s200, %s201
        %s203 = smul.addr %s196, 24
        %s204 = sadd.s32 %s202, %s203
        %s205 = smul.addr %s204, 8
        %s206 = scalar_lea.vmem %s1, %s205
        %s207 = smul.u32 2, %s19
      $region24: #{fecanet_forward.3} parent=15 // pred_fallthru
        _
      // Predicated region
      $region25: #{fecanet_forward.3} parent=15 // pred_check
        %p208 = pneg %p119
      $region26: #{fecanet_forward.3} parent=15 // pred_check_branch
        %210 = sbr.rel (%p208) target = $region28
      $region27: #{fecanet_forward.3} parent=15 // pred_region
        %s211 = smul.u32 2, %s19
        %p212 = scmp.lt.s32.totalorder %s16, 1
        %s213 = scalar_select %p212, %s16, 1
        %p214 = scmp.lt.s32.totalorder %s17, 2
        %s215 = scalar_select %p214, %s17, 2
        %p216 = scmp.lt.s32.totalorder %s211, 1
        %s217 = scalar_select %p216, %s211, 1
        %s218 = smul.addr %s215, 2
        %s219 = sadd.s32 %s217, %s218
        %s220 = smul.addr %s213, 6
        %s221 = sadd.s32 %s219, %s220
        %s222 = scalar_lea.vmem %s2, %s221
        %s223 = smul.u32 2, %s19
      $region28: #{fecanet_forward.3} parent=15 // pred_fallthru
        _
    $region16: #{fecanet_forward.3} parent=5 // pred_fallthru
      _
    %p224 = scmp.le.s32.totalorder 1, %s9
    %p225 = scmp.lt.s32.totalorder %s9, 7
    %p226 = pnand %p224, %p225
    %p227 = pneg %p226
    // Predicated region
    $region29: #{fecanet_forward.3} parent=5 // pred_check
      _
    $region30: #{fecanet_forward.3} parent=5 // pred_check_branch
      %229 = sbr.rel (%p226) target = $region32
    $region31: #{fecanet_forward.3} parent=5 // pred_region
      %s230 = ssub.s32 %s9, 1
      %s231 = smul.u32 32, %s22
      %p232 = scmp.lt.s32.totalorder %s20, 1
      %s233 = scalar_select %p232, %s20, 1
      %p234 = scmp.lt.s32.totalorder %s21, 2
      %s235 = scalar_select %p234, %s21, 2
      %p236 = scmp.lt.s32.totalorder %s231, 31
      %s237 = scalar_select %p236, %s231, 31
      %s238 = smul.addr %s235, 32
      %s239 = sadd.s32 %s237, %s238
      %s240 = smul.addr %s233, 96
      %s241 = sadd.s32 %s239, %s240
      %s242 = smul.addr %s241, 8
      %s243 = scalar_lea.vmem %s0, %s242
      %p244 = pneg %p65
      %p245 = pneg %p62
      %s246 = smul.u32 2, %s23
      %p247 = scmp.lt.s32.totalorder %s20, 1
      %s248 = scalar_select %p247, %s20, 1
      %p249 = scmp.lt.s32.totalorder %s21, 2
      %s250 = scalar_select %p249, %s21, 2
      %p251 = scmp.lt.s32.totalorder %s246, 1
      %s252 = scalar_select %p251, %s246, 1
      %s253 = smul.addr %s250, 8
      %s254 = sadd.s32 %s252, %s253
      %s255 = smul.addr %s248, 24
      %s256 = sadd.s32 %s254, %s255
      %s257 = smul.addr %s256, 8
      %s258 = scalar_lea.vmem %s1, %s257
      %p259 = pneg %p95
      %p260 = pneg %p92
      %s261 = smul.u32 2, %s23
      %p262 = scmp.lt.s32.totalorder %s20, 1
      %s263 = scalar_select %p262, %s20, 1
      %p264 = scmp.lt.s32.totalorder %s21, 2
      %s265 = scalar_select %p264, %s21, 2
      %p266 = scmp.lt.s32.totalorder %s261, 1
      %s267 = scalar_select %p266, %s261, 1
      %s268 = smul.addr %s265, 2
      %s269 = sadd.s32 %s267, %s268
      %s270 = smul.addr %s263, 6
      %s271 = sadd.s32 %s269, %s270
      %s272 = scalar_lea.vmem %s2, %s271
      %p273 = pneg %p125
      %p274 = pneg %p122
      %p275 = pneg %p155
      %p276 = pneg %p152
      %s277 = smul.u32 2, %s22
      %p278 = scmp.lt.s32.totalorder %s20, 1
      %s279 = scalar_select %p278, %s20, 1
      %p280 = scmp.lt.s32.totalorder %s21, 2
      %s281 = scalar_select %p280, %s21, 2
      %p282 = scmp.lt.s32.totalorder %s277, 1
      %s283 = scalar_select %p282, %s277, 1
      %s284 = smul.addr %s281, 2
      %s285 = sadd.s32 %s283, %s284
      %s286 = smul.addr %s279, 6
      %s287 = sadd.s32 %s285, %s286
      %s288 = scalar_lea.vmem %s3, %s287
      %s289 = smul.u32 32, %s22
      %p290 = scmp.lt.s32.totalorder %s20, 1
      %s291 = scalar_select %p290, %s20, 1
      %p292 = scmp.lt.s32.totalorder %s21, 2
      %s293 = scalar_select %p292, %s21, 2
      %p294 = scmp.lt.s32.totalorder %s289, 31
      %s295 = scalar_select %p294, %s289, 31
      %s296 = smul.addr %s293, 32
      %s297 = sadd.s32 %s295, %s296
      %s298 = smul.addr %s291, 96
      %s299 = sadd.s32 %s297, %s298
      %s300 = smul.addr %s299, 8
      %s301 = scalar_lea.vmem %s0, %s300
      %s302 = smul.u32 32, %s22
      %s303 = smul.u32 2, %s23
      %p304 = scmp.lt.s32.totalorder %s20, 1
      %s305 = scalar_select %p304, %s20, 1
      %p306 = scmp.lt.s32.totalorder %s21, 2
      %s307 = scalar_select %p306, %s21, 2
      %p308 = scmp.lt.s32.totalorder %s303, 1
      %s309 = scalar_select %p308, %s303, 1
      %s310 = smul.addr %s307, 8
      %s311 = sadd.s32 %s309, %s310
      %s312 = smul.addr %s305, 24
      %s313 = sadd.s32 %s311, %s312
      %s314 = smul.addr %s313, 8
      %s315 = scalar_lea.vmem %s1, %s314
      %s316 = smul.u32 2, %s23
      %s317 = smul.u32 2, %s23
      %p318 = scmp.lt.s32.totalorder %s20, 1
      %s319 = scalar_select %p318, %s20, 1
      %p320 = scmp.lt.s32.totalorder %s21, 2
      %s321 = scalar_select %p320, %s21, 2
      %p322 = scmp.lt.s32.totalorder %s317, 1
      %s323 = scalar_select %p322, %s317, 1
      %s324 = smul.addr %s321, 2
      %s325 = sadd.s32 %s323, %s324
      %s326 = smul.addr %s319, 6
      %s327 = sadd.s32 %s325, %s326
      %s328 = scalar_lea.vmem %s2, %s327
      %s329 = smul.u32 2, %s23
      %s330 = smul.u32 2, %s22
      %p331 = scmp.lt.s32.totalorder %s20, 1
      %s332 = scalar_select %p331, %s20, 1
      %p333 = scmp.lt.s32.totalorder %s21, 2
      %s334 = scalar_select %p333, %s21, 2
      %p335 = scmp.lt.s32.totalorder %s330, 1
      %s336 = scalar_select %p335, %s330, 1
      %s337 = smul.addr %s334, 2
      %s338 = sadd.s32 %s336, %s337
      %s339 = smul.addr %s332, 6
      %s340 = sadd.s32 %s338, %s339
      %s341 = scalar_lea.vmem %s3, %s340
      %s342 = smul.u32 2, %s22
      %v344 = vld [vmem:[%s301] sm:$0xff]
      %v345 = vld [vmem:[%s301 + $0x8] sm:$0xff]
      %v346 = vld [vmem:[%s301 + $0x10] sm:$0xff]
      %v347 = vld [vmem:[%s301 + $0x18] sm:$0xff]
      %v348 = vld [vmem:[%s301 + $0x20] sm:$0xff]
      %v349 = vld [vmem:[%s301 + $0x28] sm:$0xff]
      %v350 = vld [vmem:[%s301 + $0x30] sm:$0xff]
      %v351 = vld [vmem:[%s301 + $0x38] sm:$0xff]
      %v352 = vld [vmem:[%s301 + $0x40] sm:$0xff]
      %v353 = vld [vmem:[%s301 + $0x48] sm:$0xff]
      %v354 = vld [vmem:[%s301 + $0x50] sm:$0xff]
      %v355 = vld [vmem:[%s301 + $0x58] sm:$0xff]
      %v356 = vld [vmem:[%s301 + $0x60] sm:$0xff]
      %v357 = vld [vmem:[%s301 + $0x68] sm:$0xff]
      %v358 = vld [vmem:[%s301 + $0x70] sm:$0xff]
      %v359 = vld [vmem:[%s301 + $0x78] sm:$0xff]
      %v360 = vld [vmem:[%s301 + $0x80] sm:$0xff]
      %v361 = vld [vmem:[%s301 + $0x88] sm:$0xff]
      %v362 = vld [vmem:[%s301 + $0x90] sm:$0xff]
      %v363 = vld [vmem:[%s301 + $0x98] sm:$0xff]
      %v364 = vld [vmem:[%s301 + $0xa0] sm:$0xff]
      %v365 = vld [vmem:[%s301 + $0xa8] sm:$0xff]
      %v366 = vld [vmem:[%s301 + $0xb0] sm:$0xff]
      %v367 = vld [vmem:[%s301 + $0xb8] sm:$0xff]
      %v368 = vld [vmem:[%s301 + $0xc0] sm:$0xff]
      %v369 = vld [vmem:[%s301 + $0xc8] sm:$0xff]
      %v370 = vld [vmem:[%s301 + $0xd0] sm:$0xff]
      %v371 = vld [vmem:[%s301 + $0xd8] sm:$0xff]
      %v372 = vld [vmem:[%s301 + $0xe0] sm:$0xff]
      %v373 = vld [vmem:[%s301 + $0xe8] sm:$0xff]
      %v374 = vld [vmem:[%s301 + $0xf0] sm:$0xff]
      %v375 = vld [vmem:[%s301 + $0xf8] sm:$0xff]
      %v376 = vld [vmem:[%s315] sm:$0xff]
      %v377 = vld [vmem:[%s315 + $0x8] sm:$0xff]
      %v378 = vld [vmem:[%s315 + $0x10] sm:$0xff]
      %v379 = vld [vmem:[%s315 + $0x18] sm:$0xff]
      %v380 = vld [vmem:[%s315 + $0x20] sm:$0xff]
      %v381 = vld [vmem:[%s315 + $0x28] sm:$0xff]
      %v382 = vld [vmem:[%s315 + $0x30] sm:$0xff]
      %v383 = vld [vmem:[%s315 + $0x38] sm:$0xff]
      %v384 = vld [vmem:[%s328] sm:$0x3]
      %v386 = vlaneseq
      %v387 = vshrl.u32 %v386, 7
      %v388 = vsub.s32 0, %v387
      %v389 = vrot.slane %v384, %v388
      %v390 = vlaneseq
      %v391 = vshrl.u32 %v390, 7
      %v392 = vsub.s32 1, %v391
      %v393 = vrot.slane %v384, %v392
      %v396 = vmul.f32 %v376, %v389
      %v397 = vmul.f32 %v377, %v393
      %v398 = vmul.f32 %v378, %v389
      %v399 = vmul.f32 %v379, %v393
      %v400 = vmul.f32 %v380, %v389
      %v401 = vmul.f32 %v381, %v393
      %v402 = vmul.f32 %v382, %v389
      %v403 = vmul.f32 %v383, %v393
      %v404 = vmul.f32 %v344, %v344
      %v405 = vmul.f32 %v345, %v345
      %v406 = vmul.f32 %v346, %v346
      %v407 = vmul.f32 %v347, %v347
      %v408 = vmul.f32 %v348, %v348
      %v409 = vmul.f32 %v349, %v349
      %v410 = vmul.f32 %v350, %v350
      %v411 = vmul.f32 %v351, %v351
      %v412 = vmul.f32 %v352, %v352
      %v413 = vmul.f32 %v353, %v353
      %v414 = vmul.f32 %v354, %v354
      %v415 = vmul.f32 %v355, %v355
      %v416 = vmul.f32 %v356, %v356
      %v417 = vmul.f32 %v357, %v357
      %v418 = vmul.f32 %v358, %v358
      %v419 = vmul.f32 %v359, %v359
      %v420 = vmul.f32 %v360, %v360
      %v421 = vmul.f32 %v361, %v361
      %v422 = vmul.f32 %v362, %v362
      %v423 = vmul.f32 %v363, %v363
      %v424 = vmul.f32 %v364, %v364
      %v425 = vmul.f32 %v365, %v365
      %v426 = vmul.f32 %v366, %v366
      %v427 = vmul.f32 %v367, %v367
      %v428 = vmul.f32 %v368, %v368
      %v429 = vmul.f32 %v369, %v369
      %v430 = vmul.f32 %v370, %v370
      %v431 = vmul.f32 %v371, %v371
      %v432 = vmul.f32 %v372, %v372
      %v433 = vmul.f32 %v373, %v373
      %v434 = vmul.f32 %v374, %v374
      %v435 = vmul.f32 %v375, %v375
      %vm436 = vcmask 261120
      %v437 = vsel %vm436, %v404, 0.0
      %438 = vadd.xlane.f32.xlu0 %v437
      %v439 = vpop.xlane.xlu0 %438
      %v440 = vsel %vm436, %v405, 0.0
      %441 = vadd.xlane.f32.xlu0 %v440
      %v442 = vpop.xlane.xlu0 %441
      %v443 = vsel %vm436, %v406, 0.0
      %444 = vadd.xlane.f32.xlu0 %v443
      %v445 = vpop.xlane.xlu0 %444
      %v446 = vsel %vm436, %v407, 0.0
      %447 = vadd.xlane.f32.xlu0 %v446
      %v448 = vpop.xlane.xlu0 %447
      %v449 = vsel %vm436, %v408, 0.0
      %450 = vadd.xlane.f32.xlu0 %v449
      %v451 = vpop.xlane.xlu0 %450
      %v452 = vsel %vm436, %v409, 0.0
      %453 = vadd.xlane.f32.xlu0 %v452
      %v454 = vpop.xlane.xlu0 %453
      %v455 = vsel %vm436, %v410, 0.0
      %456 = vadd.xlane.f32.xlu0 %v455
      %v457 = vpop.xlane.xlu0 %456
      %v458 = vsel %vm436, %v411, 0.0
      %459 = vadd.xlane.f32.xlu0 %v458
      %v460 = vpop.xlane.xlu0 %459
      %v461 = vsel %vm436, %v412, 0.0
      %462 = vadd.xlane.f32.xlu0 %v461
      %v463 = vpop.xlane.xlu0 %462
      %v464 = vsel %vm436, %v413, 0.0
      %465 = vadd.xlane.f32.xlu0 %v464
      %v466 = vpop.xlane.xlu0 %465
      %v467 = vsel %vm436, %v414, 0.0
      %468 = vadd.xlane.f32.xlu0 %v467
      %v469 = vpop.xlane.xlu0 %468
      %v470 = vsel %vm436, %v415, 0.0
      %471 = vadd.xlane.f32.xlu0 %v470
      %v472 = vpop.xlane.xlu0 %471
      %v473 = vsel %vm436, %v416, 0.0
      %474 = vadd.xlane.f32.xlu0 %v473
      %v475 = vpop.xlane.xlu0 %474
      %v476 = vsel %vm436, %v417, 0.0
      %477 = vadd.xlane.f32.xlu0 %v476
      %v478 = vpop.xlane.xlu0 %477
      %v479 = vsel %vm436, %v418, 0.0
      %480 = vadd.xlane.f32.xlu0 %v479
      %v481 = vpop.xlane.xlu0 %480
      %v482 = vsel %vm436, %v419, 0.0
      %483 = vadd.xlane.f32.xlu0 %v482
      %v484 = vpop.xlane.xlu0 %483
      %v485 = vsel %vm436, %v420, 0.0
      %486 = vadd.xlane.f32.xlu0 %v485
      %v487 = vpop.xlane.xlu0 %486
      %v488 = vsel %vm436, %v421, 0.0
      %489 = vadd.xlane.f32.xlu0 %v488
      %v490 = vpop.xlane.xlu0 %489
      %v491 = vsel %vm436, %v422, 0.0
      %492 = vadd.xlane.f32.xlu0 %v491
      %v493 = vpop.xlane.xlu0 %492
      %v494 = vsel %vm436, %v423, 0.0
      %495 = vadd.xlane.f32.xlu0 %v494
      %v496 = vpop.xlane.xlu0 %495
      %v497 = vsel %vm436, %v424, 0.0
      %498 = vadd.xlane.f32.xlu0 %v497
      %v499 = vpop.xlane.xlu0 %498
      %v500 = vsel %vm436, %v425, 0.0
      %501 = vadd.xlane.f32.xlu0 %v500
      %v502 = vpop.xlane.xlu0 %501
      %v503 = vsel %vm436, %v426, 0.0
      %504 = vadd.xlane.f32.xlu0 %v503
      %v505 = vpop.xlane.xlu0 %504
      %v506 = vsel %vm436, %v427, 0.0
      %507 = vadd.xlane.f32.xlu0 %v506
      %v508 = vpop.xlane.xlu0 %507
      %v509 = vsel %vm436, %v428, 0.0
      %510 = vadd.xlane.f32.xlu0 %v509
      %v511 = vpop.xlane.xlu0 %510
      %v512 = vsel %vm436, %v429, 0.0
      %513 = vadd.xlane.f32.xlu0 %v512
      %v514 = vpop.xlane.xlu0 %513
      %v515 = vsel %vm436, %v430, 0.0
      %516 = vadd.xlane.f32.xlu0 %v515
      %v517 = vpop.xlane.xlu0 %516
      %v518 = vsel %vm436, %v431, 0.0
      %519 = vadd.xlane.f32.xlu0 %v518
      %v520 = vpop.xlane.xlu0 %519
      %v521 = vsel %vm436, %v432, 0.0
      %522 = vadd.xlane.f32.xlu0 %v521
      %v523 = vpop.xlane.xlu0 %522
      %v524 = vsel %vm436, %v433, 0.0
      %525 = vadd.xlane.f32.xlu0 %v524
      %v526 = vpop.xlane.xlu0 %525
      %v527 = vsel %vm436, %v434, 0.0
      %528 = vadd.xlane.f32.xlu0 %v527
      %v529 = vpop.xlane.xlu0 %528
      %v530 = vsel %vm436, %v435, 0.0
      %531 = vadd.xlane.f32.xlu0 %v530
      %v532 = vpop.xlane.xlu0 %531
      %v533 = vrsqrt.pop %v439
      %v534 = vmul.f32 %v439, %v533
      %vm535 = vcmp.eq.f32.partialorder %v439, inf
      %v536 = vsel %vm535, %v439, %v534
      %vm537 = vcmp.eq.f32.partialorder %v439, 0.0
      %v538 = vand.u32 %v439, 2147483648
      %v539 = vsel %vm537, %v538, %v536
      %v540 = vrsqrt.pop %v442
      %v541 = vmul.f32 %v442, %v540
      %vm542 = vcmp.eq.f32.partialorder %v442, inf
      %v543 = vsel %vm542, %v442, %v541
      %vm544 = vcmp.eq.f32.partialorder %v442, 0.0
      %v545 = vand.u32 %v442, 2147483648
      %v546 = vsel %vm544, %v545, %v543
      %v547 = vrsqrt.pop %v445
      %v548 = vmul.f32 %v445, %v547
      %vm549 = vcmp.eq.f32.partialorder %v445, inf
      %v550 = vsel %vm549, %v445, %v548
      %vm551 = vcmp.eq.f32.partialorder %v445, 0.0
      %v552 = vand.u32 %v445, 2147483648
      %v553 = vsel %vm551, %v552, %v550
      %v554 = vrsqrt.pop %v448
      %v555 = vmul.f32 %v448, %v554
      %vm556 = vcmp.eq.f32.partialorder %v448, inf
      %v557 = vsel %vm556, %v448, %v555
      %vm558 = vcmp.eq.f32.partialorder %v448, 0.0
      %v559 = vand.u32 %v448, 2147483648
      %v560 = vsel %vm558, %v559, %v557
      %v561 = vrsqrt.pop %v451
      %v562 = vmul.f32 %v451, %v561
      %vm563 = vcmp.eq.f32.partialorder %v451, inf
      %v564 = vsel %vm563, %v451, %v562
      %vm565 = vcmp.eq.f32.partialorder %v451, 0.0
      %v566 = vand.u32 %v451, 2147483648
      %v567 = vsel %vm565, %v566, %v564
      %v568 = vrsqrt.pop %v454
      %v569 = vmul.f32 %v454, %v568
      %vm570 = vcmp.eq.f32.partialorder %v454, inf
      %v571 = vsel %vm570, %v454, %v569
      %vm572 = vcmp.eq.f32.partialorder %v454, 0.0
      %v573 = vand.u32 %v454, 2147483648
      %v574 = vsel %vm572, %v573, %v571
      %v575 = vrsqrt.pop %v457
      %v576 = vmul.f32 %v457, %v575
      %vm577 = vcmp.eq.f32.partialorder %v457, inf
      %v578 = vsel %vm577, %v457, %v576
      %vm579 = vcmp.eq.f32.partialorder %v457, 0.0
      %v580 = vand.u32 %v457, 2147483648
      %v581 = vsel %vm579, %v580, %v578
      %v582 = vrsqrt.pop %v460
      %v583 = vmul.f32 %v460, %v582
      %vm584 = vcmp.eq.f32.partialorder %v460, inf
      %v585 = vsel %vm584, %v460, %v583
      %vm586 = vcmp.eq.f32.partialorder %v460, 0.0
      %v587 = vand.u32 %v460, 2147483648
      %v588 = vsel %vm586, %v587, %v585
      %v589 = vrsqrt.pop %v463
      %v590 = vmul.f32 %v463, %v589
      %vm591 = vcmp.eq.f32.partialorder %v463, inf
      %v592 = vsel %vm591, %v463, %v590
      %vm593 = vcmp.eq.f32.partialorder %v463, 0.0
      %v594 = vand.u32 %v463, 2147483648
      %v595 = vsel %vm593, %v594, %v592
      %v596 = vrsqrt.pop %v466
      %v597 = vmul.f32 %v466, %v596
      %vm598 = vcmp.eq.f32.partialorder %v466, inf
      %v599 = vsel %vm598, %v466, %v597
      %vm600 = vcmp.eq.f32.partialorder %v466, 0.0
      %v601 = vand.u32 %v466, 2147483648
      %v602 = vsel %vm600, %v601, %v599
      %v603 = vrsqrt.pop %v469
      %v604 = vmul.f32 %v469, %v603
      %vm605 = vcmp.eq.f32.partialorder %v469, inf
      %v606 = vsel %vm605, %v469, %v604
      %vm607 = vcmp.eq.f32.partialorder %v469, 0.0
      %v608 = vand.u32 %v469, 2147483648
      %v609 = vsel %vm607, %v608, %v606
      %v610 = vrsqrt.pop %v472
      %v611 = vmul.f32 %v472, %v610
      %vm612 = vcmp.eq.f32.partialorder %v472, inf
      %v613 = vsel %vm612, %v472, %v611
      %vm614 = vcmp.eq.f32.partialorder %v472, 0.0
      %v615 = vand.u32 %v472, 2147483648
      %v616 = vsel %vm614, %v615, %v613
      %v617 = vrsqrt.pop %v475
      %v618 = vmul.f32 %v475, %v617
      %vm619 = vcmp.eq.f32.partialorder %v475, inf
      %v620 = vsel %vm619, %v475, %v618
      %vm621 = vcmp.eq.f32.partialorder %v475, 0.0
      %v622 = vand.u32 %v475, 2147483648
      %v623 = vsel %vm621, %v622, %v620
      %v624 = vrsqrt.pop %v478
      %v625 = vmul.f32 %v478, %v624
      %vm626 = vcmp.eq.f32.partialorder %v478, inf
      %v627 = vsel %vm626, %v478, %v625
      %vm628 = vcmp.eq.f32.partialorder %v478, 0.0
      %v629 = vand.u32 %v478, 2147483648
      %v630 = vsel %vm628, %v629, %v627
      %v631 = vrsqrt.pop %v481
      %v632 = vmul.f32 %v481, %v631
      %vm633 = vcmp.eq.f32.partialorder %v481, inf
      %v634 = vsel %vm633, %v481, %v632
      %vm635 = vcmp.eq.f32.partialorder %v481, 0.0
      %v636 = vand.u32 %v481, 2147483648
      %v637 = vsel %vm635, %v636, %v634
      %v638 = vrsqrt.pop %v484
      %v639 = vmul.f32 %v484, %v638
      %vm640 = vcmp.eq.f32.partialorder %v484, inf
      %v641 = vsel %vm640, %v484, %v639
      %vm642 = vcmp.eq.f32.partialorder %v484, 0.0
      %v643 = vand.u32 %v484, 2147483648
      %v644 = vsel %vm642, %v643, %v641
      %v645 = vrsqrt.pop %v487
      %v646 = vmul.f32 %v487, %v645
      %vm647 = vcmp.eq.f32.partialorder %v487, inf
      %v648 = vsel %vm647, %v487, %v646
      %vm649 = vcmp.eq.f32.partialorder %v487, 0.0
      %v650 = vand.u32 %v487, 2147483648
      %v651 = vsel %vm649, %v650, %v648
      %v652 = vrsqrt.pop %v490
      %v653 = vmul.f32 %v490, %v652
      %vm654 = vcmp.eq.f32.partialorder %v490, inf
      %v655 = vsel %vm654, %v490, %v653
      %vm656 = vcmp.eq.f32.partialorder %v490, 0.0
      %v657 = vand.u32 %v490, 2147483648
      %v658 = vsel %vm656, %v657, %v655
      %v659 = vrsqrt.pop %v493
      %v660 = vmul.f32 %v493, %v659
      %vm661 = vcmp.eq.f32.partialorder %v493, inf
      %v662 = vsel %vm661, %v493, %v660
      %vm663 = vcmp.eq.f32.partialorder %v493, 0.0
      %v664 = vand.u32 %v493, 2147483648
      %v665 = vsel %vm663, %v664, %v662
      %v666 = vrsqrt.pop %v496
      %v667 = vmul.f32 %v496, %v666
      %vm668 = vcmp.eq.f32.partialorder %v496, inf
      %v669 = vsel %vm668, %v496, %v667
      %vm670 = vcmp.eq.f32.partialorder %v496, 0.0
      %v671 = vand.u32 %v496, 2147483648
      %v672 = vsel %vm670, %v671, %v669
      %v673 = vrsqrt.pop %v499
      %v674 = vmul.f32 %v499, %v673
      %vm675 = vcmp.eq.f32.partialorder %v499, inf
      %v676 = vsel %vm675, %v499, %v674
      %vm677 = vcmp.eq.f32.partialorder %v499, 0.0
      %v678 = vand.u32 %v499, 2147483648
      %v679 = vsel %vm677, %v678, %v676
      %v680 = vrsqrt.pop %v502
      %v681 = vmul.f32 %v502, %v680
      %vm682 = vcmp.eq.f32.partialorder %v502, inf
      %v683 = vsel %vm682, %v502, %v681
      %vm684 = vcmp.eq.f32.partialorder %v502, 0.0
      %v685 = vand.u32 %v502, 2147483648
      %v686 = vsel %vm684, %v685, %v683
      %v687 = vrsqrt.pop %v505
      %v688 = vmul.f32 %v505, %v687
      %vm689 = vcmp.eq.f32.partialorder %v505, inf
      %v690 = vsel %vm689, %v505, %v688
      %vm691 = vcmp.eq.f32.partialorder %v505, 0.0
      %v692 = vand.u32 %v505, 2147483648
      %v693 = vsel %vm691, %v692, %v690
      %v694 = vrsqrt.pop %v508
      %v695 = vmul.f32 %v508, %v694
      %vm696 = vcmp.eq.f32.partialorder %v508, inf
      %v697 = vsel %vm696, %v508, %v695
      %vm698 = vcmp.eq.f32.partialorder %v508, 0.0
      %v699 = vand.u32 %v508, 2147483648
      %v700 = vsel %vm698, %v699, %v697
      %v701 = vrsqrt.pop %v511
      %v702 = vmul.f32 %v511, %v701
      %vm703 = vcmp.eq.f32.partialorder %v511, inf
      %v704 = vsel %vm703, %v511, %v702
      %vm705 = vcmp.eq.f32.partialorder %v511, 0.0
      %v706 = vand.u32 %v511, 2147483648
      %v707 = vsel %vm705, %v706, %v704
      %v708 = vrsqrt.pop %v514
      %v709 = vmul.f32 %v514, %v708
      %vm710 = vcmp.eq.f32.partialorder %v514, inf
      %v711 = vsel %vm710, %v514, %v709
      %vm712 = vcmp.eq.f32.partialorder %v514, 0.0
      %v713 = vand.u32 %v514, 2147483648
      %v714 = vsel %vm712, %v713, %v711
      %v715 = vrsqrt.pop %v517
      %v716 = vmul.f32 %v517, %v715
      %vm717 = vcmp.eq.f32.partialorder %v517, inf
      %v718 = vsel %vm717, %v517, %v716
      %vm719 = vcmp.eq.f32.partialorder %v517, 0.0
      %v720 = vand.u32 %v517, 2147483648
      %v721 = vsel %vm719, %v720, %v718
      %v722 = vrsqrt.pop %v520
      %v723 = vmul.f32 %v520, %v722
      %vm724 = vcmp.eq.f32.partialorder %v520, inf
      %v725 = vsel %vm724, %v520, %v723
      %vm726 = vcmp.eq.f32.partialorder %v520, 0.0
      %v727 = vand.u32 %v520, 2147483648
      %v728 = vsel %vm726, %v727, %v725
      %v729 = vrsqrt.pop %v523
      %v730 = vmul.f32 %v523, %v729
      %vm731 = vcmp.eq.f32.partialorder %v523, inf
      %v732 = vsel %vm731, %v523, %v730
      %vm733 = vcmp.eq.f32.partialorder %v523, 0.0
      %v734 = vand.u32 %v523, 2147483648
      %v735 = vsel %vm733, %v734, %v732
      %v736 = vrsqrt.pop %v526
      %v737 = vmul.f32 %v526, %v736
      %vm738 = vcmp.eq.f32.partialorder %v526, inf
      %v739 = vsel %vm738, %v526, %v737
      %vm740 = vcmp.eq.f32.partialorder %v526, 0.0
      %v741 = vand.u32 %v526, 2147483648
      %v742 = vsel %vm740, %v741, %v739
      %v743 = vrsqrt.pop %v529
      %v744 = vmul.f32 %v529, %v743
      %vm745 = vcmp.eq.f32.partialorder %v529, inf
      %v746 = vsel %vm745, %v529, %v744
      %vm747 = vcmp.eq.f32.partialorder %v529, 0.0
      %v748 = vand.u32 %v529, 2147483648
      %v749 = vsel %vm747, %v748, %v746
      %v750 = vrsqrt.pop %v532
      %v751 = vmul.f32 %v532, %v750
      %vm752 = vcmp.eq.f32.partialorder %v532, inf
      %v753 = vsel %vm752, %v532, %v751
      %vm754 = vcmp.eq.f32.partialorder %v532, 0.0
      %v755 = vand.u32 %v532, 2147483648
      %v756 = vsel %vm754, %v755, %v753
      %v757 = vadd.f32 %v539, 1e-05
      %v758 = vadd.f32 %v546, 1e-05
      %v759 = vadd.f32 %v553, 1e-05
      %v760 = vadd.f32 %v560, 1e-05
      %v761 = vadd.f32 %v567, 1e-05
      %v762 = vadd.f32 %v574, 1e-05
      %v763 = vadd.f32 %v581, 1e-05
      %v764 = vadd.f32 %v588, 1e-05
      %v765 = vadd.f32 %v595, 1e-05
      %v766 = vadd.f32 %v602, 1e-05
      %v767 = vadd.f32 %v609, 1e-05
      %v768 = vadd.f32 %v616, 1e-05
      %v769 = vadd.f32 %v623, 1e-05
      %v770 = vadd.f32 %v630, 1e-05
      %v771 = vadd.f32 %v637, 1e-05
      %v772 = vadd.f32 %v644, 1e-05
      %v773 = vadd.f32 %v651, 1e-05
      %v774 = vadd.f32 %v658, 1e-05
      %v775 = vadd.f32 %v665, 1e-05
      %v776 = vadd.f32 %v672, 1e-05
      %v777 = vadd.f32 %v679, 1e-05
      %v778 = vadd.f32 %v686, 1e-05
      %v779 = vadd.f32 %v693, 1e-05
      %v780 = vadd.f32 %v700, 1e-05
      %v781 = vadd.f32 %v707, 1e-05
      %v782 = vadd.f32 %v714, 1e-05
      %v783 = vadd.f32 %v721, 1e-05
      %v784 = vadd.f32 %v728, 1e-05
      %v785 = vadd.f32 %v735, 1e-05
      %v786 = vadd.f32 %v742, 1e-05
      %v787 = vadd.f32 %v749, 1e-05
      %v788 = vadd.f32 %v756, 1e-05
      %v789 = vrcp.pop %v757
      %v790 = vrcp.pop %v758
      %v791 = vrcp.pop %v759
      %v792 = vrcp.pop %v760
      %v793 = vrcp.pop %v761
      %v794 = vrcp.pop %v762
      %v795 = vrcp.pop %v763
      %v796 = vrcp.pop %v764
      %v797 = vrcp.pop %v765
      %v798 = vrcp.pop %v766
      %v799 = vrcp.pop %v767
      %v800 = vrcp.pop %v768
      %v801 = vrcp.pop %v769
      %v802 = vrcp.pop %v770
      %v803 = vrcp.pop %v771
      %v804 = vrcp.pop %v772
      %v805 = vrcp.pop %v773
      %v806 = vrcp.pop %v774
      %v807 = vrcp.pop %v775
      %v808 = vrcp.pop %v776
      %v809 = vrcp.pop %v777
      %v810 = vrcp.pop %v778
      %v811 = vrcp.pop %v779
      %v812 = vrcp.pop %v780
      %v813 = vrcp.pop %v781
      %v814 = vrcp.pop %v782
      %v815 = vrcp.pop %v783
      %v816 = vrcp.pop %v784
      %v817 = vrcp.pop %v785
      %v818 = vrcp.pop %v786
      %v819 = vrcp.pop %v787
      %v820 = vrcp.pop %v788
      %v821 = vmul.f32 %v396, %v396
      %v822 = vmul.f32 %v397, %v397
      %v823 = vmul.f32 %v398, %v398
      %v824 = vmul.f32 %v399, %v399
      %v825 = vmul.f32 %v400, %v400
      %v826 = vmul.f32 %v401, %v401
      %v827 = vmul.f32 %v402, %v402
      %v828 = vmul.f32 %v403, %v403
      %v829 = vadd.f32 %v821, %v823
      %v830 = vadd.f32 %v829, %v825
      %v831 = vadd.f32 %v830, %v827
      %v832 = vrot.slane %v831, 4
      %v833 = vadd.f32 %v831, %v832
      %v834 = vrot.slane %v833, 2
      %v835 = vadd.f32 %v833, %v834
      %v836 = vrot.slane %v835, 1
      %v837 = vadd.f32 %v835, %v836
      %v838 = vadd.f32 %v822, %v824
      %v839 = vadd.f32 %v838, %v826
      %v840 = vadd.f32 %v839, %v828
      %v841 = vrot.slane %v840, 4
      %v842 = vadd.f32 %v840, %v841
      %v843 = vrot.slane %v842, 2
      %v844 = vadd.f32 %v842, %v843
      %v845 = vrot.slane %v844, 1
      %v846 = vadd.f32 %v844, %v845
      %v847 = vrsqrt.pop %v837
      %v848 = vmul.f32 %v837, %v847
      %vm849 = vcmp.eq.f32.partialorder %v837, inf
      %v850 = vsel %vm849, %v837, %v848
      %vm851 = vcmp.eq.f32.partialorder %v837, 0.0
      %v852 = vand.u32 %v837, 2147483648
      %v853 = vsel %vm851, %v852, %v850
      %v854 = vrsqrt.pop %v846
      %v855 = vmul.f32 %v846, %v854
      %vm856 = vcmp.eq.f32.partialorder %v846, inf
      %v857 = vsel %vm856, %v846, %v855
      %vm858 = vcmp.eq.f32.partialorder %v846, 0.0
      %v859 = vand.u32 %v846, 2147483648
      %v860 = vsel %vm858, %v859, %v857
      %v861 = vadd.f32 %v853, 1e-05
      %v862 = vadd.f32 %v860, 1e-05
      %v863 = vrcp.pop %v861
      %v864 = vrcp.pop %v862
      %v865 = vmul.f32 %v344, %v789
      %v866 = vmul.f32 %v345, %v790
      %v867 = vmul.f32 %v346, %v791
      %v868 = vmul.f32 %v347, %v792
      %v869 = vmul.f32 %v348, %v793
      %v870 = vmul.f32 %v349, %v794
      %v871 = vmul.f32 %v350, %v795
      %v872 = vmul.f32 %v351, %v796
      %v873 = vmul.f32 %v352, %v797
      %v874 = vmul.f32 %v353, %v798
      %v875 = vmul.f32 %v354, %v799
      %v876 = vmul.f32 %v355, %v800
      %v877 = vmul.f32 %v356, %v801
      %v878 = vmul.f32 %v357, %v802
      %v879 = vmul.f32 %v358, %v803
      %v880 = vmul.f32 %v359, %v804
      %v881 = vmul.f32 %v360, %v805
      %v882 = vmul.f32 %v361, %v806
      %v883 = vmul.f32 %v362, %v807
      %v884 = vmul.f32 %v363, %v808
      %v885 = vmul.f32 %v364, %v809
      %v886 = vmul.f32 %v365, %v810
      %v887 = vmul.f32 %v366, %v811
      %v888 = vmul.f32 %v367, %v812
      %v889 = vmul.f32 %v368, %v813
      %v890 = vmul.f32 %v369, %v814
      %v891 = vmul.f32 %v370, %v815
      %v892 = vmul.f32 %v371, %v816
      %v893 = vmul.f32 %v372, %v817
      %v894 = vmul.f32 %v373, %v818
      %v895 = vmul.f32 %v374, %v819
      %v896 = vmul.f32 %v375, %v820
      %v897 = vpack.c.bf16 %v866, %v865
      %v898 = vpack.c.bf16 %v868, %v867
      %v899 = vpack.c.bf16 %v870, %v869
      %v900 = vpack.c.bf16 %v872, %v871
      %v901 = vpack.c.bf16 %v874, %v873
      %v902 = vpack.c.bf16 %v876, %v875
      %v903 = vpack.c.bf16 %v878, %v877
      %v904 = vpack.c.bf16 %v880, %v879
      %v905 = vpack.c.bf16 %v882, %v881
      %v906 = vpack.c.bf16 %v884, %v883
      %v907 = vpack.c.bf16 %v886, %v885
      %v908 = vpack.c.bf16 %v888, %v887
      %v909 = vpack.c.bf16 %v890, %v889
      %v910 = vpack.c.bf16 %v892, %v891
      %v911 = vpack.c.bf16 %v894, %v893
      %v912 = vpack.c.bf16 %v896, %v895
      %v913 = vmul.f32 %v396, %v863
      %v914 = vmul.f32 %v397, %v864
      %v915 = vmul.f32 %v398, %v863
      %v916 = vmul.f32 %v399, %v864
      %v917 = vmul.f32 %v400, %v863
      %v918 = vmul.f32 %v401, %v864
      %v919 = vmul.f32 %v402, %v863
      %v920 = vmul.f32 %v403, %v864
      %v921 = vpack.c.bf16 %v915, %v913
      %v922 = vpack.c.bf16 %v916, %v914
      %v923 = vpack.c.bf16 %v919, %v917
      %v924 = vpack.c.bf16 %v920, %v918
      %v926 = vsel %vm436, %v897, 0
      %v929 = vsel %vm436, %v898, 0
      %v932 = vsel %vm436, %v899, 0
      %v935 = vsel %vm436, %v900, 0
      %v938 = vsel %vm436, %v901, 0
      %v941 = vsel %vm436, %v902, 0
      %v944 = vsel %vm436, %v903, 0
      %v947 = vsel %vm436, %v904, 0
      %v950 = vsel %vm436, %v905, 0
      %v953 = vsel %vm436, %v906, 0
      %v956 = vsel %vm436, %v907, 0
      %v959 = vsel %vm436, %v908, 0
      %v962 = vsel %vm436, %v909, 0
      %v965 = vsel %vm436, %v910, 0
      %v968 = vsel %vm436, %v911, 0
      %v971 = vsel %vm436, %v912, 0
      %973 = vmatprep.subr.bf16.mxu0 %v922
      %974 = vmatpush1.bf16.msra.mxu0 %v921
      %975 = vmatprep.subr.bf16.mxu0 %v924
      %976 = vmatpush1.bf16.msra.mxu0 %v923
      %977 = vmatprep.subr.bf16.mxu0 0
      %978 = vmatpush1.bf16.msra.mxu0 0
      %979 = vmatprep.subr.bf16.mxu0 0
      %980 = vmatpush1.bf16.msra.mxu0 0
      %981 = vmatprep.subr.bf16.mxu0 0
      %982 = vmatpush1.bf16.msra.mxu0 0
      %983 = vmatprep.subr.bf16.mxu0 0
      %984 = vmatpush1.bf16.msra.mxu0 0
      %985 = vmatprep.subr.bf16.mxu0 0
      %986 = vmatpush1.bf16.msra.mxu0 0
      %987 = vmatprep.subr.bf16.mxu0 0
      %988 = vmatpush1.bf16.msra.mxu0 0
      %989 = vmatprep.subr.bf16.mxu0 0
      %990 = vmatpush1.bf16.msra.mxu0 0
      %991 = vmatprep.subr.bf16.mxu0 0
      %992 = vmatpush1.bf16.msra.mxu0 0
      %993 = vmatprep.subr.bf16.mxu0 0
      %994 = vmatpush1.bf16.msra.mxu0 0
      %995 = vmatprep.subr.bf16.mxu0 0
      %996 = vmatpush1.bf16.msra.mxu0 0
      %997 = vmatprep.subr.bf16.mxu0 0
      %998 = vmatpush1.bf16.msra.mxu0 0
      %999 = vmatprep.subr.bf16.mxu0 0
      %1000 = vmatpush1.bf16.msra.mxu0 0
      %1001 = vmatprep.subr.bf16.mxu0 0
      %1002 = vmatpush1.bf16.msra.mxu0 0
      %1003 = vmatprep.subr.bf16.mxu0 0
      %1004 = vmatpush1.bf16.msra.mxu0 0
      %1005 = vmatprep.mubr.bf16.mxu0 0
      %1006 = vmatmul.mubr.bf16.gmra.mrb[0].mxu0 %v926
      %v1007 = vpop.f32.mrb[0].mxu0
      %v1008 = vadd.f32 0.0, %v1007
      %v1009 = vpop.f32.mrb[0].mxu0
      %v1010 = vadd.f32 0.0, %v1009
      %v1011 = vpop.f32.mrb[0].mxu0
      %v1012 = vadd.f32 0.0, %v1011
      %v1013 = vpop.f32.mrb[0].mxu0
      %v1014 = vadd.f32 0.0, %v1013
      %1015 = vmatprep.mubr.bf16.mxu0 0
      %1016 = vmatmul.mubr.bf16.gmra.mrb[0].mxu0 %v929
      %v1017 = vpop.f32.mrb[0].mxu0
      %v1018 = vadd.f32 0.0, %v1017
      %v1019 = vpop.f32.mrb[0].mxu0
      %v1020 = vadd.f32 0.0, %v1019
      %v1021 = vpop.f32.mrb[0].mxu0
      %v1022 = vadd.f32 0.0, %v1021
      %v1023 = vpop.f32.mrb[0].mxu0
      %v1024 = vadd.f32 0.0, %v1023
      %1025 = vmatprep.mubr.bf16.mxu0 0
      %1026 = vmatmul.mubr.bf16.gmra.mrb[0].mxu0 %v932
      %v1027 = vpop.f32.mrb[0].mxu0
      %v1028 = vadd.f32 0.0, %v1027
      %v1029 = vpop.f32.mrb[0].mxu0
      %v1030 = vadd.f32 0.0, %v1029
      %v1031 = vpop.f32.mrb[0].mxu0
      %v1032 = vadd.f32 0.0, %v1031
      %v1033 = vpop.f32.mrb[0].mxu0
      %v1034 = vadd.f32 0.0, %v1033
      %1035 = vmatprep.mubr.bf16.mxu0 0
      %1036 = vmatmul.mubr.bf16.gmra.mrb[0].mxu0 %v935
      %v1037 = vpop.f32.mrb[0].mxu0
      %v1038 = vadd.f32 0.0, %v1037
      %v1039 = vpop.f32.mrb[0].mxu0
      %v1040 = vadd.f32 0.0, %v1039
      %v1041 = vpop.f32.mrb[0].mxu0
      %v1042 = vadd.f32 0.0, %v1041
      %v1043 = vpop.f32.mrb[0].mxu0
      %v1044 = vadd.f32 0.0, %v1043
      %1045 = vmatprep.mubr.bf16.mxu0 0
      %1046 = vmatmul.mubr.bf16.gmra.mrb[0].mxu0 %v938
      %v1047 = vpop.f32.mrb[0].mxu0
      %v1048 = vadd.f32 0.0, %v1047
      %v1049 = vpop.f32.mrb[0].mxu0
      %v1050 = vadd.f32 0.0, %v1049
      %v1051 = vpop.f32.mrb[0].mxu0
      %v1052 = vadd.f32 0.0, %v1051
      %v1053 = vpop.f32.mrb[0].mxu0
      %v1054 = vadd.f32 0.0, %v1053
      %1055 = vmatprep.mubr.bf16.mxu0 0
      %1056 = vmatmul.mubr.bf16.gmra.mrb[0].mxu0 %v941
      %v1057 = vpop.f32.mrb[0].mxu0
      %v1058 = vadd.f32 0.0, %v1057
      %v1059 = vpop.f32.mrb[0].mxu0
      %v1060 = vadd.f32 0.0, %v1059
      %v1061 = vpop.f32.mrb[0].mxu0
      %v1062 = vadd.f32 0.0, %v1061
      %v1063 = vpop.f32.mrb[0].mxu0
      %v1064 = vadd.f32 0.0, %v1063
      %1065 = vmatprep.mubr.bf16.mxu0 0
      %1066 = vmatmul.mubr.bf16.gmra.mrb[0].mxu0 %v944
      %v1067 = vpop.f32.mrb[0].mxu0
      %v1068 = vadd.f32 0.0, %v1067
      %v1069 = vpop.f32.mrb[0].mxu0
      %v1070 = vadd.f32 0.0, %v1069
      %v1071 = vpop.f32.mrb[0].mxu0
      %v1072 = vadd.f32 0.0, %v1071
      %v1073 = vpop.f32.mrb[0].mxu0
      %v1074 = vadd.f32 0.0, %v1073
      %1075 = vmatprep.mubr.bf16.mxu0 0
      %1076 = vmatmul.mubr.bf16.gmra.mrb[0].mxu0 %v947
      %v1077 = vpop.f32.mrb[0].mxu0
      %v1078 = vadd.f32 0.0, %v1077
      %v1079 = vpop.f32.mrb[0].mxu0
      %v1080 = vadd.f32 0.0, %v1079
      %v1081 = vpop.f32.mrb[0].mxu0
      %v1082 = vadd.f32 0.0, %v1081
      %v1083 = vpop.f32.mrb[0].mxu0
      %v1084 = vadd.f32 0.0, %v1083
      %1085 = vmatprep.mubr.bf16.mxu0 0
      %1086 = vmatmul.mubr.bf16.gmra.mrb[0].mxu0 %v950
      %v1087 = vpop.f32.mrb[0].mxu0
      %v1088 = vadd.f32 0.0, %v1087
      %v1089 = vpop.f32.mrb[0].mxu0
      %v1090 = vadd.f32 0.0, %v1089
      %v1091 = vpop.f32.mrb[0].mxu0
      %v1092 = vadd.f32 0.0, %v1091
      %v1093 = vpop.f32.mrb[0].mxu0
      %v1094 = vadd.f32 0.0, %v1093
      %1095 = vmatprep.mubr.bf16.mxu0 0
      %1096 = vmatmul.mubr.bf16.gmra.mrb[0].mxu0 %v953
      %v1097 = vpop.f32.mrb[0].mxu0
      %v1098 = vadd.f32 0.0, %v1097
      %v1099 = vpop.f32.mrb[0].mxu0
      %v1100 = vadd.f32 0.0, %v1099
      %v1101 = vpop.f32.mrb[0].mxu0
      %v1102 = vadd.f32 0.0, %v1101
      %v1103 = vpop.f32.mrb[0].mxu0
      %v1104 = vadd.f32 0.0, %v1103
      %1105 = vmatprep.mubr.bf16.mxu0 0
      %1106 = vmatmul.mubr.bf16.gmra.mrb[0].mxu0 %v956
      %v1107 = vpop.f32.mrb[0].mxu0
      %v1108 = vadd.f32 0.0, %v1107
      %v1109 = vpop.f32.mrb[0].mxu0
      %v1110 = vadd.f32 0.0, %v1109
      %v1111 = vpop.f32.mrb[0].mxu0
      %v1112 = vadd.f32 0.0, %v1111
      %v1113 = vpop.f32.mrb[0].mxu0
      %v1114 = vadd.f32 0.0, %v1113
      %1115 = vmatprep.mubr.bf16.mxu0 0
      %1116 = vmatmul.mubr.bf16.gmra.mrb[0].mxu0 %v959
      %v1117 = vpop.f32.mrb[0].mxu0
      %v1118 = vadd.f32 0.0, %v1117
      %v1119 = vpop.f32.mrb[0].mxu0
      %v1120 = vadd.f32 0.0, %v1119
      %v1121 = vpop.f32.mrb[0].mxu0
      %v1122 = vadd.f32 0.0, %v1121
      %v1123 = vpop.f32.mrb[0].mxu0
      %v1124 = vadd.f32 0.0, %v1123
      %1125 = vmatprep.mubr.bf16.mxu0 0
      %1126 = vmatmul.mubr.bf16.gmra.mrb[0].mxu0 %v962
      %v1127 = vpop.f32.mrb[0].mxu0
      %v1128 = vadd.f32 0.0, %v1127
      %v1129 = vpop.f32.mrb[0].mxu0
      %v1130 = vadd.f32 0.0, %v1129
      %v1131 = vpop.f32.mrb[0].mxu0
      %v1132 = vadd.f32 0.0, %v1131
      %v1133 = vpop.f32.mrb[0].mxu0
      %v1134 = vadd.f32 0.0, %v1133
      %1135 = vmatprep.mubr.bf16.mxu0 0
      %1136 = vmatmul.mubr.bf16.gmra.mrb[0].mxu0 %v965
      %v1137 = vpop.f32.mrb[0].mxu0
      %v1138 = vadd.f32 0.0, %v1137
      %v1139 = vpop.f32.mrb[0].mxu0
      %v1140 = vadd.f32 0.0, %v1139
      %v1141 = vpop.f32.mrb[0].mxu0
      %v1142 = vadd.f32 0.0, %v1141
      %v1143 = vpop.f32.mrb[0].mxu0
      %v1144 = vadd.f32 0.0, %v1143
      %1145 = vmatprep.mubr.bf16.mxu0 0
      %1146 = vmatmul.mubr.bf16.gmra.mrb[0].mxu0 %v968
      %v1147 = vpop.f32.mrb[0].mxu0
      %v1148 = vadd.f32 0.0, %v1147
      %v1149 = vpop.f32.mrb[0].mxu0
      %v1150 = vadd.f32 0.0, %v1149
      %v1151 = vpop.f32.mrb[0].mxu0
      %v1152 = vadd.f32 0.0, %v1151
      %v1153 = vpop.f32.mrb[0].mxu0
      %v1154 = vadd.f32 0.0, %v1153
      %1155 = vmatprep.mubr.bf16.mxu0 0
      %1156 = vmatmul.mubr.bf16.gmra.mrb[0].mxu0 %v971
      %v1157 = vpop.f32.mrb[0].mxu0
      %v1158 = vadd.f32 0.0, %v1157
      %v1159 = vpop.f32.mrb[0].mxu0
      %v1160 = vadd.f32 0.0, %v1159
      %v1161 = vpop.f32.mrb[0].mxu0
      %v1162 = vadd.f32 0.0, %v1161
      %v1163 = vpop.f32.mrb[0].mxu0
      %v1164 = vadd.f32 0.0, %v1163
      %1165 = vdwg.mxu0
      %v1166 = vmax.f32 %v1008, 0.0
      %v1167 = vmax.f32 %v1010, 0.0
      %v1168 = vmax.f32 %v1012, 0.0
      %v1169 = vmax.f32 %v1014, 0.0
      %v1170 = vmax.f32 %v1018, 0.0
      %v1171 = vmax.f32 %v1020, 0.0
      %v1172 = vmax.f32 %v1022, 0.0
      %v1173 = vmax.f32 %v1024, 0.0
      %v1174 = vmax.f32 %v1028, 0.0
      %v1175 = vmax.f32 %v1030, 0.0
      %v1176 = vmax.f32 %v1032, 0.0
      %v1177 = vmax.f32 %v1034, 0.0
      %v1178 = vmax.f32 %v1038, 0.0
      %v1179 = vmax.f32 %v1040, 0.0
      %v1180 = vmax.f32 %v1042, 0.0
      %v1181 = vmax.f32 %v1044, 0.0
      %v1182 = vmax.f32 %v1048, 0.0
      %v1183 = vmax.f32 %v1050, 0.0
      %v1184 = vmax.f32 %v1052, 0.0
      %v1185 = vmax.f32 %v1054, 0.0
      %v1186 = vmax.f32 %v1058, 0.0
      %v1187 = vmax.f32 %v1060, 0.0
      %v1188 = vmax.f32 %v1062, 0.0
      %v1189 = vmax.f32 %v1064, 0.0
      %v1190 = vmax.f32 %v1068, 0.0
      %v1191 = vmax.f32 %v1070, 0.0
      %v1192 = vmax.f32 %v1072, 0.0
      %v1193 = vmax.f32 %v1074, 0.0
      %v1194 = vmax.f32 %v1078, 0.0
      %v1195 = vmax.f32 %v1080, 0.0
      %v1196 = vmax.f32 %v1082, 0.0
      %v1197 = vmax.f32 %v1084, 0.0
      %v1198 = vmax.f32 %v1088, 0.0
      %v1199 = vmax.f32 %v1090, 0.0
      %v1200 = vmax.f32 %v1092, 0.0
      %v1201 = vmax.f32 %v1094, 0.0
      %v1202 = vmax.f32 %v1098, 0.0
      %v1203 = vmax.f32 %v1100, 0.0
      %v1204 = vmax.f32 %v1102, 0.0
      %v1205 = vmax.f32 %v1104, 0.0
      %v1206 = vmax.f32 %v1108, 0.0
      %v1207 = vmax.f32 %v1110, 0.0
      %v1208 = vmax.f32 %v1112, 0.0
      %v1209 = vmax.f32 %v1114, 0.0
      %v1210 = vmax.f32 %v1118, 0.0
      %v1211 = vmax.f32 %v1120, 0.0
      %v1212 = vmax.f32 %v1122, 0.0
      %v1213 = vmax.f32 %v1124, 0.0
      %v1214 = vmax.f32 %v1128, 0.0
      %v1215 = vmax.f32 %v1130, 0.0
      %v1216 = vmax.f32 %v1132, 0.0
      %v1217 = vmax.f32 %v1134, 0.0
      %v1218 = vmax.f32 %v1138, 0.0
      %v1219 = vmax.f32 %v1140, 0.0
      %v1220 = vmax.f32 %v1142, 0.0
      %v1221 = vmax.f32 %v1144, 0.0
      %v1222 = vmax.f32 %v1148, 0.0
      %v1223 = vmax.f32 %v1150, 0.0
      %v1224 = vmax.f32 %v1152, 0.0
      %v1225 = vmax.f32 %v1154, 0.0
      %v1226 = vmax.f32 %v1158, 0.0
      %v1227 = vmax.f32 %v1160, 0.0
      %v1228 = vmax.f32 %v1162, 0.0
      %v1229 = vmax.f32 %v1164, 0.0
      %v1230 = vadd.f32 %v1166, %v1167
      %1231 = vadd.xlane.f32.xlu0 %v1230
      %v1232 = vpop.xlane.xlu0 %1231
      %v1233 = vadd.f32 %v1168, %v1169
      %1234 = vadd.xlane.f32.xlu0 %v1233
      %v1235 = vpop.xlane.xlu0 %1234
      %v1236 = vadd.f32 %v1170, %v1171
      %1237 = vadd.xlane.f32.xlu0 %v1236
      %v1238 = vpop.xlane.xlu0 %1237
      %v1239 = vadd.f32 %v1172, %v1173
      %1240 = vadd.xlane.f32.xlu0 %v1239
      %v1241 = vpop.xlane.xlu0 %1240
      %v1242 = vadd.f32 %v1174, %v1175
      %1243 = vadd.xlane.f32.xlu0 %v1242
      %v1244 = vpop.xlane.xlu0 %1243
      %v1245 = vadd.f32 %v1176, %v1177
      %1246 = vadd.xlane.f32.xlu0 %v1245
      %v1247 = vpop.xlane.xlu0 %1246
      %v1248 = vadd.f32 %v1178, %v1179
      %1249 = vadd.xlane.f32.xlu0 %v1248
      %v1250 = vpop.xlane.xlu0 %1249
      %v1251 = vadd.f32 %v1180, %v1181
      %1252 = vadd.xlane.f32.xlu0 %v1251
      %v1253 = vpop.xlane.xlu0 %1252
      %v1254 = vadd.f32 %v1182, %v1183
      %1255 = vadd.xlane.f32.xlu0 %v1254
      %v1256 = vpop.xlane.xlu0 %1255
      %v1257 = vadd.f32 %v1184, %v1185
      %1258 = vadd.xlane.f32.xlu0 %v1257
      %v1259 = vpop.xlane.xlu0 %1258
      %v1260 = vadd.f32 %v1186, %v1187
      %1261 = vadd.xlane.f32.xlu0 %v1260
      %v1262 = vpop.xlane.xlu0 %1261
      %v1263 = vadd.f32 %v1188, %v1189
      %1264 = vadd.xlane.f32.xlu0 %v1263
      %v1265 = vpop.xlane.xlu0 %1264
      %v1266 = vadd.f32 %v1190, %v1191
      %1267 = vadd.xlane.f32.xlu0 %v1266
      %v1268 = vpop.xlane.xlu0 %1267
      %v1269 = vadd.f32 %v1192, %v1193
      %1270 = vadd.xlane.f32.xlu0 %v1269
      %v1271 = vpop.xlane.xlu0 %1270
      %v1272 = vadd.f32 %v1194, %v1195
      %1273 = vadd.xlane.f32.xlu0 %v1272
      %v1274 = vpop.xlane.xlu0 %1273
      %v1275 = vadd.f32 %v1196, %v1197
      %1276 = vadd.xlane.f32.xlu0 %v1275
      %v1277 = vpop.xlane.xlu0 %1276
      %v1278 = vadd.f32 %v1198, %v1199
      %1279 = vadd.xlane.f32.xlu0 %v1278
      %v1280 = vpop.xlane.xlu0 %1279
      %v1281 = vadd.f32 %v1200, %v1201
      %1282 = vadd.xlane.f32.xlu0 %v1281
      %v1283 = vpop.xlane.xlu0 %1282
      %v1284 = vadd.f32 %v1202, %v1203
      %1285 = vadd.xlane.f32.xlu0 %v1284
      %v1286 = vpop.xlane.xlu0 %1285
      %v1287 = vadd.f32 %v1204, %v1205
      %1288 = vadd.xlane.f32.xlu0 %v1287
      %v1289 = vpop.xlane.xlu0 %1288
      %v1290 = vadd.f32 %v1206, %v1207
      %1291 = vadd.xlane.f32.xlu0 %v1290
      %v1292 = vpop.xlane.xlu0 %1291
      %v1293 = vadd.f32 %v1208, %v1209
      %1294 = vadd.xlane.f32.xlu0 %v1293
      %v1295 = vpop.xlane.xlu0 %1294
      %v1296 = vadd.f32 %v1210, %v1211
      %1297 = vadd.xlane.f32.xlu0 %v1296
      %v1298 = vpop.xlane.xlu0 %1297
      %v1299 = vadd.f32 %v1212, %v1213
      %1300 = vadd.xlane.f32.xlu0 %v1299
      %v1301 = vpop.xlane.xlu0 %1300
      %v1302 = vadd.f32 %v1214, %v1215
      %1303 = vadd.xlane.f32.xlu0 %v1302
      %v1304 = vpop.xlane.xlu0 %1303
      %v1305 = vadd.f32 %v1216, %v1217
      %1306 = vadd.xlane.f32.xlu0 %v1305
      %v1307 = vpop.xlane.xlu0 %1306
      %v1308 = vadd.f32 %v1218, %v1219
      %1309 = vadd.xlane.f32.xlu0 %v1308
      %v1310 = vpop.xlane.xlu0 %1309
      %v1311 = vadd.f32 %v1220, %v1221
      %1312 = vadd.xlane.f32.xlu0 %v1311
      %v1313 = vpop.xlane.xlu0 %1312
      %v1314 = vadd.f32 %v1222, %v1223
      %1315 = vadd.xlane.f32.xlu0 %v1314
      %v1316 = vpop.xlane.xlu0 %1315
      %v1317 = vadd.f32 %v1224, %v1225
      %1318 = vadd.xlane.f32.xlu0 %v1317
      %v1319 = vpop.xlane.xlu0 %1318
      %v1320 = vadd.f32 %v1226, %v1227
      %1321 = vadd.xlane.f32.xlu0 %v1320
      %v1322 = vpop.xlane.xlu0 %1321
      %v1323 = vadd.f32 %v1228, %v1229
      %1324 = vadd.xlane.f32.xlu0 %v1323
      %v1325 = vpop.xlane.xlu0 %1324
      %v1326 = vmul.f32 %v1232, 0.00390625
      %v1327 = vmul.f32 %v1235, 0.00390625
      %v1328 = vmul.f32 %v1238, 0.00390625
      %v1329 = vmul.f32 %v1241, 0.00390625
      %v1330 = vmul.f32 %v1244, 0.00390625
      %v1331 = vmul.f32 %v1247, 0.00390625
      %v1332 = vmul.f32 %v1250, 0.00390625
      %v1333 = vmul.f32 %v1253, 0.00390625
      %v1334 = vmul.f32 %v1256, 0.00390625
      %v1335 = vmul.f32 %v1259, 0.00390625
      %v1336 = vmul.f32 %v1262, 0.00390625
      %v1337 = vmul.f32 %v1265, 0.00390625
      %v1338 = vmul.f32 %v1268, 0.00390625
      %v1339 = vmul.f32 %v1271, 0.00390625
      %v1340 = vmul.f32 %v1274, 0.00390625
      %v1341 = vmul.f32 %v1277, 0.00390625
      %v1342 = vmul.f32 %v1280, 0.00390625
      %v1343 = vmul.f32 %v1283, 0.00390625
      %v1344 = vmul.f32 %v1286, 0.00390625
      %v1345 = vmul.f32 %v1289, 0.00390625
      %v1346 = vmul.f32 %v1292, 0.00390625
      %v1347 = vmul.f32 %v1295, 0.00390625
      %v1348 = vmul.f32 %v1298, 0.00390625
      %v1349 = vmul.f32 %v1301, 0.00390625
      %v1350 = vmul.f32 %v1304, 0.00390625
      %v1351 = vmul.f32 %v1307, 0.00390625
      %v1352 = vmul.f32 %v1310, 0.00390625
      %v1353 = vmul.f32 %v1313, 0.00390625
      %v1354 = vmul.f32 %v1316, 0.00390625
      %v1355 = vmul.f32 %v1319, 0.00390625
      %v1356 = vmul.f32 %v1322, 0.00390625
      %v1357 = vmul.f32 %v1325, 0.00390625
      %p1358 = scmp.eq.s32.totalorder %s23, 0
      // Predicated region
      $region33: #{fecanet_forward.3} parent=31 // pred_check
        %p1359 = pneg %p1358
      $region34: #{fecanet_forward.3} parent=31 // pred_check_branch
        %1361 = sbr.rel (%p1359) target = $region36
      $region35: #{fecanet_forward.3} parent=31 // pred_region
        %v1362 = vlaneseq
        %vm1363 = vcmp.ge.s32.totalorder %v1362, 0
        %vm1364 = vcmp.lt.s32.totalorder %v1362, 256
        %vm1365 = vmand %vm1363, %vm1364
        %1366 = vst.msk [vmem:[%s341] sm:$0x3] %vm1365, 0.0
      $region36: #{fecanet_forward.3} parent=31 // pred_fallthru
        _
      %v1367 = vld [vmem:[%s341] sm:$0x3]
      %v1400 = vlaneseq
      %v1401 = vshrl.u32 %v1400, 7
      %v1402 = vsub.s32 0, %v1401
      %v1403 = vrot.slane %v1326, %v1402
      %v1404 = vlaneseq
      %v1405 = vshrl.u32 %v1404, 7
      %v1406 = vsub.s32 1, %v1405
      %v1407 = vrot.slane %v1326, %v1406
      %v1408 = vlaneseq
      %v1409 = vshrl.u32 %v1408, 7
      %v1410 = vsub.s32 2, %v1409
      %v1411 = vrot.slane %v1326, %v1410
      %v1412 = vlaneseq
      %v1413 = vshrl.u32 %v1412, 7
      %v1414 = vsub.s32 3, %v1413
      %v1415 = vrot.slane %v1326, %v1414
      %v1416 = vlaneseq
      %v1417 = vshrl.u32 %v1416, 7
      %v1418 = vsub.s32 4, %v1417
      %v1419 = vrot.slane %v1326, %v1418
      %v1420 = vlaneseq
      %v1421 = vshrl.u32 %v1420, 7
      %v1422 = vsub.s32 5, %v1421
      %v1423 = vrot.slane %v1326, %v1422
      %v1424 = vlaneseq
      %v1425 = vshrl.u32 %v1424, 7
      %v1426 = vsub.s32 6, %v1425
      %v1427 = vrot.slane %v1326, %v1426
      %v1428 = vlaneseq
      %v1429 = vshrl.u32 %v1428, 7
      %v1430 = vsub.s32 7, %v1429
      %v1431 = vrot.slane %v1326, %v1430
      %v1432 = vlaneseq
      %v1433 = vshrl.u32 %v1432, 7
      %v1434 = vsub.s32 0, %v1433
      %v1435 = vrot.slane %v1327, %v1434
      %v1436 = vlaneseq
      %v1437 = vshrl.u32 %v1436, 7
      %v1438 = vsub.s32 1, %v1437
      %v1439 = vrot.slane %v1327, %v1438
      %v1440 = vlaneseq
      %v1441 = vshrl.u32 %v1440, 7
      %v1442 = vsub.s32 2, %v1441
      %v1443 = vrot.slane %v1327, %v1442
      %v1444 = vlaneseq
      %v1445 = vshrl.u32 %v1444, 7
      %v1446 = vsub.s32 3, %v1445
      %v1447 = vrot.slane %v1327, %v1446
      %v1448 = vlaneseq
      %v1449 = vshrl.u32 %v1448, 7
      %v1450 = vsub.s32 4, %v1449
      %v1451 = vrot.slane %v1327, %v1450
      %v1452 = vlaneseq
      %v1453 = vshrl.u32 %v1452, 7
      %v1454 = vsub.s32 5, %v1453
      %v1455 = vrot.slane %v1327, %v1454
      %v1456 = vlaneseq
      %v1457 = vshrl.u32 %v1456, 7
      %v1458 = vsub.s32 6, %v1457
      %v1459 = vrot.slane %v1327, %v1458
      %v1460 = vlaneseq
      %v1461 = vshrl.u32 %v1460, 7
      %v1462 = vsub.s32 7, %v1461
      %v1463 = vrot.slane %v1327, %v1462
      %v1464 = vlaneseq
      %v1465 = vshrl.u32 %v1464, 7
      %v1466 = vsub.s32 0, %v1465
      %v1467 = vrot.slane %v1328, %v1466
      %v1468 = vlaneseq
      %v1469 = vshrl.u32 %v1468, 7
      %v1470 = vsub.s32 1, %v1469
      %v1471 = vrot.slane %v1328, %v1470
      %v1472 = vlaneseq
      %v1473 = vshrl.u32 %v1472, 7
      %v1474 = vsub.s32 2, %v1473
      %v1475 = vrot.slane %v1328, %v1474
      %v1476 = vlaneseq
      %v1477 = vshrl.u32 %v1476, 7
      %v1478 = vsub.s32 3, %v1477
      %v1479 = vrot.slane %v1328, %v1478
      %v1480 = vlaneseq
      %v1481 = vshrl.u32 %v1480, 7
      %v1482 = vsub.s32 4, %v1481
      %v1483 = vrot.slane %v1328, %v1482
      %v1484 = vlaneseq
      %v1485 = vshrl.u32 %v1484, 7
      %v1486 = vsub.s32 5, %v1485
      %v1487 = vrot.slane %v1328, %v1486
      %v1488 = vlaneseq
      %v1489 = vshrl.u32 %v1488, 7
      %v1490 = vsub.s32 6, %v1489
      %v1491 = vrot.slane %v1328, %v1490
      %v1492 = vlaneseq
      %v1493 = vshrl.u32 %v1492, 7
      %v1494 = vsub.s32 7, %v1493
      %v1495 = vrot.slane %v1328, %v1494
      %v1496 = vlaneseq
      %v1497 = vshrl.u32 %v1496, 7
      %v1498 = vsub.s32 0, %v1497
      %v1499 = vrot.slane %v1329, %v1498
      %v1500 = vlaneseq
      %v1501 = vshrl.u32 %v1500, 7
      %v1502 = vsub.s32 1, %v1501
      %v1503 = vrot.slane %v1329, %v1502
      %v1504 = vlaneseq
      %v1505 = vshrl.u32 %v1504, 7
      %v1506 = vsub.s32 2, %v1505
      %v1507 = vrot.slane %v1329, %v1506
      %v1508 = vlaneseq
      %v1509 = vshrl.u32 %v1508, 7
      %v1510 = vsub.s32 3, %v1509
      %v1511 = vrot.slane %v1329, %v1510
      %v1512 = vlaneseq
      %v1513 = vshrl.u32 %v1512, 7
      %v1514 = vsub.s32 4, %v1513
      %v1515 = vrot.slane %v1329, %v1514
      %v1516 = vlaneseq
      %v1517 = vshrl.u32 %v1516, 7
      %v1518 = vsub.s32 5, %v1517
      %v1519 = vrot.slane %v1329, %v1518
      %v1520 = vlaneseq
      %v1521 = vshrl.u32 %v1520, 7
      %v1522 = vsub.s32 6, %v1521
      %v1523 = vrot.slane %v1329, %v1522
      %v1524 = vlaneseq
      %v1525 = vshrl.u32 %v1524, 7
      %v1526 = vsub.s32 7, %v1525
      %v1527 = vrot.slane %v1329, %v1526
      %v1528 = vlaneseq
      %v1529 = vshrl.u32 %v1528, 7
      %v1530 = vsub.s32 0, %v1529
      %v1531 = vrot.slane %v1330, %v1530
      %v1532 = vlaneseq
      %v1533 = vshrl.u32 %v1532, 7
      %v1534 = vsub.s32 1, %v1533
      %v1535 = vrot.slane %v1330, %v1534
      %v1536 = vlaneseq
      %v1537 = vshrl.u32 %v1536, 7
      %v1538 = vsub.s32 2, %v1537
      %v1539 = vrot.slane %v1330, %v1538
      %v1540 = vlaneseq
      %v1541 = vshrl.u32 %v1540, 7
      %v1542 = vsub.s32 3, %v1541
      %v1543 = vrot.slane %v1330, %v1542
      %v1544 = vlaneseq
      %v1545 = vshrl.u32 %v1544, 7
      %v1546 = vsub.s32 4, %v1545
      %v1547 = vrot.slane %v1330, %v1546
      %v1548 = vlaneseq
      %v1549 = vshrl.u32 %v1548, 7
      %v1550 = vsub.s32 5, %v1549
      %v1551 = vrot.slane %v1330, %v1550
      %v1552 = vlaneseq
      %v1553 = vshrl.u32 %v1552, 7
      %v1554 = vsub.s32 6, %v1553
      %v1555 = vrot.slane %v1330, %v1554
      %v1556 = vlaneseq
      %v1557 = vshrl.u32 %v1556, 7
      %v1558 = vsub.s32 7, %v1557
      %v1559 = vrot.slane %v1330, %v1558
      %v1560 = vlaneseq
      %v1561 = vshrl.u32 %v1560, 7
      %v1562 = vsub.s32 0, %v1561
      %v1563 = vrot.slane %v1331, %v1562
      %v1564 = vlaneseq
      %v1565 = vshrl.u32 %v1564, 7
      %v1566 = vsub.s32 1, %v1565
      %v1567 = vrot.slane %v1331, %v1566
      %v1568 = vlaneseq
      %v1569 = vshrl.u32 %v1568, 7
      %v1570 = vsub.s32 2, %v1569
      %v1571 = vrot.slane %v1331, %v1570
      %v1572 = vlaneseq
      %v1573 = vshrl.u32 %v1572, 7
      %v1574 = vsub.s32 3, %v1573
      %v1575 = vrot.slane %v1331, %v1574
      %v1576 = vlaneseq
      %v1577 = vshrl.u32 %v1576, 7
      %v1578 = vsub.s32 4, %v1577
      %v1579 = vrot.slane %v1331, %v1578
      %v1580 = vlaneseq
      %v1581 = vshrl.u32 %v1580, 7
      %v1582 = vsub.s32 5, %v1581
      %v1583 = vrot.slane %v1331, %v1582
      %v1584 = vlaneseq
      %v1585 = vshrl.u32 %v1584, 7
      %v1586 = vsub.s32 6, %v1585
      %v1587 = vrot.slane %v1331, %v1586
      %v1588 = vlaneseq
      %v1589 = vshrl.u32 %v1588, 7
      %v1590 = vsub.s32 7, %v1589
      %v1591 = vrot.slane %v1331, %v1590
      %v1592 = vlaneseq
      %v1593 = vshrl.u32 %v1592, 7
      %v1594 = vsub.s32 0, %v1593
      %v1595 = vrot.slane %v1332, %v1594
      %v1596 = vlaneseq
      %v1597 = vshrl.u32 %v1596, 7
      %v1598 = vsub.s32 1, %v1597
      %v1599 = vrot.slane %v1332, %v1598
      %v1600 = vlaneseq
      %v1601 = vshrl.u32 %v1600, 7
      %v1602 = vsub.s32 2, %v1601
      %v1603 = vrot.slane %v1332, %v1602
      %v1604 = vlaneseq
      %v1605 = vshrl.u32 %v1604, 7
      %v1606 = vsub.s32 3, %v1605
      %v1607 = vrot.slane %v1332, %v1606
      %v1608 = vlaneseq
      %v1609 = vshrl.u32 %v1608, 7
      %v1610 = vsub.s32 4, %v1609
      %v1611 = vrot.slane %v1332, %v1610
      %v1612 = vlaneseq
      %v1613 = vshrl.u32 %v1612, 7
      %v1614 = vsub.s32 5, %v1613
      %v1615 = vrot.slane %v1332, %v1614
      %v1616 = vlaneseq
      %v1617 = vshrl.u32 %v1616, 7
      %v1618 = vsub.s32 6, %v1617
      %v1619 = vrot.slane %v1332, %v1618
      %v1620 = vlaneseq
      %v1621 = vshrl.u32 %v1620, 7
      %v1622 = vsub.s32 7, %v1621
      %v1623 = vrot.slane %v1332, %v1622
      %v1624 = vlaneseq
      %v1625 = vshrl.u32 %v1624, 7
      %v1626 = vsub.s32 0, %v1625
      %v1627 = vrot.slane %v1333, %v1626
      %v1628 = vlaneseq
      %v1629 = vshrl.u32 %v1628, 7
      %v1630 = vsub.s32 1, %v1629
      %v1631 = vrot.slane %v1333, %v1630
      %v1632 = vlaneseq
      %v1633 = vshrl.u32 %v1632, 7
      %v1634 = vsub.s32 2, %v1633
      %v1635 = vrot.slane %v1333, %v1634
      %v1636 = vlaneseq
      %v1637 = vshrl.u32 %v1636, 7
      %v1638 = vsub.s32 3, %v1637
      %v1639 = vrot.slane %v1333, %v1638
      %v1640 = vlaneseq
      %v1641 = vshrl.u32 %v1640, 7
      %v1642 = vsub.s32 4, %v1641
      %v1643 = vrot.slane %v1333, %v1642
      %v1644 = vlaneseq
      %v1645 = vshrl.u32 %v1644, 7
      %v1646 = vsub.s32 5, %v1645
      %v1647 = vrot.slane %v1333, %v1646
      %v1648 = vlaneseq
      %v1649 = vshrl.u32 %v1648, 7
      %v1650 = vsub.s32 6, %v1649
      %v1651 = vrot.slane %v1333, %v1650
      %v1652 = vlaneseq
      %v1653 = vshrl.u32 %v1652, 7
      %v1654 = vsub.s32 7, %v1653
      %v1655 = vrot.slane %v1333, %v1654
      %v1656 = vlaneseq
      %v1657 = vshrl.u32 %v1656, 7
      %v1658 = vsub.s32 0, %v1657
      %v1659 = vrot.slane %v1334, %v1658
      %v1660 = vlaneseq
      %v1661 = vshrl.u32 %v1660, 7
      %v1662 = vsub.s32 1, %v1661
      %v1663 = vrot.slane %v1334, %v1662
      %v1664 = vlaneseq
      %v1665 = vshrl.u32 %v1664, 7
      %v1666 = vsub.s32 2, %v1665
      %v1667 = vrot.slane %v1334, %v1666
      %v1668 = vlaneseq
      %v1669 = vshrl.u32 %v1668, 7
      %v1670 = vsub.s32 3, %v1669
      %v1671 = vrot.slane %v1334, %v1670
      %v1672 = vlaneseq
      %v1673 = vshrl.u32 %v1672, 7
      %v1674 = vsub.s32 4, %v1673
      %v1675 = vrot.slane %v1334, %v1674
      %v1676 = vlaneseq
      %v1677 = vshrl.u32 %v1676, 7
      %v1678 = vsub.s32 5, %v1677
      %v1679 = vrot.slane %v1334, %v1678
      %v1680 = vlaneseq
      %v1681 = vshrl.u32 %v1680, 7
      %v1682 = vsub.s32 6, %v1681
      %v1683 = vrot.slane %v1334, %v1682
      %v1684 = vlaneseq
      %v1685 = vshrl.u32 %v1684, 7
      %v1686 = vsub.s32 7, %v1685
      %v1687 = vrot.slane %v1334, %v1686
      %v1688 = vlaneseq
      %v1689 = vshrl.u32 %v1688, 7
      %v1690 = vsub.s32 0, %v1689
      %v1691 = vrot.slane %v1335, %v1690
      %v1692 = vlaneseq
      %v1693 = vshrl.u32 %v1692, 7
      %v1694 = vsub.s32 1, %v1693
      %v1695 = vrot.slane %v1335, %v1694
      %v1696 = vlaneseq
      %v1697 = vshrl.u32 %v1696, 7
      %v1698 = vsub.s32 2, %v1697
      %v1699 = vrot.slane %v1335, %v1698
      %v1700 = vlaneseq
      %v1701 = vshrl.u32 %v1700, 7
      %v1702 = vsub.s32 3, %v1701
      %v1703 = vrot.slane %v1335, %v1702
      %v1704 = vlaneseq
      %v1705 = vshrl.u32 %v1704, 7
      %v1706 = vsub.s32 4, %v1705
      %v1707 = vrot.slane %v1335, %v1706
      %v1708 = vlaneseq
      %v1709 = vshrl.u32 %v1708, 7
      %v1710 = vsub.s32 5, %v1709
      %v1711 = vrot.slane %v1335, %v1710
      %v1712 = vlaneseq
      %v1713 = vshrl.u32 %v1712, 7
      %v1714 = vsub.s32 6, %v1713
      %v1715 = vrot.slane %v1335, %v1714
      %v1716 = vlaneseq
      %v1717 = vshrl.u32 %v1716, 7
      %v1718 = vsub.s32 7, %v1717
      %v1719 = vrot.slane %v1335, %v1718
      %v1720 = vlaneseq
      %v1721 = vshrl.u32 %v1720, 7
      %v1722 = vsub.s32 0, %v1721
      %v1723 = vrot.slane %v1336, %v1722
      %v1724 = vlaneseq
      %v1725 = vshrl.u32 %v1724, 7
      %v1726 = vsub.s32 1, %v1725
      %v1727 = vrot.slane %v1336, %v1726
      %v1728 = vlaneseq
      %v1729 = vshrl.u32 %v1728, 7
      %v1730 = vsub.s32 2, %v1729
      %v1731 = vrot.slane %v1336, %v1730
      %v1732 = vlaneseq
      %v1733 = vshrl.u32 %v1732, 7
      %v1734 = vsub.s32 3, %v1733
      %v1735 = vrot.slane %v1336, %v1734
      %v1736 = vlaneseq
      %v1737 = vshrl.u32 %v1736, 7
      %v1738 = vsub.s32 4, %v1737
      %v1739 = vrot.slane %v1336, %v1738
      %v1740 = vlaneseq
      %v1741 = vshrl.u32 %v1740, 7
      %v1742 = vsub.s32 5, %v1741
      %v1743 = vrot.slane %v1336, %v1742
      %v1744 = vlaneseq
      %v1745 = vshrl.u32 %v1744, 7
      %v1746 = vsub.s32 6, %v1745
      %v1747 = vrot.slane %v1336, %v1746
      %v1748 = vlaneseq
      %v1749 = vshrl.u32 %v1748, 7
      %v1750 = vsub.s32 7, %v1749
      %v1751 = vrot.slane %v1336, %v1750
      %v1752 = vlaneseq
      %v1753 = vshrl.u32 %v1752, 7
      %v1754 = vsub.s32 0, %v1753
      %v1755 = vrot.slane %v1337, %v1754
      %v1756 = vlaneseq
      %v1757 = vshrl.u32 %v1756, 7
      %v1758 = vsub.s32 1, %v1757
      %v1759 = vrot.slane %v1337, %v1758
      %v1760 = vlaneseq
      %v1761 = vshrl.u32 %v1760, 7
      %v1762 = vsub.s32 2, %v1761
      %v1763 = vrot.slane %v1337, %v1762
      %v1764 = vlaneseq
      %v1765 = vshrl.u32 %v1764, 7
      %v1766 = vsub.s32 3, %v1765
      %v1767 = vrot.slane %v1337, %v1766
      %v1768 = vlaneseq
      %v1769 = vshrl.u32 %v1768, 7
      %v1770 = vsub.s32 4, %v1769
      %v1771 = vrot.slane %v1337, %v1770
      %v1772 = vlaneseq
      %v1773 = vshrl.u32 %v1772, 7
      %v1774 = vsub.s32 5, %v1773
      %v1775 = vrot.slane %v1337, %v1774
      %v1776 = vlaneseq
      %v1777 = vshrl.u32 %v1776, 7
      %v1778 = vsub.s32 6, %v1777
      %v1779 = vrot.slane %v1337, %v1778
      %v1780 = vlaneseq
      %v1781 = vshrl.u32 %v1780, 7
      %v1782 = vsub.s32 7, %v1781
      %v1783 = vrot.slane %v1337, %v1782
      %v1784 = vlaneseq
      %v1785 = vshrl.u32 %v1784, 7
      %v1786 = vsub.s32 0, %v1785
      %v1787 = vrot.slane %v1338, %v1786
      %v1788 = vlaneseq
      %v1789 = vshrl.u32 %v1788, 7
      %v1790 = vsub.s32 1, %v1789
      %v1791 = vrot.slane %v1338, %v1790
      %v1792 = vlaneseq
      %v1793 = vshrl.u32 %v1792, 7
      %v1794 = vsub.s32 2, %v1793
      %v1795 = vrot.slane %v1338, %v1794
      %v1796 = vlaneseq
      %v1797 = vshrl.u32 %v1796, 7
      %v1798 = vsub.s32 3, %v1797
      %v1799 = vrot.slane %v1338, %v1798
      %v1800 = vlaneseq
      %v1801 = vshrl.u32 %v1800, 7
      %v1802 = vsub.s32 4, %v1801
      %v1803 = vrot.slane %v1338, %v1802
      %v1804 = vlaneseq
      %v1805 = vshrl.u32 %v1804, 7
      %v1806 = vsub.s32 5, %v1805
      %v1807 = vrot.slane %v1338, %v1806
      %v1808 = vlaneseq
      %v1809 = vshrl.u32 %v1808, 7
      %v1810 = vsub.s32 6, %v1809
      %v1811 = vrot.slane %v1338, %v1810
      %v1812 = vlaneseq
      %v1813 = vshrl.u32 %v1812, 7
      %v1814 = vsub.s32 7, %v1813
      %v1815 = vrot.slane %v1338, %v1814
      %v1816 = vlaneseq
      %v1817 = vshrl.u32 %v1816, 7
      %v1818 = vsub.s32 0, %v1817
      %v1819 = vrot.slane %v1339, %v1818
      %v1820 = vlaneseq
      %v1821 = vshrl.u32 %v1820, 7
      %v1822 = vsub.s32 1, %v1821
      %v1823 = vrot.slane %v1339, %v1822
      %v1824 = vlaneseq
      %v1825 = vshrl.u32 %v1824, 7
      %v1826 = vsub.s32 2, %v1825
      %v1827 = vrot.slane %v1339, %v1826
      %v1828 = vlaneseq
      %v1829 = vshrl.u32 %v1828, 7
      %v1830 = vsub.s32 3, %v1829
      %v1831 = vrot.slane %v1339, %v1830
      %v1832 = vlaneseq
      %v1833 = vshrl.u32 %v1832, 7
      %v1834 = vsub.s32 4, %v1833
      %v1835 = vrot.slane %v1339, %v1834
      %v1836 = vlaneseq
      %v1837 = vshrl.u32 %v1836, 7
      %v1838 = vsub.s32 5, %v1837
      %v1839 = vrot.slane %v1339, %v1838
      %v1840 = vlaneseq
      %v1841 = vshrl.u32 %v1840, 7
      %v1842 = vsub.s32 6, %v1841
      %v1843 = vrot.slane %v1339, %v1842
      %v1844 = vlaneseq
      %v1845 = vshrl.u32 %v1844, 7
      %v1846 = vsub.s32 7, %v1845
      %v1847 = vrot.slane %v1339, %v1846
      %v1848 = vlaneseq
      %v1849 = vshrl.u32 %v1848, 7
      %v1850 = vsub.s32 0, %v1849
      %v1851 = vrot.slane %v1340, %v1850
      %v1852 = vlaneseq
      %v1853 = vshrl.u32 %v1852, 7
      %v1854 = vsub.s32 1, %v1853
      %v1855 = vrot.slane %v1340, %v1854
      %v1856 = vlaneseq
      %v1857 = vshrl.u32 %v1856, 7
      %v1858 = vsub.s32 2, %v1857
      %v1859 = vrot.slane %v1340, %v1858
      %v1860 = vlaneseq
      %v1861 = vshrl.u32 %v1860, 7
      %v1862 = vsub.s32 3, %v1861
      %v1863 = vrot.slane %v1340, %v1862
      %v1864 = vlaneseq
      %v1865 = vshrl.u32 %v1864, 7
      %v1866 = vsub.s32 4, %v1865
      %v1867 = vrot.slane %v1340, %v1866
      %v1868 = vlaneseq
      %v1869 = vshrl.u32 %v1868, 7
      %v1870 = vsub.s32 5, %v1869
      %v1871 = vrot.slane %v1340, %v1870
      %v1872 = vlaneseq
      %v1873 = vshrl.u32 %v1872, 7
      %v1874 = vsub.s32 6, %v1873
      %v1875 = vrot.slane %v1340, %v1874
      %v1876 = vlaneseq
      %v1877 = vshrl.u32 %v1876, 7
      %v1878 = vsub.s32 7, %v1877
      %v1879 = vrot.slane %v1340, %v1878
      %v1880 = vlaneseq
      %v1881 = vshrl.u32 %v1880, 7
      %v1882 = vsub.s32 0, %v1881
      %v1883 = vrot.slane %v1341, %v1882
      %v1884 = vlaneseq
      %v1885 = vshrl.u32 %v1884, 7
      %v1886 = vsub.s32 1, %v1885
      %v1887 = vrot.slane %v1341, %v1886
      %v1888 = vlaneseq
      %v1889 = vshrl.u32 %v1888, 7
      %v1890 = vsub.s32 2, %v1889
      %v1891 = vrot.slane %v1341, %v1890
      %v1892 = vlaneseq
      %v1893 = vshrl.u32 %v1892, 7
      %v1894 = vsub.s32 3, %v1893
      %v1895 = vrot.slane %v1341, %v1894
      %v1896 = vlaneseq
      %v1897 = vshrl.u32 %v1896, 7
      %v1898 = vsub.s32 4, %v1897
      %v1899 = vrot.slane %v1341, %v1898
      %v1900 = vlaneseq
      %v1901 = vshrl.u32 %v1900, 7
      %v1902 = vsub.s32 5, %v1901
      %v1903 = vrot.slane %v1341, %v1902
      %v1904 = vlaneseq
      %v1905 = vshrl.u32 %v1904, 7
      %v1906 = vsub.s32 6, %v1905
      %v1907 = vrot.slane %v1341, %v1906
      %v1908 = vlaneseq
      %v1909 = vshrl.u32 %v1908, 7
      %v1910 = vsub.s32 7, %v1909
      %v1911 = vrot.slane %v1341, %v1910
      %v1912 = vlaneseq
      %v1913 = vshrl.u32 %v1912, 7
      %v1914 = vsub.s32 0, %v1913
      %v1915 = vrot.slane %v1342, %v1914
      %v1916 = vlaneseq
      %v1917 = vshrl.u32 %v1916, 7
      %v1918 = vsub.s32 1, %v1917
      %v1919 = vrot.slane %v1342, %v1918
      %v1920 = vlaneseq
      %v1921 = vshrl.u32 %v1920, 7
      %v1922 = vsub.s32 2, %v1921
      %v1923 = vrot.slane %v1342, %v1922
      %v1924 = vlaneseq
      %v1925 = vshrl.u32 %v1924, 7
      %v1926 = vsub.s32 3, %v1925
      %v1927 = vrot.slane %v1342, %v1926
      %v1928 = vlaneseq
      %v1929 = vshrl.u32 %v1928, 7
      %v1930 = vsub.s32 4, %v1929
      %v1931 = vrot.slane %v1342, %v1930
      %v1932 = vlaneseq
      %v1933 = vshrl.u32 %v1932, 7
      %v1934 = vsub.s32 5, %v1933
      %v1935 = vrot.slane %v1342, %v1934
      %v1936 = vlaneseq
      %v1937 = vshrl.u32 %v1936, 7
      %v1938 = vsub.s32 6, %v1937
      %v1939 = vrot.slane %v1342, %v1938
      %v1940 = vlaneseq
      %v1941 = vshrl.u32 %v1940, 7
      %v1942 = vsub.s32 7, %v1941
      %v1943 = vrot.slane %v1342, %v1942
      %v1944 = vlaneseq
      %v1945 = vshrl.u32 %v1944, 7
      %v1946 = vsub.s32 0, %v1945
      %v1947 = vrot.slane %v1343, %v1946
      %v1948 = vlaneseq
      %v1949 = vshrl.u32 %v1948, 7
      %v1950 = vsub.s32 1, %v1949
      %v1951 = vrot.slane %v1343, %v1950
      %v1952 = vlaneseq
      %v1953 = vshrl.u32 %v1952, 7
      %v1954 = vsub.s32 2, %v1953
      %v1955 = vrot.slane %v1343, %v1954
      %v1956 = vlaneseq
      %v1957 = vshrl.u32 %v1956, 7
      %v1958 = vsub.s32 3, %v1957
      %v1959 = vrot.slane %v1343, %v1958
      %v1960 = vlaneseq
      %v1961 = vshrl.u32 %v1960, 7
      %v1962 = vsub.s32 4, %v1961
      %v1963 = vrot.slane %v1343, %v1962
      %v1964 = vlaneseq
      %v1965 = vshrl.u32 %v1964, 7
      %v1966 = vsub.s32 5, %v1965
      %v1967 = vrot.slane %v1343, %v1966
      %v1968 = vlaneseq
      %v1969 = vshrl.u32 %v1968, 7
      %v1970 = vsub.s32 6, %v1969
      %v1971 = vrot.slane %v1343, %v1970
      %v1972 = vlaneseq
      %v1973 = vshrl.u32 %v1972, 7
      %v1974 = vsub.s32 7, %v1973
      %v1975 = vrot.slane %v1343, %v1974
      %v1976 = vlaneseq
      %v1977 = vshrl.u32 %v1976, 7
      %v1978 = vsub.s32 0, %v1977
      %v1979 = vrot.slane %v1344, %v1978
      %v1980 = vlaneseq
      %v1981 = vshrl.u32 %v1980, 7
      %v1982 = vsub.s32 1, %v1981
      %v1983 = vrot.slane %v1344, %v1982
      %v1984 = vlaneseq
      %v1985 = vshrl.u32 %v1984, 7
      %v1986 = vsub.s32 2, %v1985
      %v1987 = vrot.slane %v1344, %v1986
      %v1988 = vlaneseq
      %v1989 = vshrl.u32 %v1988, 7
      %v1990 = vsub.s32 3, %v1989
      %v1991 = vrot.slane %v1344, %v1990
      %v1992 = vlaneseq
      %v1993 = vshrl.u32 %v1992, 7
      %v1994 = vsub.s32 4, %v1993
      %v1995 = vrot.slane %v1344, %v1994
      %v1996 = vlaneseq
      %v1997 = vshrl.u32 %v1996, 7
      %v1998 = vsub.s32 5, %v1997
      %v1999 = vrot.slane %v1344, %v1998
      %v2000 = vlaneseq
      %v2001 = vshrl.u32 %v2000, 7
      %v2002 = vsub.s32 6, %v2001
      %v2003 = vrot.slane %v1344, %v2002
      %v2004 = vlaneseq
      %v2005 = vshrl.u32 %v2004, 7
      %v2006 = vsub.s32 7, %v2005
      %v2007 = vrot.slane %v1344, %v2006
      %v2008 = vlaneseq
      %v2009 = vshrl.u32 %v2008, 7
      %v2010 = vsub.s32 0, %v2009
      %v2011 = vrot.slane %v1345, %v2010
      %v2012 = vlaneseq
      %v2013 = vshrl.u32 %v2012, 7
      %v2014 = vsub.s32 1, %v2013
      %v2015 = vrot.slane %v1345, %v2014
      %v2016 = vlaneseq
      %v2017 = vshrl.u32 %v2016, 7
      %v2018 = vsub.s32 2, %v2017
      %v2019 = vrot.slane %v1345, %v2018
      %v2020 = vlaneseq
      %v2021 = vshrl.u32 %v2020, 7
      %v2022 = vsub.s32 3, %v2021
      %v2023 = vrot.slane %v1345, %v2022
      %v2024 = vlaneseq
      %v2025 = vshrl.u32 %v2024, 7
      %v2026 = vsub.s32 4, %v2025
      %v2027 = vrot.slane %v1345, %v2026
      %v2028 = vlaneseq
      %v2029 = vshrl.u32 %v2028, 7
      %v2030 = vsub.s32 5, %v2029
      %v2031 = vrot.slane %v1345, %v2030
      %v2032 = vlaneseq
      %v2033 = vshrl.u32 %v2032, 7
      %v2034 = vsub.s32 6, %v2033
      %v2035 = vrot.slane %v1345, %v2034
      %v2036 = vlaneseq
      %v2037 = vshrl.u32 %v2036, 7
      %v2038 = vsub.s32 7, %v2037
      %v2039 = vrot.slane %v1345, %v2038
      %v2040 = vlaneseq
      %v2041 = vshrl.u32 %v2040, 7
      %v2042 = vsub.s32 0, %v2041
      %v2043 = vrot.slane %v1346, %v2042
      %v2044 = vlaneseq
      %v2045 = vshrl.u32 %v2044, 7
      %v2046 = vsub.s32 1, %v2045
      %v2047 = vrot.slane %v1346, %v2046
      %v2048 = vlaneseq
      %v2049 = vshrl.u32 %v2048, 7
      %v2050 = vsub.s32 2, %v2049
      %v2051 = vrot.slane %v1346, %v2050
      %v2052 = vlaneseq
      %v2053 = vshrl.u32 %v2052, 7
      %v2054 = vsub.s32 3, %v2053
      %v2055 = vrot.slane %v1346, %v2054
      %v2056 = vlaneseq
      %v2057 = vshrl.u32 %v2056, 7
      %v2058 = vsub.s32 4, %v2057
      %v2059 = vrot.slane %v1346, %v2058
      %v2060 = vlaneseq
      %v2061 = vshrl.u32 %v2060, 7
      %v2062 = vsub.s32 5, %v2061
      %v2063 = vrot.slane %v1346, %v2062
      %v2064 = vlaneseq
      %v2065 = vshrl.u32 %v2064, 7
      %v2066 = vsub.s32 6, %v2065
      %v2067 = vrot.slane %v1346, %v2066
      %v2068 = vlaneseq
      %v2069 = vshrl.u32 %v2068, 7
      %v2070 = vsub.s32 7, %v2069
      %v2071 = vrot.slane %v1346, %v2070
      %v2072 = vlaneseq
      %v2073 = vshrl.u32 %v2072, 7
      %v2074 = vsub.s32 0, %v2073
      %v2075 = vrot.slane %v1347, %v2074
      %v2076 = vlaneseq
      %v2077 = vshrl.u32 %v2076, 7
      %v2078 = vsub.s32 1, %v2077
      %v2079 = vrot.slane %v1347, %v2078
      %v2080 = vlaneseq
      %v2081 = vshrl.u32 %v2080, 7
      %v2082 = vsub.s32 2, %v2081
      %v2083 = vrot.slane %v1347, %v2082
      %v2084 = vlaneseq
      %v2085 = vshrl.u32 %v2084, 7
      %v2086 = vsub.s32 3, %v2085
      %v2087 = vrot.slane %v1347, %v2086
      %v2088 = vlaneseq
      %v2089 = vshrl.u32 %v2088, 7
      %v2090 = vsub.s32 4, %v2089
      %v2091 = vrot.slane %v1347, %v2090
      %v2092 = vlaneseq
      %v2093 = vshrl.u32 %v2092, 7
      %v2094 = vsub.s32 5, %v2093
      %v2095 = vrot.slane %v1347, %v2094
      %v2096 = vlaneseq
      %v2097 = vshrl.u32 %v2096, 7
      %v2098 = vsub.s32 6, %v2097
      %v2099 = vrot.slane %v1347, %v2098
      %v2100 = vlaneseq
      %v2101 = vshrl.u32 %v2100, 7
      %v2102 = vsub.s32 7, %v2101
      %v2103 = vrot.slane %v1347, %v2102
      %v2104 = vlaneseq
      %v2105 = vshrl.u32 %v2104, 7
      %v2106 = vsub.s32 0, %v2105
      %v2107 = vrot.slane %v1348, %v2106
      %v2108 = vlaneseq
      %v2109 = vshrl.u32 %v2108, 7
      %v2110 = vsub.s32 1, %v2109
      %v2111 = vrot.slane %v1348, %v2110
      %v2112 = vlaneseq
      %v2113 = vshrl.u32 %v2112, 7
      %v2114 = vsub.s32 2, %v2113
      %v2115 = vrot.slane %v1348, %v2114
      %v2116 = vlaneseq
      %v2117 = vshrl.u32 %v2116, 7
      %v2118 = vsub.s32 3, %v2117
      %v2119 = vrot.slane %v1348, %v2118
      %v2120 = vlaneseq
      %v2121 = vshrl.u32 %v2120, 7
      %v2122 = vsub.s32 4, %v2121
      %v2123 = vrot.slane %v1348, %v2122
      %v2124 = vlaneseq
      %v2125 = vshrl.u32 %v2124, 7
      %v2126 = vsub.s32 5, %v2125
      %v2127 = vrot.slane %v1348, %v2126
      %v2128 = vlaneseq
      %v2129 = vshrl.u32 %v2128, 7
      %v2130 = vsub.s32 6, %v2129
      %v2131 = vrot.slane %v1348, %v2130
      %v2132 = vlaneseq
      %v2133 = vshrl.u32 %v2132, 7
      %v2134 = vsub.s32 7, %v2133
      %v2135 = vrot.slane %v1348, %v2134
      %v2136 = vlaneseq
      %v2137 = vshrl.u32 %v2136, 7
      %v2138 = vsub.s32 0, %v2137
      %v2139 = vrot.slane %v1349, %v2138
      %v2140 = vlaneseq
      %v2141 = vshrl.u32 %v2140, 7
      %v2142 = vsub.s32 1, %v2141
      %v2143 = vrot.slane %v1349, %v2142
      %v2144 = vlaneseq
      %v2145 = vshrl.u32 %v2144, 7
      %v2146 = vsub.s32 2, %v2145
      %v2147 = vrot.slane %v1349, %v2146
      %v2148 = vlaneseq
      %v2149 = vshrl.u32 %v2148, 7
      %v2150 = vsub.s32 3, %v2149
      %v2151 = vrot.slane %v1349, %v2150
      %v2152 = vlaneseq
      %v2153 = vshrl.u32 %v2152, 7
      %v2154 = vsub.s32 4, %v2153
      %v2155 = vrot.slane %v1349, %v2154
      %v2156 = vlaneseq
      %v2157 = vshrl.u32 %v2156, 7
      %v2158 = vsub.s32 5, %v2157
      %v2159 = vrot.slane %v1349, %v2158
      %v2160 = vlaneseq
      %v2161 = vshrl.u32 %v2160, 7
      %v2162 = vsub.s32 6, %v2161
      %v2163 = vrot.slane %v1349, %v2162
      %v2164 = vlaneseq
      %v2165 = vshrl.u32 %v2164, 7
      %v2166 = vsub.s32 7, %v2165
      %v2167 = vrot.slane %v1349, %v2166
      %v2168 = vlaneseq
      %v2169 = vshrl.u32 %v2168, 7
      %v2170 = vsub.s32 0, %v2169
      %v2171 = vrot.slane %v1350, %v2170
      %v2172 = vlaneseq
      %v2173 = vshrl.u32 %v2172, 7
      %v2174 = vsub.s32 1, %v2173
      %v2175 = vrot.slane %v1350, %v2174
      %v2176 = vlaneseq
      %v2177 = vshrl.u32 %v2176, 7
      %v2178 = vsub.s32 2, %v2177
      %v2179 = vrot.slane %v1350, %v2178
      %v2180 = vlaneseq
      %v2181 = vshrl.u32 %v2180, 7
      %v2182 = vsub.s32 3, %v2181
      %v2183 = vrot.slane %v1350, %v2182
      %v2184 = vlaneseq
      %v2185 = vshrl.u32 %v2184, 7
      %v2186 = vsub.s32 4, %v2185
      %v2187 = vrot.slane %v1350, %v2186
      %v2188 = vlaneseq
      %v2189 = vshrl.u32 %v2188, 7
      %v2190 = vsub.s32 5, %v2189
      %v2191 = vrot.slane %v1350, %v2190
      %v2192 = vlaneseq
      %v2193 = vshrl.u32 %v2192, 7
      %v2194 = vsub.s32 6, %v2193
      %v2195 = vrot.slane %v1350, %v2194
      %v2196 = vlaneseq
      %v2197 = vshrl.u32 %v2196, 7
      %v2198 = vsub.s32 7, %v2197
      %v2199 = vrot.slane %v1350, %v2198
      %v2200 = vlaneseq
      %v2201 = vshrl.u32 %v2200, 7
      %v2202 = vsub.s32 0, %v2201
      %v2203 = vrot.slane %v1351, %v2202
      %v2204 = vlaneseq
      %v2205 = vshrl.u32 %v2204, 7
      %v2206 = vsub.s32 1, %v2205
      %v2207 = vrot.slane %v1351, %v2206
      %v2208 = vlaneseq
      %v2209 = vshrl.u32 %v2208, 7
      %v2210 = vsub.s32 2, %v2209
      %v2211 = vrot.slane %v1351, %v2210
      %v2212 = vlaneseq
      %v2213 = vshrl.u32 %v2212, 7
      %v2214 = vsub.s32 3, %v2213
      %v2215 = vrot.slane %v1351, %v2214
      %v2216 = vlaneseq
      %v2217 = vshrl.u32 %v2216, 7
      %v2218 = vsub.s32 4, %v2217
      %v2219 = vrot.slane %v1351, %v2218
      %v2220 = vlaneseq
      %v2221 = vshrl.u32 %v2220, 7
      %v2222 = vsub.s32 5, %v2221
      %v2223 = vrot.slane %v1351, %v2222
      %v2224 = vlaneseq
      %v2225 = vshrl.u32 %v2224, 7
      %v2226 = vsub.s32 6, %v2225
      %v2227 = vrot.slane %v1351, %v2226
      %v2228 = vlaneseq
      %v2229 = vshrl.u32 %v2228, 7
      %v2230 = vsub.s32 7, %v2229
      %v2231 = vrot.slane %v1351, %v2230
      %v2232 = vlaneseq
      %v2233 = vshrl.u32 %v2232, 7
      %v2234 = vsub.s32 0, %v2233
      %v2235 = vrot.slane %v1352, %v2234
      %v2236 = vlaneseq
      %v2237 = vshrl.u32 %v2236, 7
      %v2238 = vsub.s32 1, %v2237
      %v2239 = vrot.slane %v1352, %v2238
      %v2240 = vlaneseq
      %v2241 = vshrl.u32 %v2240, 7
      %v2242 = vsub.s32 2, %v2241
      %v2243 = vrot.slane %v1352, %v2242
      %v2244 = vlaneseq
      %v2245 = vshrl.u32 %v2244, 7
      %v2246 = vsub.s32 3, %v2245
      %v2247 = vrot.slane %v1352, %v2246
      %v2248 = vlaneseq
      %v2249 = vshrl.u32 %v2248, 7
      %v2250 = vsub.s32 4, %v2249
      %v2251 = vrot.slane %v1352, %v2250
      %v2252 = vlaneseq
      %v2253 = vshrl.u32 %v2252, 7
      %v2254 = vsub.s32 5, %v2253
      %v2255 = vrot.slane %v1352, %v2254
      %v2256 = vlaneseq
      %v2257 = vshrl.u32 %v2256, 7
      %v2258 = vsub.s32 6, %v2257
      %v2259 = vrot.slane %v1352, %v2258
      %v2260 = vlaneseq
      %v2261 = vshrl.u32 %v2260, 7
      %v2262 = vsub.s32 7, %v2261
      %v2263 = vrot.slane %v1352, %v2262
      %v2264 = vlaneseq
      %v2265 = vshrl.u32 %v2264, 7
      %v2266 = vsub.s32 0, %v2265
      %v2267 = vrot.slane %v1353, %v2266
      %v2268 = vlaneseq
      %v2269 = vshrl.u32 %v2268, 7
      %v2270 = vsub.s32 1, %v2269
      %v2271 = vrot.slane %v1353, %v2270
      %v2272 = vlaneseq
      %v2273 = vshrl.u32 %v2272, 7
      %v2274 = vsub.s32 2, %v2273
      %v2275 = vrot.slane %v1353, %v2274
      %v2276 = vlaneseq
      %v2277 = vshrl.u32 %v2276, 7
      %v2278 = vsub.s32 3, %v2277
      %v2279 = vrot.slane %v1353, %v2278
      %v2280 = vlaneseq
      %v2281 = vshrl.u32 %v2280, 7
      %v2282 = vsub.s32 4, %v2281
      %v2283 = vrot.slane %v1353, %v2282
      %v2284 = vlaneseq
      %v2285 = vshrl.u32 %v2284, 7
      %v2286 = vsub.s32 5, %v2285
      %v2287 = vrot.slane %v1353, %v2286
      %v2288 = vlaneseq
      %v2289 = vshrl.u32 %v2288, 7
      %v2290 = vsub.s32 6, %v2289
      %v2291 = vrot.slane %v1353, %v2290
      %v2292 = vlaneseq
      %v2293 = vshrl.u32 %v2292, 7
      %v2294 = vsub.s32 7, %v2293
      %v2295 = vrot.slane %v1353, %v2294
      %v2296 = vlaneseq
      %v2297 = vshrl.u32 %v2296, 7
      %v2298 = vsub.s32 0, %v2297
      %v2299 = vrot.slane %v1354, %v2298
      %v2300 = vlaneseq
      %v2301 = vshrl.u32 %v2300, 7
      %v2302 = vsub.s32 1, %v2301
      %v2303 = vrot.slane %v1354, %v2302
      %v2304 = vlaneseq
      %v2305 = vshrl.u32 %v2304, 7
      %v2306 = vsub.s32 2, %v2305
      %v2307 = vrot.slane %v1354, %v2306
      %v2308 = vlaneseq
      %v2309 = vshrl.u32 %v2308, 7
      %v2310 = vsub.s32 3, %v2309
      %v2311 = vrot.slane %v1354, %v2310
      %v2312 = vlaneseq
      %v2313 = vshrl.u32 %v2312, 7
      %v2314 = vsub.s32 4, %v2313
      %v2315 = vrot.slane %v1354, %v2314
      %v2316 = vlaneseq
      %v2317 = vshrl.u32 %v2316, 7
      %v2318 = vsub.s32 5, %v2317
      %v2319 = vrot.slane %v1354, %v2318
      %v2320 = vlaneseq
      %v2321 = vshrl.u32 %v2320, 7
      %v2322 = vsub.s32 6, %v2321
      %v2323 = vrot.slane %v1354, %v2322
      %v2324 = vlaneseq
      %v2325 = vshrl.u32 %v2324, 7
      %v2326 = vsub.s32 7, %v2325
      %v2327 = vrot.slane %v1354, %v2326
      %v2328 = vlaneseq
      %v2329 = vshrl.u32 %v2328, 7
      %v2330 = vsub.s32 0, %v2329
      %v2331 = vrot.slane %v1355, %v2330
      %v2332 = vlaneseq
      %v2333 = vshrl.u32 %v2332, 7
      %v2334 = vsub.s32 1, %v2333
      %v2335 = vrot.slane %v1355, %v2334
      %v2336 = vlaneseq
      %v2337 = vshrl.u32 %v2336, 7
      %v2338 = vsub.s32 2, %v2337
      %v2339 = vrot.slane %v1355, %v2338
      %v2340 = vlaneseq
      %v2341 = vshrl.u32 %v2340, 7
      %v2342 = vsub.s32 3, %v2341
      %v2343 = vrot.slane %v1355, %v2342
      %v2344 = vlaneseq
      %v2345 = vshrl.u32 %v2344, 7
      %v2346 = vsub.s32 4, %v2345
      %v2347 = vrot.slane %v1355, %v2346
      %v2348 = vlaneseq
      %v2349 = vshrl.u32 %v2348, 7
      %v2350 = vsub.s32 5, %v2349
      %v2351 = vrot.slane %v1355, %v2350
      %v2352 = vlaneseq
      %v2353 = vshrl.u32 %v2352, 7
      %v2354 = vsub.s32 6, %v2353
      %v2355 = vrot.slane %v1355, %v2354
      %v2356 = vlaneseq
      %v2357 = vshrl.u32 %v2356, 7
      %v2358 = vsub.s32 7, %v2357
      %v2359 = vrot.slane %v1355, %v2358
      %v2360 = vlaneseq
      %v2361 = vshrl.u32 %v2360, 7
      %v2362 = vsub.s32 0, %v2361
      %v2363 = vrot.slane %v1356, %v2362
      %v2364 = vlaneseq
      %v2365 = vshrl.u32 %v2364, 7
      %v2366 = vsub.s32 1, %v2365
      %v2367 = vrot.slane %v1356, %v2366
      %v2368 = vlaneseq
      %v2369 = vshrl.u32 %v2368, 7
      %v2370 = vsub.s32 2, %v2369
      %v2371 = vrot.slane %v1356, %v2370
      %v2372 = vlaneseq
      %v2373 = vshrl.u32 %v2372, 7
      %v2374 = vsub.s32 3, %v2373
      %v2375 = vrot.slane %v1356, %v2374
      %v2376 = vlaneseq
      %v2377 = vshrl.u32 %v2376, 7
      %v2378 = vsub.s32 4, %v2377
      %v2379 = vrot.slane %v1356, %v2378
      %v2380 = vlaneseq
      %v2381 = vshrl.u32 %v2380, 7
      %v2382 = vsub.s32 5, %v2381
      %v2383 = vrot.slane %v1356, %v2382
      %v2384 = vlaneseq
      %v2385 = vshrl.u32 %v2384, 7
      %v2386 = vsub.s32 6, %v2385
      %v2387 = vrot.slane %v1356, %v2386
      %v2388 = vlaneseq
      %v2389 = vshrl.u32 %v2388, 7
      %v2390 = vsub.s32 7, %v2389
      %v2391 = vrot.slane %v1356, %v2390
      %v2392 = vlaneseq
      %v2393 = vshrl.u32 %v2392, 7
      %v2394 = vsub.s32 0, %v2393
      %v2395 = vrot.slane %v1357, %v2394
      %v2396 = vlaneseq
      %v2397 = vshrl.u32 %v2396, 7
      %v2398 = vsub.s32 1, %v2397
      %v2399 = vrot.slane %v1357, %v2398
      %v2400 = vlaneseq
      %v2401 = vshrl.u32 %v2400, 7
      %v2402 = vsub.s32 2, %v2401
      %v2403 = vrot.slane %v1357, %v2402
      %v2404 = vlaneseq
      %v2405 = vshrl.u32 %v2404, 7
      %v2406 = vsub.s32 3, %v2405
      %v2407 = vrot.slane %v1357, %v2406
      %v2408 = vlaneseq
      %v2409 = vshrl.u32 %v2408, 7
      %v2410 = vsub.s32 4, %v2409
      %v2411 = vrot.slane %v1357, %v2410
      %v2412 = vlaneseq
      %v2413 = vshrl.u32 %v2412, 7
      %v2414 = vsub.s32 5, %v2413
      %v2415 = vrot.slane %v1357, %v2414
      %v2416 = vlaneseq
      %v2417 = vshrl.u32 %v2416, 7
      %v2418 = vsub.s32 6, %v2417
      %v2419 = vrot.slane %v1357, %v2418
      %v2420 = vlaneseq
      %v2421 = vshrl.u32 %v2420, 7
      %v2422 = vsub.s32 7, %v2421
      %v2423 = vrot.slane %v1357, %v2422
      %v2424 = vcombine.low %v1403, %v1407
      %v2425 = vcombine.low %v1411, %v1415
      %v2426 = vcombine.low %v1419, %v1423
      %v2427 = vcombine.low %v1427, %v1431
      %v2429 = vunpack.c.l.s4 1966171168
      %v2430 = vunpack.c.0.s8 %v2429
      %v2431 = vlaneseq
      %v2432 = vshrl.u32 %v2431, 7
      %v2433 = vsub.s32 %v2430, %v2432
      %v2434 = vrot.slane %v2424, %v2433
      %v2436 = vunpack.c.l.s4 1966171168
      %v2437 = vunpack.c.0.s8 %v2436
      %v2438 = vlaneseq
      %v2439 = vshrl.u32 %v2438, 7
      %v2440 = vsub.s32 %v2437, %v2439
      %v2441 = vrot.slane %v2425, %v2440
      %v2443 = vunpack.c.l.s4 1966171168
      %v2444 = vunpack.c.0.s8 %v2443
      %v2445 = vlaneseq
      %v2446 = vshrl.u32 %v2445, 7
      %v2447 = vsub.s32 %v2444, %v2446
      %v2448 = vrot.slane %v2426, %v2447
      %v2450 = vunpack.c.l.s4 1966171168
      %v2451 = vunpack.c.0.s8 %v2450
      %v2452 = vlaneseq
      %v2453 = vshrl.u32 %v2452, 7
      %v2454 = vsub.s32 %v2451, %v2453
      %v2455 = vrot.slane %v2427, %v2454
      %v2456 = vcombine.low %v2434, %v2441
      %v2457 = vcombine.low %v2448, %v2455
      %v2459 = vunpack.c.l.s4 1966171168
      %v2460 = vunpack.c.0.s8 %v2459
      %v2461 = vlaneseq
      %v2462 = vshrl.u32 %v2461, 7
      %v2463 = vsub.s32 %v2460, %v2462
      %v2464 = vrot.slane %v2456, %v2463
      %v2466 = vunpack.c.l.s4 1966171168
      %v2467 = vunpack.c.0.s8 %v2466
      %v2468 = vlaneseq
      %v2469 = vshrl.u32 %v2468, 7
      %v2470 = vsub.s32 %v2467, %v2469
      %v2471 = vrot.slane %v2457, %v2470
      %v2472 = vcombine.low %v2464, %v2471
      %v2473 = vcombine.low %v1435, %v1439
      %v2474 = vcombine.low %v1443, %v1447
      %v2475 = vcombine.low %v1451, %v1455
      %v2476 = vcombine.low %v1459, %v1463
      %v2478 = vunpack.c.l.s4 1966171168
      %v2479 = vunpack.c.0.s8 %v2478
      %v2480 = vlaneseq
      %v2481 = vshrl.u32 %v2480, 7
      %v2482 = vsub.s32 %v2479, %v2481
      %v2483 = vrot.slane %v2473, %v2482
      %v2485 = vunpack.c.l.s4 1966171168
      %v2486 = vunpack.c.0.s8 %v2485
      %v2487 = vlaneseq
      %v2488 = vshrl.u32 %v2487, 7
      %v2489 = vsub.s32 %v2486, %v2488
      %v2490 = vrot.slane %v2474, %v2489
      %v2492 = vunpack.c.l.s4 1966171168
      %v2493 = vunpack.c.0.s8 %v2492
      %v2494 = vlaneseq
      %v2495 = vshrl.u32 %v2494, 7
      %v2496 = vsub.s32 %v2493, %v2495
      %v2497 = vrot.slane %v2475, %v2496
      %v2499 = vunpack.c.l.s4 1966171168
      %v2500 = vunpack.c.0.s8 %v2499
      %v2501 = vlaneseq
      %v2502 = vshrl.u32 %v2501, 7
      %v2503 = vsub.s32 %v2500, %v2502
      %v2504 = vrot.slane %v2476, %v2503
      %v2505 = vcombine.low %v2483, %v2490
      %v2506 = vcombine.low %v2497, %v2504
      %v2508 = vunpack.c.l.s4 1966171168
      %v2509 = vunpack.c.0.s8 %v2508
      %v2510 = vlaneseq
      %v2511 = vshrl.u32 %v2510, 7
      %v2512 = vsub.s32 %v2509, %v2511
      %v2513 = vrot.slane %v2505, %v2512
      %v2515 = vunpack.c.l.s4 1966171168
      %v2516 = vunpack.c.0.s8 %v2515
      %v2517 = vlaneseq
      %v2518 = vshrl.u32 %v2517, 7
      %v2519 = vsub.s32 %v2516, %v2518
      %v2520 = vrot.slane %v2506, %v2519
      %v2521 = vcombine.low %v2513, %v2520
      %v2522 = vcombine.low %v1467, %v1471
      %v2523 = vcombine.low %v1475, %v1479
      %v2524 = vcombine.low %v1483, %v1487
      %v2525 = vcombine.low %v1491, %v1495
      %v2527 = vunpack.c.l.s4 1966171168
      %v2528 = vunpack.c.0.s8 %v2527
      %v2529 = vlaneseq
      %v2530 = vshrl.u32 %v2529, 7
      %v2531 = vsub.s32 %v2528, %v2530
      %v2532 = vrot.slane %v2522, %v2531
      %v2534 = vunpack.c.l.s4 1966171168
      %v2535 = vunpack.c.0.s8 %v2534
      %v2536 = vlaneseq
      %v2537 = vshrl.u32 %v2536, 7
      %v2538 = vsub.s32 %v2535, %v2537
      %v2539 = vrot.slane %v2523, %v2538
      %v2541 = vunpack.c.l.s4 1966171168
      %v2542 = vunpack.c.0.s8 %v2541
      %v2543 = vlaneseq
      %v2544 = vshrl.u32 %v2543, 7
      %v2545 = vsub.s32 %v2542, %v2544
      %v2546 = vrot.slane %v2524, %v2545
      %v2548 = vunpack.c.l.s4 1966171168
      %v2549 = vunpack.c.0.s8 %v2548
      %v2550 = vlaneseq
      %v2551 = vshrl.u32 %v2550, 7
      %v2552 = vsub.s32 %v2549, %v2551
      %v2553 = vrot.slane %v2525, %v2552
      %v2554 = vcombine.low %v2532, %v2539
      %v2555 = vcombine.low %v2546, %v2553
      %v2557 = vunpack.c.l.s4 1966171168
      %v2558 = vunpack.c.0.s8 %v2557
      %v2559 = vlaneseq
      %v2560 = vshrl.u32 %v2559, 7
      %v2561 = vsub.s32 %v2558, %v2560
      %v2562 = vrot.slane %v2554, %v2561
      %v2564 = vunpack.c.l.s4 1966171168
      %v2565 = vunpack.c.0.s8 %v2564
      %v2566 = vlaneseq
      %v2567 = vshrl.u32 %v2566, 7
      %v2568 = vsub.s32 %v2565, %v2567
      %v2569 = vrot.slane %v2555, %v2568
      %v2570 = vcombine.low %v2562, %v2569
      %v2571 = vcombine.low %v1499, %v1503
      %v2572 = vcombine.low %v1507, %v1511
      %v2573 = vcombine.low %v1515, %v1519
      %v2574 = vcombine.low %v1523, %v1527
      %v2576 = vunpack.c.l.s4 1966171168
      %v2577 = vunpack.c.0.s8 %v2576
      %v2578 = vlaneseq
      %v2579 = vshrl.u32 %v2578, 7
      %v2580 = vsub.s32 %v2577, %v2579
      %v2581 = vrot.slane %v2571, %v2580
      %v2583 = vunpack.c.l.s4 1966171168
      %v2584 = vunpack.c.0.s8 %v2583
      %v2585 = vlaneseq
      %v2586 = vshrl.u32 %v2585, 7
      %v2587 = vsub.s32 %v2584, %v2586
      %v2588 = vrot.slane %v2572, %v2587
      %v2590 = vunpack.c.l.s4 1966171168
      %v2591 = vunpack.c.0.s8 %v2590
      %v2592 = vlaneseq
      %v2593 = vshrl.u32 %v2592, 7
      %v2594 = vsub.s32 %v2591, %v2593
      %v2595 = vrot.slane %v2573, %v2594
      %v2597 = vunpack.c.l.s4 1966171168
      %v2598 = vunpack.c.0.s8 %v2597
      %v2599 = vlaneseq
      %v2600 = vshrl.u32 %v2599, 7
      %v2601 = vsub.s32 %v2598, %v2600
      %v2602 = vrot.slane %v2574, %v2601
      %v2603 = vcombine.low %v2581, %v2588
      %v2604 = vcombine.low %v2595, %v2602
      %v2606 = vunpack.c.l.s4 1966171168
      %v2607 = vunpack.c.0.s8 %v2606
      %v2608 = vlaneseq
      %v2609 = vshrl.u32 %v2608, 7
      %v2610 = vsub.s32 %v2607, %v2609
      %v2611 = vrot.slane %v2603, %v2610
      %v2613 = vunpack.c.l.s4 1966171168
      %v2614 = vunpack.c.0.s8 %v2613
      %v2615 = vlaneseq
      %v2616 = vshrl.u32 %v2615, 7
      %v2617 = vsub.s32 %v2614, %v2616
      %v2618 = vrot.slane %v2604, %v2617
      %v2619 = vcombine.low %v2611, %v2618
      %v2620 = vcombine.low %v1531, %v1535
      %v2621 = vcombine.low %v1539, %v1543
      %v2622 = vcombine.low %v1547, %v1551
      %v2623 = vcombine.low %v1555, %v1559
      %v2625 = vunpack.c.l.s4 1966171168
      %v2626 = vunpack.c.0.s8 %v2625
      %v2627 = vlaneseq
      %v2628 = vshrl.u32 %v2627, 7
      %v2629 = vsub.s32 %v2626, %v2628
      %v2630 = vrot.slane %v2620, %v2629
      %v2632 = vunpack.c.l.s4 1966171168
      %v2633 = vunpack.c.0.s8 %v2632
      %v2634 = vlaneseq
      %v2635 = vshrl.u32 %v2634, 7
      %v2636 = vsub.s32 %v2633, %v2635
      %v2637 = vrot.slane %v2621, %v2636
      %v2639 = vunpack.c.l.s4 1966171168
      %v2640 = vunpack.c.0.s8 %v2639
      %v2641 = vlaneseq
      %v2642 = vshrl.u32 %v2641, 7
      %v2643 = vsub.s32 %v2640, %v2642
      %v2644 = vrot.slane %v2622, %v2643
      %v2646 = vunpack.c.l.s4 1966171168
      %v2647 = vunpack.c.0.s8 %v2646
      %v2648 = vlaneseq
      %v2649 = vshrl.u32 %v2648, 7
      %v2650 = vsub.s32 %v2647, %v2649
      %v2651 = vrot.slane %v2623, %v2650
      %v2652 = vcombine.low %v2630, %v2637
      %v2653 = vcombine.low %v2644, %v2651
      %v2655 = vunpack.c.l.s4 1966171168
      %v2656 = vunpack.c.0.s8 %v2655
      %v2657 = vlaneseq
      %v2658 = vshrl.u32 %v2657, 7
      %v2659 = vsub.s32 %v2656, %v2658
      %v2660 = vrot.slane %v2652, %v2659
      %v2662 = vunpack.c.l.s4 1966171168
      %v2663 = vunpack.c.0.s8 %v2662
      %v2664 = vlaneseq
      %v2665 = vshrl.u32 %v2664, 7
      %v2666 = vsub.s32 %v2663, %v2665
      %v2667 = vrot.slane %v2653, %v2666
      %v2668 = vcombine.low %v2660, %v2667
      %v2669 = vcombine.low %v1563, %v1567
      %v2670 = vcombine.low %v1571, %v1575
      %v2671 = vcombine.low %v1579, %v1583
      %v2672 = vcombine.low %v1587, %v1591
      %v2674 = vunpack.c.l.s4 1966171168
      %v2675 = vunpack.c.0.s8 %v2674
      %v2676 = vlaneseq
      %v2677 = vshrl.u32 %v2676, 7
      %v2678 = vsub.s32 %v2675, %v2677
      %v2679 = vrot.slane %v2669, %v2678
      %v2681 = vunpack.c.l.s4 1966171168
      %v2682 = vunpack.c.0.s8 %v2681
      %v2683 = vlaneseq
      %v2684 = vshrl.u32 %v2683, 7
      %v2685 = vsub.s32 %v2682, %v2684
      %v2686 = vrot.slane %v2670, %v2685
      %v2688 = vunpack.c.l.s4 1966171168
      %v2689 = vunpack.c.0.s8 %v2688
      %v2690 = vlaneseq
      %v2691 = vshrl.u32 %v2690, 7
      %v2692 = vsub.s32 %v2689, %v2691
      %v2693 = vrot.slane %v2671, %v2692
      %v2695 = vunpack.c.l.s4 1966171168
      %v2696 = vunpack.c.0.s8 %v2695
      %v2697 = vlaneseq
      %v2698 = vshrl.u32 %v2697, 7
      %v2699 = vsub.s32 %v2696, %v2698
      %v2700 = vrot.slane %v2672, %v2699
      %v2701 = vcombine.low %v2679, %v2686
      %v2702 = vcombine.low %v2693, %v2700
      %v2704 = vunpack.c.l.s4 1966171168
      %v2705 = vunpack.c.0.s8 %v2704
      %v2706 = vlaneseq
      %v2707 = vshrl.u32 %v2706, 7
      %v2708 = vsub.s32 %v2705, %v2707
      %v2709 = vrot.slane %v2701, %v2708
      %v2711 = vunpack.c.l.s4 1966171168
      %v2712 = vunpack.c.0.s8 %v2711
      %v2713 = vlaneseq
      %v2714 = vshrl.u32 %v2713, 7
      %v2715 = vsub.s32 %v2712, %v2714
      %v2716 = vrot.slane %v2702, %v2715
      %v2717 = vcombine.low %v2709, %v2716
      %v2718 = vcombine.low %v1595, %v1599
      %v2719 = vcombine.low %v1603, %v1607
      %v2720 = vcombine.low %v1611, %v1615
      %v2721 = vcombine.low %v1619, %v1623
      %v2723 = vunpack.c.l.s4 1966171168
      %v2724 = vunpack.c.0.s8 %v2723
      %v2725 = vlaneseq
      %v2726 = vshrl.u32 %v2725, 7
      %v2727 = vsub.s32 %v2724, %v2726
      %v2728 = vrot.slane %v2718, %v2727
      %v2730 = vunpack.c.l.s4 1966171168
      %v2731 = vunpack.c.0.s8 %v2730
      %v2732 = vlaneseq
      %v2733 = vshrl.u32 %v2732, 7
      %v2734 = vsub.s32 %v2731, %v2733
      %v2735 = vrot.slane %v2719, %v2734
      %v2737 = vunpack.c.l.s4 1966171168
      %v2738 = vunpack.c.0.s8 %v2737
      %v2739 = vlaneseq
      %v2740 = vshrl.u32 %v2739, 7
      %v2741 = vsub.s32 %v2738, %v2740
      %v2742 = vrot.slane %v2720, %v2741
      %v2744 = vunpack.c.l.s4 1966171168
      %v2745 = vunpack.c.0.s8 %v2744
      %v2746 = vlaneseq
      %v2747 = vshrl.u32 %v2746, 7
      %v2748 = vsub.s32 %v2745, %v2747
      %v2749 = vrot.slane %v2721, %v2748
      %v2750 = vcombine.low %v2728, %v2735
      %v2751 = vcombine.low %v2742, %v2749
      %v2753 = vunpack.c.l.s4 1966171168
      %v2754 = vunpack.c.0.s8 %v2753
      %v2755 = vlaneseq
      %v2756 = vshrl.u32 %v2755, 7
      %v2757 = vsub.s32 %v2754, %v2756
      %v2758 = vrot.slane %v2750, %v2757
      %v2760 = vunpack.c.l.s4 1966171168
      %v2761 = vunpack.c.0.s8 %v2760
      %v2762 = vlaneseq
      %v2763 = vshrl.u32 %v2762, 7
      %v2764 = vsub.s32 %v2761, %v2763
      %v2765 = vrot.slane %v2751, %v2764
      %v2766 = vcombine.low %v2758, %v2765
      %v2767 = vcombine.low %v1627, %v1631
      %v2768 = vcombine.low %v1635, %v1639
      %v2769 = vcombine.low %v1643, %v1647
      %v2770 = vcombine.low %v1651, %v1655
      %v2772 = vunpack.c.l.s4 1966171168
      %v2773 = vunpack.c.0.s8 %v2772
      %v2774 = vlaneseq
      %v2775 = vshrl.u32 %v2774, 7
      %v2776 = vsub.s32 %v2773, %v2775
      %v2777 = vrot.slane %v2767, %v2776
      %v2779 = vunpack.c.l.s4 1966171168
      %v2780 = vunpack.c.0.s8 %v2779
      %v2781 = vlaneseq
      %v2782 = vshrl.u32 %v2781, 7
      %v2783 = vsub.s32 %v2780, %v2782
      %v2784 = vrot.slane %v2768, %v2783
      %v2786 = vunpack.c.l.s4 1966171168
      %v2787 = vunpack.c.0.s8 %v2786
      %v2788 = vlaneseq
      %v2789 = vshrl.u32 %v2788, 7
      %v2790 = vsub.s32 %v2787, %v2789
      %v2791 = vrot.slane %v2769, %v2790
      %v2793 = vunpack.c.l.s4 1966171168
      %v2794 = vunpack.c.0.s8 %v2793
      %v2795 = vlaneseq
      %v2796 = vshrl.u32 %v2795, 7
      %v2797 = vsub.s32 %v2794, %v2796
      %v2798 = vrot.slane %v2770, %v2797
      %v2799 = vcombine.low %v2777, %v2784
      %v2800 = vcombine.low %v2791, %v2798
      %v2802 = vunpack.c.l.s4 1966171168
      %v2803 = vunpack.c.0.s8 %v2802
      %v2804 = vlaneseq
      %v2805 = vshrl.u32 %v2804, 7
      %v2806 = vsub.s32 %v2803, %v2805
      %v2807 = vrot.slane %v2799, %v2806
      %v2809 = vunpack.c.l.s4 1966171168
      %v2810 = vunpack.c.0.s8 %v2809
      %v2811 = vlaneseq
      %v2812 = vshrl.u32 %v2811, 7
      %v2813 = vsub.s32 %v2810, %v2812
      %v2814 = vrot.slane %v2800, %v2813
      %v2815 = vcombine.low %v2807, %v2814
      %v2816 = vcombine.low %v1659, %v1663
      %v2817 = vcombine.low %v1667, %v1671
      %v2818 = vcombine.low %v1675, %v1679
      %v2819 = vcombine.low %v1683, %v1687
      %v2821 = vunpack.c.l.s4 1966171168
      %v2822 = vunpack.c.0.s8 %v2821
      %v2823 = vlaneseq
      %v2824 = vshrl.u32 %v2823, 7
      %v2825 = vsub.s32 %v2822, %v2824
      %v2826 = vrot.slane %v2816, %v2825
      %v2828 = vunpack.c.l.s4 1966171168
      %v2829 = vunpack.c.0.s8 %v2828
      %v2830 = vlaneseq
      %v2831 = vshrl.u32 %v2830, 7
      %v2832 = vsub.s32 %v2829, %v2831
      %v2833 = vrot.slane %v2817, %v2832
      %v2835 = vunpack.c.l.s4 1966171168
      %v2836 = vunpack.c.0.s8 %v2835
      %v2837 = vlaneseq
      %v2838 = vshrl.u32 %v2837, 7
      %v2839 = vsub.s32 %v2836, %v2838
      %v2840 = vrot.slane %v2818, %v2839
      %v2842 = vunpack.c.l.s4 1966171168
      %v2843 = vunpack.c.0.s8 %v2842
      %v2844 = vlaneseq
      %v2845 = vshrl.u32 %v2844, 7
      %v2846 = vsub.s32 %v2843, %v2845
      %v2847 = vrot.slane %v2819, %v2846
      %v2848 = vcombine.low %v2826, %v2833
      %v2849 = vcombine.low %v2840, %v2847
      %v2851 = vunpack.c.l.s4 1966171168
      %v2852 = vunpack.c.0.s8 %v2851
      %v2853 = vlaneseq
      %v2854 = vshrl.u32 %v2853, 7
      %v2855 = vsub.s32 %v2852, %v2854
      %v2856 = vrot.slane %v2848, %v2855
      %v2858 = vunpack.c.l.s4 1966171168
      %v2859 = vunpack.c.0.s8 %v2858
      %v2860 = vlaneseq
      %v2861 = vshrl.u32 %v2860, 7
      %v2862 = vsub.s32 %v2859, %v2861
      %v2863 = vrot.slane %v2849, %v2862
      %v2864 = vcombine.low %v2856, %v2863
      %v2865 = vcombine.low %v1691, %v1695
      %v2866 = vcombine.low %v1699, %v1703
      %v2867 = vcombine.low %v1707, %v1711
      %v2868 = vcombine.low %v1715, %v1719
      %v2870 = vunpack.c.l.s4 1966171168
      %v2871 = vunpack.c.0.s8 %v2870
      %v2872 = vlaneseq
      %v2873 = vshrl.u32 %v2872, 7
      %v2874 = vsub.s32 %v2871, %v2873
      %v2875 = vrot.slane %v2865, %v2874
      %v2877 = vunpack.c.l.s4 1966171168
      %v2878 = vunpack.c.0.s8 %v2877
      %v2879 = vlaneseq
      %v2880 = vshrl.u32 %v2879, 7
      %v2881 = vsub.s32 %v2878, %v2880
      %v2882 = vrot.slane %v2866, %v2881
      %v2884 = vunpack.c.l.s4 1966171168
      %v2885 = vunpack.c.0.s8 %v2884
      %v2886 = vlaneseq
      %v2887 = vshrl.u32 %v2886, 7
      %v2888 = vsub.s32 %v2885, %v2887
      %v2889 = vrot.slane %v2867, %v2888
      %v2891 = vunpack.c.l.s4 1966171168
      %v2892 = vunpack.c.0.s8 %v2891
      %v2893 = vlaneseq
      %v2894 = vshrl.u32 %v2893, 7
      %v2895 = vsub.s32 %v2892, %v2894
      %v2896 = vrot.slane %v2868, %v2895
      %v2897 = vcombine.low %v2875, %v2882
      %v2898 = vcombine.low %v2889, %v2896
      %v2900 = vunpack.c.l.s4 1966171168
      %v2901 = vunpack.c.0.s8 %v2900
      %v2902 = vlaneseq
      %v2903 = vshrl.u32 %v2902, 7
      %v2904 = vsub.s32 %v2901, %v2903
      %v2905 = vrot.slane %v2897, %v2904
      %v2907 = vunpack.c.l.s4 1966171168
      %v2908 = vunpack.c.0.s8 %v2907
      %v2909 = vlaneseq
      %v2910 = vshrl.u32 %v2909, 7
      %v2911 = vsub.s32 %v2908, %v2910
      %v2912 = vrot.slane %v2898, %v2911
      %v2913 = vcombine.low %v2905, %v2912
      %v2914 = vcombine.low %v1723, %v1727
      %v2915 = vcombine.low %v1731, %v1735
      %v2916 = vcombine.low %v1739, %v1743
      %v2917 = vcombine.low %v1747, %v1751
      %v2919 = vunpack.c.l.s4 1966171168
      %v2920 = vunpack.c.0.s8 %v2919
      %v2921 = vlaneseq
      %v2922 = vshrl.u32 %v2921, 7
      %v2923 = vsub.s32 %v2920, %v2922
      %v2924 = vrot.slane %v2914, %v2923
      %v2926 = vunpack.c.l.s4 1966171168
      %v2927 = vunpack.c.0.s8 %v2926
      %v2928 = vlaneseq
      %v2929 = vshrl.u32 %v2928, 7
      %v2930 = vsub.s32 %v2927, %v2929
      %v2931 = vrot.slane %v2915, %v2930
      %v2933 = vunpack.c.l.s4 1966171168
      %v2934 = vunpack.c.0.s8 %v2933
      %v2935 = vlaneseq
      %v2936 = vshrl.u32 %v2935, 7
      %v2937 = vsub.s32 %v2934, %v2936
      %v2938 = vrot.slane %v2916, %v2937
      %v2940 = vunpack.c.l.s4 1966171168
      %v2941 = vunpack.c.0.s8 %v2940
      %v2942 = vlaneseq
      %v2943 = vshrl.u32 %v2942, 7
      %v2944 = vsub.s32 %v2941, %v2943
      %v2945 = vrot.slane %v2917, %v2944
      %v2946 = vcombine.low %v2924, %v2931
      %v2947 = vcombine.low %v2938, %v2945
      %v2949 = vunpack.c.l.s4 1966171168
      %v2950 = vunpack.c.0.s8 %v2949
      %v2951 = vlaneseq
      %v2952 = vshrl.u32 %v2951, 7
      %v2953 = vsub.s32 %v2950, %v2952
      %v2954 = vrot.slane %v2946, %v2953
      %v2956 = vunpack.c.l.s4 1966171168
      %v2957 = vunpack.c.0.s8 %v2956
      %v2958 = vlaneseq
      %v2959 = vshrl.u32 %v2958, 7
      %v2960 = vsub.s32 %v2957, %v2959
      %v2961 = vrot.slane %v2947, %v2960
      %v2962 = vcombine.low %v2954, %v2961
      %v2963 = vcombine.low %v1755, %v1759
      %v2964 = vcombine.low %v1763, %v1767
      %v2965 = vcombine.low %v1771, %v1775
      %v2966 = vcombine.low %v1779, %v1783
      %v2968 = vunpack.c.l.s4 1966171168
      %v2969 = vunpack.c.0.s8 %v2968
      %v2970 = vlaneseq
      %v2971 = vshrl.u32 %v2970, 7
      %v2972 = vsub.s32 %v2969, %v2971
      %v2973 = vrot.slane %v2963, %v2972
      %v2975 = vunpack.c.l.s4 1966171168
      %v2976 = vunpack.c.0.s8 %v2975
      %v2977 = vlaneseq
      %v2978 = vshrl.u32 %v2977, 7
      %v2979 = vsub.s32 %v2976, %v2978
      %v2980 = vrot.slane %v2964, %v2979
      %v2982 = vunpack.c.l.s4 1966171168
      %v2983 = vunpack.c.0.s8 %v2982
      %v2984 = vlaneseq
      %v2985 = vshrl.u32 %v2984, 7
      %v2986 = vsub.s32 %v2983, %v2985
      %v2987 = vrot.slane %v2965, %v2986
      %v2989 = vunpack.c.l.s4 1966171168
      %v2990 = vunpack.c.0.s8 %v2989
      %v2991 = vlaneseq
      %v2992 = vshrl.u32 %v2991, 7
      %v2993 = vsub.s32 %v2990, %v2992
      %v2994 = vrot.slane %v2966, %v2993
      %v2995 = vcombine.low %v2973, %v2980
      %v2996 = vcombine.low %v2987, %v2994
      %v2998 = vunpack.c.l.s4 1966171168
      %v2999 = vunpack.c.0.s8 %v2998
      %v3000 = vlaneseq
      %v3001 = vshrl.u32 %v3000, 7
      %v3002 = vsub.s32 %v2999, %v3001
      %v3003 = vrot.slane %v2995, %v3002
      %v3005 = vunpack.c.l.s4 1966171168
      %v3006 = vunpack.c.0.s8 %v3005
      %v3007 = vlaneseq
      %v3008 = vshrl.u32 %v3007, 7
      %v3009 = vsub.s32 %v3006, %v3008
      %v3010 = vrot.slane %v2996, %v3009
      %v3011 = vcombine.low %v3003, %v3010
      %v3012 = vcombine.low %v1787, %v1791
      %v3013 = vcombine.low %v1795, %v1799
      %v3014 = vcombine.low %v1803, %v1807
      %v3015 = vcombine.low %v1811, %v1815
      %v3017 = vunpack.c.l.s4 1966171168
      %v3018 = vunpack.c.0.s8 %v3017
      %v3019 = vlaneseq
      %v3020 = vshrl.u32 %v3019, 7
      %v3021 = vsub.s32 %v3018, %v3020
      %v3022 = vrot.slane %v3012, %v3021
      %v3024 = vunpack.c.l.s4 1966171168
      %v3025 = vunpack.c.0.s8 %v3024
      %v3026 = vlaneseq
      %v3027 = vshrl.u32 %v3026, 7
      %v3028 = vsub.s32 %v3025, %v3027
      %v3029 = vrot.slane %v3013, %v3028
      %v3031 = vunpack.c.l.s4 1966171168
      %v3032 = vunpack.c.0.s8 %v3031
      %v3033 = vlaneseq
      %v3034 = vshrl.u32 %v3033, 7
      %v3035 = vsub.s32 %v3032, %v3034
      %v3036 = vrot.slane %v3014, %v3035
      %v3038 = vunpack.c.l.s4 1966171168
      %v3039 = vunpack.c.0.s8 %v3038
      %v3040 = vlaneseq
      %v3041 = vshrl.u32 %v3040, 7
      %v3042 = vsub.s32 %v3039, %v3041
      %v3043 = vrot.slane %v3015, %v3042
      %v3044 = vcombine.low %v3022, %v3029
      %v3045 = vcombine.low %v3036, %v3043
      %v3047 = vunpack.c.l.s4 1966171168
      %v3048 = vunpack.c.0.s8 %v3047
      %v3049 = vlaneseq
      %v3050 = vshrl.u32 %v3049, 7
      %v3051 = vsub.s32 %v3048, %v3050
      %v3052 = vrot.slane %v3044, %v3051
      %v3054 = vunpack.c.l.s4 1966171168
      %v3055 = vunpack.c.0.s8 %v3054
      %v3056 = vlaneseq
      %v3057 = vshrl.u32 %v3056, 7
      %v3058 = vsub.s32 %v3055, %v3057
      %v3059 = vrot.slane %v3045, %v3058
      %v3060 = vcombine.low %v3052, %v3059
      %v3061 = vcombine.low %v1819, %v1823
      %v3062 = vcombine.low %v1827, %v1831
      %v3063 = vcombine.low %v1835, %v1839
      %v3064 = vcombine.low %v1843, %v1847
      %v3066 = vunpack.c.l.s4 1966171168
      %v3067 = vunpack.c.0.s8 %v3066
      %v3068 = vlaneseq
      %v3069 = vshrl.u32 %v3068, 7
      %v3070 = vsub.s32 %v3067, %v3069
      %v3071 = vrot.slane %v3061, %v3070
      %v3073 = vunpack.c.l.s4 1966171168
      %v3074 = vunpack.c.0.s8 %v3073
      %v3075 = vlaneseq
      %v3076 = vshrl.u32 %v3075, 7
      %v3077 = vsub.s32 %v3074, %v3076
      %v3078 = vrot.slane %v3062, %v3077
      %v3080 = vunpack.c.l.s4 1966171168
      %v3081 = vunpack.c.0.s8 %v3080
      %v3082 = vlaneseq
      %v3083 = vshrl.u32 %v3082, 7
      %v3084 = vsub.s32 %v3081, %v3083
      %v3085 = vrot.slane %v3063, %v3084
      %v3087 = vunpack.c.l.s4 1966171168
      %v3088 = vunpack.c.0.s8 %v3087
      %v3089 = vlaneseq
      %v3090 = vshrl.u32 %v3089, 7
      %v3091 = vsub.s32 %v3088, %v3090
      %v3092 = vrot.slane %v3064, %v3091
      %v3093 = vcombine.low %v3071, %v3078
      %v3094 = vcombine.low %v3085, %v3092
      %v3096 = vunpack.c.l.s4 1966171168
      %v3097 = vunpack.c.0.s8 %v3096
      %v3098 = vlaneseq
      %v3099 = vshrl.u32 %v3098, 7
      %v3100 = vsub.s32 %v3097, %v3099
      %v3101 = vrot.slane %v3093, %v3100
      %v3103 = vunpack.c.l.s4 1966171168
      %v3104 = vunpack.c.0.s8 %v3103
      %v3105 = vlaneseq
      %v3106 = vshrl.u32 %v3105, 7
      %v3107 = vsub.s32 %v3104, %v3106
      %v3108 = vrot.slane %v3094, %v3107
      %v3109 = vcombine.low %v3101, %v3108
      %v3110 = vcombine.low %v1851, %v1855
      %v3111 = vcombine.low %v1859, %v1863
      %v3112 = vcombine.low %v1867, %v1871
      %v3113 = vcombine.low %v1875, %v1879
      %v3115 = vunpack.c.l.s4 1966171168
      %v3116 = vunpack.c.0.s8 %v3115
      %v3117 = vlaneseq
      %v3118 = vshrl.u32 %v3117, 7
      %v3119 = vsub.s32 %v3116, %v3118
      %v3120 = vrot.slane %v3110, %v3119
      %v3122 = vunpack.c.l.s4 1966171168
      %v3123 = vunpack.c.0.s8 %v3122
      %v3124 = vlaneseq
      %v3125 = vshrl.u32 %v3124, 7
      %v3126 = vsub.s32 %v3123, %v3125
      %v3127 = vrot.slane %v3111, %v3126
      %v3129 = vunpack.c.l.s4 1966171168
      %v3130 = vunpack.c.0.s8 %v3129
      %v3131 = vlaneseq
      %v3132 = vshrl.u32 %v3131, 7
      %v3133 = vsub.s32 %v3130, %v3132
      %v3134 = vrot.slane %v3112, %v3133
      %v3136 = vunpack.c.l.s4 1966171168
      %v3137 = vunpack.c.0.s8 %v3136
      %v3138 = vlaneseq
      %v3139 = vshrl.u32 %v3138, 7
      %v3140 = vsub.s32 %v3137, %v3139
      %v3141 = vrot.slane %v3113, %v3140
      %v3142 = vcombine.low %v3120, %v3127
      %v3143 = vcombine.low %v3134, %v3141
      %v3145 = vunpack.c.l.s4 1966171168
      %v3146 = vunpack.c.0.s8 %v3145
      %v3147 = vlaneseq
      %v3148 = vshrl.u32 %v3147, 7
      %v3149 = vsub.s32 %v3146, %v3148
      %v3150 = vrot.slane %v3142, %v3149
      %v3152 = vunpack.c.l.s4 1966171168
      %v3153 = vunpack.c.0.s8 %v3152
      %v3154 = vlaneseq
      %v3155 = vshrl.u32 %v3154, 7
      %v3156 = vsub.s32 %v3153, %v3155
      %v3157 = vrot.slane %v3143, %v3156
      %v3158 = vcombine.low %v3150, %v3157
      %v3159 = vcombine.low %v1883, %v1887
      %v3160 = vcombine.low %v1891, %v1895
      %v3161 = vcombine.low %v1899, %v1903
      %v3162 = vcombine.low %v1907, %v1911
      %v3164 = vunpack.c.l.s4 1966171168
      %v3165 = vunpack.c.0.s8 %v3164
      %v3166 = vlaneseq
      %v3167 = vshrl.u32 %v3166, 7
      %v3168 = vsub.s32 %v3165, %v3167
      %v3169 = vrot.slane %v3159, %v3168
      %v3171 = vunpack.c.l.s4 1966171168
      %v3172 = vunpack.c.0.s8 %v3171
      %v3173 = vlaneseq
      %v3174 = vshrl.u32 %v3173, 7
      %v3175 = vsub.s32 %v3172, %v3174
      %v3176 = vrot.slane %v3160, %v3175
      %v3178 = vunpack.c.l.s4 1966171168
      %v3179 = vunpack.c.0.s8 %v3178
      %v3180 = vlaneseq
      %v3181 = vshrl.u32 %v3180, 7
      %v3182 = vsub.s32 %v3179, %v3181
      %v3183 = vrot.slane %v3161, %v3182
      %v3185 = vunpack.c.l.s4 1966171168
      %v3186 = vunpack.c.0.s8 %v3185
      %v3187 = vlaneseq
      %v3188 = vshrl.u32 %v3187, 7
      %v3189 = vsub.s32 %v3186, %v3188
      %v3190 = vrot.slane %v3162, %v3189
      %v3191 = vcombine.low %v3169, %v3176
      %v3192 = vcombine.low %v3183, %v3190
      %v3194 = vunpack.c.l.s4 1966171168
      %v3195 = vunpack.c.0.s8 %v3194
      %v3196 = vlaneseq
      %v3197 = vshrl.u32 %v3196, 7
      %v3198 = vsub.s32 %v3195, %v3197
      %v3199 = vrot.slane %v3191, %v3198
      %v3201 = vunpack.c.l.s4 1966171168
      %v3202 = vunpack.c.0.s8 %v3201
      %v3203 = vlaneseq
      %v3204 = vshrl.u32 %v3203, 7
      %v3205 = vsub.s32 %v3202, %v3204
      %v3206 = vrot.slane %v3192, %v3205
      %v3207 = vcombine.low %v3199, %v3206
      %v3208 = vcombine.low %v1915, %v1919
      %v3209 = vcombine.low %v1923, %v1927
      %v3210 = vcombine.low %v1931, %v1935
      %v3211 = vcombine.low %v1939, %v1943
      %v3213 = vunpack.c.l.s4 1966171168
      %v3214 = vunpack.c.0.s8 %v3213
      %v3215 = vlaneseq
      %v3216 = vshrl.u32 %v3215, 7
      %v3217 = vsub.s32 %v3214, %v3216
      %v3218 = vrot.slane %v3208, %v3217
      %v3220 = vunpack.c.l.s4 1966171168
      %v3221 = vunpack.c.0.s8 %v3220
      %v3222 = vlaneseq
      %v3223 = vshrl.u32 %v3222, 7
      %v3224 = vsub.s32 %v3221, %v3223
      %v3225 = vrot.slane %v3209, %v3224
      %v3227 = vunpack.c.l.s4 1966171168
      %v3228 = vunpack.c.0.s8 %v3227
      %v3229 = vlaneseq
      %v3230 = vshrl.u32 %v3229, 7
      %v3231 = vsub.s32 %v3228, %v3230
      %v3232 = vrot.slane %v3210, %v3231
      %v3234 = vunpack.c.l.s4 1966171168
      %v3235 = vunpack.c.0.s8 %v3234
      %v3236 = vlaneseq
      %v3237 = vshrl.u32 %v3236, 7
      %v3238 = vsub.s32 %v3235, %v3237
      %v3239 = vrot.slane %v3211, %v3238
      %v3240 = vcombine.low %v3218, %v3225
      %v3241 = vcombine.low %v3232, %v3239
      %v3243 = vunpack.c.l.s4 1966171168
      %v3244 = vunpack.c.0.s8 %v3243
      %v3245 = vlaneseq
      %v3246 = vshrl.u32 %v3245, 7
      %v3247 = vsub.s32 %v3244, %v3246
      %v3248 = vrot.slane %v3240, %v3247
      %v3250 = vunpack.c.l.s4 1966171168
      %v3251 = vunpack.c.0.s8 %v3250
      %v3252 = vlaneseq
      %v3253 = vshrl.u32 %v3252, 7
      %v3254 = vsub.s32 %v3251, %v3253
      %v3255 = vrot.slane %v3241, %v3254
      %v3256 = vcombine.low %v3248, %v3255
      %v3257 = vcombine.low %v1947, %v1951
      %v3258 = vcombine.low %v1955, %v1959
      %v3259 = vcombine.low %v1963, %v1967
      %v3260 = vcombine.low %v1971, %v1975
      %v3262 = vunpack.c.l.s4 1966171168
      %v3263 = vunpack.c.0.s8 %v3262
      %v3264 = vlaneseq
      %v3265 = vshrl.u32 %v3264, 7
      %v3266 = vsub.s32 %v3263, %v3265
      %v3267 = vrot.slane %v3257, %v3266
      %v3269 = vunpack.c.l.s4 1966171168
      %v3270 = vunpack.c.0.s8 %v3269
      %v3271 = vlaneseq
      %v3272 = vshrl.u32 %v3271, 7
      %v3273 = vsub.s32 %v3270, %v3272
      %v3274 = vrot.slane %v3258, %v3273
      %v3276 = vunpack.c.l.s4 1966171168
      %v3277 = vunpack.c.0.s8 %v3276
      %v3278 = vlaneseq
      %v3279 = vshrl.u32 %v3278, 7
      %v3280 = vsub.s32 %v3277, %v3279
      %v3281 = vrot.slane %v3259, %v3280
      %v3283 = vunpack.c.l.s4 1966171168
      %v3284 = vunpack.c.0.s8 %v3283
      %v3285 = vlaneseq
      %v3286 = vshrl.u32 %v3285, 7
      %v3287 = vsub.s32 %v3284, %v3286
      %v3288 = vrot.slane %v3260, %v3287
      %v3289 = vcombine.low %v3267, %v3274
      %v3290 = vcombine.low %v3281, %v3288
      %v3292 = vunpack.c.l.s4 1966171168
      %v3293 = vunpack.c.0.s8 %v3292
      %v3294 = vlaneseq
      %v3295 = vshrl.u32 %v3294, 7
      %v3296 = vsub.s32 %v3293, %v3295
      %v3297 = vrot.slane %v3289, %v3296
      %v3299 = vunpack.c.l.s4 1966171168
      %v3300 = vunpack.c.0.s8 %v3299
      %v3301 = vlaneseq
      %v3302 = vshrl.u32 %v3301, 7
      %v3303 = vsub.s32 %v3300, %v3302
      %v3304 = vrot.slane %v3290, %v3303
      %v3305 = vcombine.low %v3297, %v3304
      %v3306 = vcombine.low %v1979, %v1983
      %v3307 = vcombine.low %v1987, %v1991
      %v3308 = vcombine.low %v1995, %v1999
      %v3309 = vcombine.low %v2003, %v2007
      %v3311 = vunpack.c.l.s4 1966171168
      %v3312 = vunpack.c.0.s8 %v3311
      %v3313 = vlaneseq
      %v3314 = vshrl.u32 %v3313, 7
      %v3315 = vsub.s32 %v3312, %v3314
      %v3316 = vrot.slane %v3306, %v3315
      %v3318 = vunpack.c.l.s4 1966171168
      %v3319 = vunpack.c.0.s8 %v3318
      %v3320 = vlaneseq
      %v3321 = vshrl.u32 %v3320, 7
      %v3322 = vsub.s32 %v3319, %v3321
      %v3323 = vrot.slane %v3307, %v3322
      %v3325 = vunpack.c.l.s4 1966171168
      %v3326 = vunpack.c.0.s8 %v3325
      %v3327 = vlaneseq
      %v3328 = vshrl.u32 %v3327, 7
      %v3329 = vsub.s32 %v3326, %v3328
      %v3330 = vrot.slane %v3308, %v3329
      %v3332 = vunpack.c.l.s4 1966171168
      %v3333 = vunpack.c.0.s8 %v3332
      %v3334 = vlaneseq
      %v3335 = vshrl.u32 %v3334, 7
      %v3336 = vsub.s32 %v3333, %v3335
      %v3337 = vrot.slane %v3309, %v3336
      %v3338 = vcombine.low %v3316, %v3323
      %v3339 = vcombine.low %v3330, %v3337
      %v3341 = vunpack.c.l.s4 1966171168
      %v3342 = vunpack.c.0.s8 %v3341
      %v3343 = vlaneseq
      %v3344 = vshrl.u32 %v3343, 7
      %v3345 = vsub.s32 %v3342, %v3344
      %v3346 = vrot.slane %v3338, %v3345
      %v3348 = vunpack.c.l.s4 1966171168
      %v3349 = vunpack.c.0.s8 %v3348
      %v3350 = vlaneseq
      %v3351 = vshrl.u32 %v3350, 7
      %v3352 = vsub.s32 %v3349, %v3351
      %v3353 = vrot.slane %v3339, %v3352
      %v3354 = vcombine.low %v3346, %v3353
      %v3355 = vcombine.low %v2011, %v2015
      %v3356 = vcombine.low %v2019, %v2023
      %v3357 = vcombine.low %v2027, %v2031
      %v3358 = vcombine.low %v2035, %v2039
      %v3360 = vunpack.c.l.s4 1966171168
      %v3361 = vunpack.c.0.s8 %v3360
      %v3362 = vlaneseq
      %v3363 = vshrl.u32 %v3362, 7
      %v3364 = vsub.s32 %v3361, %v3363
      %v3365 = vrot.slane %v3355, %v3364
      %v3367 = vunpack.c.l.s4 1966171168
      %v3368 = vunpack.c.0.s8 %v3367
      %v3369 = vlaneseq
      %v3370 = vshrl.u32 %v3369, 7
      %v3371 = vsub.s32 %v3368, %v3370
      %v3372 = vrot.slane %v3356, %v3371
      %v3374 = vunpack.c.l.s4 1966171168
      %v3375 = vunpack.c.0.s8 %v3374
      %v3376 = vlaneseq
      %v3377 = vshrl.u32 %v3376, 7
      %v3378 = vsub.s32 %v3375, %v3377
      %v3379 = vrot.slane %v3357, %v3378
      %v3381 = vunpack.c.l.s4 1966171168
      %v3382 = vunpack.c.0.s8 %v3381
      %v3383 = vlaneseq
      %v3384 = vshrl.u32 %v3383, 7
      %v3385 = vsub.s32 %v3382, %v3384
      %v3386 = vrot.slane %v3358, %v3385
      %v3387 = vcombine.low %v3365, %v3372
      %v3388 = vcombine.low %v3379, %v3386
      %v3390 = vunpack.c.l.s4 1966171168
      %v3391 = vunpack.c.0.s8 %v3390
      %v3392 = vlaneseq
      %v3393 = vshrl.u32 %v3392, 7
      %v3394 = vsub.s32 %v3391, %v3393
      %v3395 = vrot.slane %v3387, %v3394
      %v3397 = vunpack.c.l.s4 1966171168
      %v3398 = vunpack.c.0.s8 %v3397
      %v3399 = vlaneseq
      %v3400 = vshrl.u32 %v3399, 7
      %v3401 = vsub.s32 %v3398, %v3400
      %v3402 = vrot.slane %v3388, %v3401
      %v3403 = vcombine.low %v3395, %v3402
      %v3404 = vcombine.low %v2043, %v2047
      %v3405 = vcombine.low %v2051, %v2055
      %v3406 = vcombine.low %v2059, %v2063
      %v3407 = vcombine.low %v2067, %v2071
      %v3409 = vunpack.c.l.s4 1966171168
      %v3410 = vunpack.c.0.s8 %v3409
      %v3411 = vlaneseq
      %v3412 = vshrl.u32 %v3411, 7
      %v3413 = vsub.s32 %v3410, %v3412
      %v3414 = vrot.slane %v3404, %v3413
      %v3416 = vunpack.c.l.s4 1966171168
      %v3417 = vunpack.c.0.s8 %v3416
      %v3418 = vlaneseq
      %v3419 = vshrl.u32 %v3418, 7
      %v3420 = vsub.s32 %v3417, %v3419
      %v3421 = vrot.slane %v3405, %v3420
      %v3423 = vunpack.c.l.s4 1966171168
      %v3424 = vunpack.c.0.s8 %v3423
      %v3425 = vlaneseq
      %v3426 = vshrl.u32 %v3425, 7
      %v3427 = vsub.s32 %v3424, %v3426
      %v3428 = vrot.slane %v3406, %v3427
      %v3430 = vunpack.c.l.s4 1966171168
      %v3431 = vunpack.c.0.s8 %v3430
      %v3432 = vlaneseq
      %v3433 = vshrl.u32 %v3432, 7
      %v3434 = vsub.s32 %v3431, %v3433
      %v3435 = vrot.slane %v3407, %v3434
      %v3436 = vcombine.low %v3414, %v3421
      %v3437 = vcombine.low %v3428, %v3435
      %v3439 = vunpack.c.l.s4 1966171168
      %v3440 = vunpack.c.0.s8 %v3439
      %v3441 = vlaneseq
      %v3442 = vshrl.u32 %v3441, 7
      %v3443 = vsub.s32 %v3440, %v3442
      %v3444 = vrot.slane %v3436, %v3443
      %v3446 = vunpack.c.l.s4 1966171168
      %v3447 = vunpack.c.0.s8 %v3446
      %v3448 = vlaneseq
      %v3449 = vshrl.u32 %v3448, 7
      %v3450 = vsub.s32 %v3447, %v3449
      %v3451 = vrot.slane %v3437, %v3450
      %v3452 = vcombine.low %v3444, %v3451
      %v3453 = vcombine.low %v2075, %v2079
      %v3454 = vcombine.low %v2083, %v2087
      %v3455 = vcombine.low %v2091, %v2095
      %v3456 = vcombine.low %v2099, %v2103
      %v3458 = vunpack.c.l.s4 1966171168
      %v3459 = vunpack.c.0.s8 %v3458
      %v3460 = vlaneseq
      %v3461 = vshrl.u32 %v3460, 7
      %v3462 = vsub.s32 %v3459, %v3461
      %v3463 = vrot.slane %v3453, %v3462
      %v3465 = vunpack.c.l.s4 1966171168
      %v3466 = vunpack.c.0.s8 %v3465
      %v3467 = vlaneseq
      %v3468 = vshrl.u32 %v3467, 7
      %v3469 = vsub.s32 %v3466, %v3468
      %v3470 = vrot.slane %v3454, %v3469
      %v3472 = vunpack.c.l.s4 1966171168
      %v3473 = vunpack.c.0.s8 %v3472
      %v3474 = vlaneseq
      %v3475 = vshrl.u32 %v3474, 7
      %v3476 = vsub.s32 %v3473, %v3475
      %v3477 = vrot.slane %v3455, %v3476
      %v3479 = vunpack.c.l.s4 1966171168
      %v3480 = vunpack.c.0.s8 %v3479
      %v3481 = vlaneseq
      %v3482 = vshrl.u32 %v3481, 7
      %v3483 = vsub.s32 %v3480, %v3482
      %v3484 = vrot.slane %v3456, %v3483
      %v3485 = vcombine.low %v3463, %v3470
      %v3486 = vcombine.low %v3477, %v3484
      %v3488 = vunpack.c.l.s4 1966171168
      %v3489 = vunpack.c.0.s8 %v3488
      %v3490 = vlaneseq
      %v3491 = vshrl.u32 %v3490, 7
      %v3492 = vsub.s32 %v3489, %v3491
      %v3493 = vrot.slane %v3485, %v3492
      %v3495 = vunpack.c.l.s4 1966171168
      %v3496 = vunpack.c.0.s8 %v3495
      %v3497 = vlaneseq
      %v3498 = vshrl.u32 %v3497, 7
      %v3499 = vsub.s32 %v3496, %v3498
      %v3500 = vrot.slane %v3486, %v3499
      %v3501 = vcombine.low %v3493, %v3500
      %v3502 = vcombine.low %v2107, %v2111
      %v3503 = vcombine.low %v2115, %v2119
      %v3504 = vcombine.low %v2123, %v2127
      %v3505 = vcombine.low %v2131, %v2135
      %v3507 = vunpack.c.l.s4 1966171168
      %v3508 = vunpack.c.0.s8 %v3507
      %v3509 = vlaneseq
      %v3510 = vshrl.u32 %v3509, 7
      %v3511 = vsub.s32 %v3508, %v3510
      %v3512 = vrot.slane %v3502, %v3511
      %v3514 = vunpack.c.l.s4 1966171168
      %v3515 = vunpack.c.0.s8 %v3514
      %v3516 = vlaneseq
      %v3517 = vshrl.u32 %v3516, 7
      %v3518 = vsub.s32 %v3515, %v3517
      %v3519 = vrot.slane %v3503, %v3518
      %v3521 = vunpack.c.l.s4 1966171168
      %v3522 = vunpack.c.0.s8 %v3521
      %v3523 = vlaneseq
      %v3524 = vshrl.u32 %v3523, 7
      %v3525 = vsub.s32 %v3522, %v3524
      %v3526 = vrot.slane %v3504, %v3525
      %v3528 = vunpack.c.l.s4 1966171168
      %v3529 = vunpack.c.0.s8 %v3528
      %v3530 = vlaneseq
      %v3531 = vshrl.u32 %v3530, 7
      %v3532 = vsub.s32 %v3529, %v3531
      %v3533 = vrot.slane %v3505, %v3532
      %v3534 = vcombine.low %v3512, %v3519
      %v3535 = vcombine.low %v3526, %v3533
      %v3537 = vunpack.c.l.s4 1966171168
      %v3538 = vunpack.c.0.s8 %v3537
      %v3539 = vlaneseq
      %v3540 = vshrl.u32 %v3539, 7
      %v3541 = vsub.s32 %v3538, %v3540
      %v3542 = vrot.slane %v3534, %v3541
      %v3544 = vunpack.c.l.s4 1966171168
      %v3545 = vunpack.c.0.s8 %v3544
      %v3546 = vlaneseq
      %v3547 = vshrl.u32 %v3546, 7
      %v3548 = vsub.s32 %v3545, %v3547
      %v3549 = vrot.slane %v3535, %v3548
      %v3550 = vcombine.low %v3542, %v3549
      %v3551 = vcombine.low %v2139, %v2143
      %v3552 = vcombine.low %v2147, %v2151
      %v3553 = vcombine.low %v2155, %v2159
      %v3554 = vcombine.low %v2163, %v2167
      %v3556 = vunpack.c.l.s4 1966171168
      %v3557 = vunpack.c.0.s8 %v3556
      %v3558 = vlaneseq
      %v3559 = vshrl.u32 %v3558, 7
      %v3560 = vsub.s32 %v3557, %v3559
      %v3561 = vrot.slane %v3551, %v3560
      %v3563 = vunpack.c.l.s4 1966171168
      %v3564 = vunpack.c.0.s8 %v3563
      %v3565 = vlaneseq
      %v3566 = vshrl.u32 %v3565, 7
      %v3567 = vsub.s32 %v3564, %v3566
      %v3568 = vrot.slane %v3552, %v3567
      %v3570 = vunpack.c.l.s4 1966171168
      %v3571 = vunpack.c.0.s8 %v3570
      %v3572 = vlaneseq
      %v3573 = vshrl.u32 %v3572, 7
      %v3574 = vsub.s32 %v3571, %v3573
      %v3575 = vrot.slane %v3553, %v3574
      %v3577 = vunpack.c.l.s4 1966171168
      %v3578 = vunpack.c.0.s8 %v3577
      %v3579 = vlaneseq
      %v3580 = vshrl.u32 %v3579, 7
      %v3581 = vsub.s32 %v3578, %v3580
      %v3582 = vrot.slane %v3554, %v3581
      %v3583 = vcombine.low %v3561, %v3568
      %v3584 = vcombine.low %v3575, %v3582
      %v3586 = vunpack.c.l.s4 1966171168
      %v3587 = vunpack.c.0.s8 %v3586
      %v3588 = vlaneseq
      %v3589 = vshrl.u32 %v3588, 7
      %v3590 = vsub.s32 %v3587, %v3589
      %v3591 = vrot.slane %v3583, %v3590
      %v3593 = vunpack.c.l.s4 1966171168
      %v3594 = vunpack.c.0.s8 %v3593
      %v3595 = vlaneseq
      %v3596 = vshrl.u32 %v3595, 7
      %v3597 = vsub.s32 %v3594, %v3596
      %v3598 = vrot.slane %v3584, %v3597
      %v3599 = vcombine.low %v3591, %v3598
      %v3600 = vcombine.low %v2171, %v2175
      %v3601 = vcombine.low %v2179, %v2183
      %v3602 = vcombine.low %v2187, %v2191
      %v3603 = vcombine.low %v2195, %v2199
      %v3605 = vunpack.c.l.s4 1966171168
      %v3606 = vunpack.c.0.s8 %v3605
      %v3607 = vlaneseq
      %v3608 = vshrl.u32 %v3607, 7
      %v3609 = vsub.s32 %v3606, %v3608
      %v3610 = vrot.slane %v3600, %v3609
      %v3612 = vunpack.c.l.s4 1966171168
      %v3613 = vunpack.c.0.s8 %v3612
      %v3614 = vlaneseq
      %v3615 = vshrl.u32 %v3614, 7
      %v3616 = vsub.s32 %v3613, %v3615
      %v3617 = vrot.slane %v3601, %v3616
      %v3619 = vunpack.c.l.s4 1966171168
      %v3620 = vunpack.c.0.s8 %v3619
      %v3621 = vlaneseq
      %v3622 = vshrl.u32 %v3621, 7
      %v3623 = vsub.s32 %v3620, %v3622
      %v3624 = vrot.slane %v3602, %v3623
      %v3626 = vunpack.c.l.s4 1966171168
      %v3627 = vunpack.c.0.s8 %v3626
      %v3628 = vlaneseq
      %v3629 = vshrl.u32 %v3628, 7
      %v3630 = vsub.s32 %v3627, %v3629
      %v3631 = vrot.slane %v3603, %v3630
      %v3632 = vcombine.low %v3610, %v3617
      %v3633 = vcombine.low %v3624, %v3631
      %v3635 = vunpack.c.l.s4 1966171168
      %v3636 = vunpack.c.0.s8 %v3635
      %v3637 = vlaneseq
      %v3638 = vshrl.u32 %v3637, 7
      %v3639 = vsub.s32 %v3636, %v3638
      %v3640 = vrot.slane %v3632, %v3639
      %v3642 = vunpack.c.l.s4 1966171168
      %v3643 = vunpack.c.0.s8 %v3642
      %v3644 = vlaneseq
      %v3645 = vshrl.u32 %v3644, 7
      %v3646 = vsub.s32 %v3643, %v3645
      %v3647 = vrot.slane %v3633, %v3646
      %v3648 = vcombine.low %v3640, %v3647
      %v3649 = vcombine.low %v2203, %v2207
      %v3650 = vcombine.low %v2211, %v2215
      %v3651 = vcombine.low %v2219, %v2223
      %v3652 = vcombine.low %v2227, %v2231
      %v3654 = vunpack.c.l.s4 1966171168
      %v3655 = vunpack.c.0.s8 %v3654
      %v3656 = vlaneseq
      %v3657 = vshrl.u32 %v3656, 7
      %v3658 = vsub.s32 %v3655, %v3657
      %v3659 = vrot.slane %v3649, %v3658
      %v3661 = vunpack.c.l.s4 1966171168
      %v3662 = vunpack.c.0.s8 %v3661
      %v3663 = vlaneseq
      %v3664 = vshrl.u32 %v3663, 7
      %v3665 = vsub.s32 %v3662, %v3664
      %v3666 = vrot.slane %v3650, %v3665
      %v3668 = vunpack.c.l.s4 1966171168
      %v3669 = vunpack.c.0.s8 %v3668
      %v3670 = vlaneseq
      %v3671 = vshrl.u32 %v3670, 7
      %v3672 = vsub.s32 %v3669, %v3671
      %v3673 = vrot.slane %v3651, %v3672
      %v3675 = vunpack.c.l.s4 1966171168
      %v3676 = vunpack.c.0.s8 %v3675
      %v3677 = vlaneseq
      %v3678 = vshrl.u32 %v3677, 7
      %v3679 = vsub.s32 %v3676, %v3678
      %v3680 = vrot.slane %v3652, %v3679
      %v3681 = vcombine.low %v3659, %v3666
      %v3682 = vcombine.low %v3673, %v3680
      %v3684 = vunpack.c.l.s4 1966171168
      %v3685 = vunpack.c.0.s8 %v3684
      %v3686 = vlaneseq
      %v3687 = vshrl.u32 %v3686, 7
      %v3688 = vsub.s32 %v3685, %v3687
      %v3689 = vrot.slane %v3681, %v3688
      %v3691 = vunpack.c.l.s4 1966171168
      %v3692 = vunpack.c.0.s8 %v3691
      %v3693 = vlaneseq
      %v3694 = vshrl.u32 %v3693, 7
      %v3695 = vsub.s32 %v3692, %v3694
      %v3696 = vrot.slane %v3682, %v3695
      %v3697 = vcombine.low %v3689, %v3696
      %v3698 = vcombine.low %v2235, %v2239
      %v3699 = vcombine.low %v2243, %v2247
      %v3700 = vcombine.low %v2251, %v2255
      %v3701 = vcombine.low %v2259, %v2263
      %v3703 = vunpack.c.l.s4 1966171168
      %v3704 = vunpack.c.0.s8 %v3703
      %v3705 = vlaneseq
      %v3706 = vshrl.u32 %v3705, 7
      %v3707 = vsub.s32 %v3704, %v3706
      %v3708 = vrot.slane %v3698, %v3707
      %v3710 = vunpack.c.l.s4 1966171168
      %v3711 = vunpack.c.0.s8 %v3710
      %v3712 = vlaneseq
      %v3713 = vshrl.u32 %v3712, 7
      %v3714 = vsub.s32 %v3711, %v3713
      %v3715 = vrot.slane %v3699, %v3714
      %v3717 = vunpack.c.l.s4 1966171168
      %v3718 = vunpack.c.0.s8 %v3717
      %v3719 = vlaneseq
      %v3720 = vshrl.u32 %v3719, 7
      %v3721 = vsub.s32 %v3718, %v3720
      %v3722 = vrot.slane %v3700, %v3721
      %v3724 = vunpack.c.l.s4 1966171168
      %v3725 = vunpack.c.0.s8 %v3724
      %v3726 = vlaneseq
      %v3727 = vshrl.u32 %v3726, 7
      %v3728 = vsub.s32 %v3725, %v3727
      %v3729 = vrot.slane %v3701, %v3728
      %v3730 = vcombine.low %v3708, %v3715
      %v3731 = vcombine.low %v3722, %v3729
      %v3733 = vunpack.c.l.s4 1966171168
      %v3734 = vunpack.c.0.s8 %v3733
      %v3735 = vlaneseq
      %v3736 = vshrl.u32 %v3735, 7
      %v3737 = vsub.s32 %v3734, %v3736
      %v3738 = vrot.slane %v3730, %v3737
      %v3740 = vunpack.c.l.s4 1966171168
      %v3741 = vunpack.c.0.s8 %v3740
      %v3742 = vlaneseq
      %v3743 = vshrl.u32 %v3742, 7
      %v3744 = vsub.s32 %v3741, %v3743
      %v3745 = vrot.slane %v3731, %v3744
      %v3746 = vcombine.low %v3738, %v3745
      %v3747 = vcombine.low %v2267, %v2271
      %v3748 = vcombine.low %v2275, %v2279
      %v3749 = vcombine.low %v2283, %v2287
      %v3750 = vcombine.low %v2291, %v2295
      %v3752 = vunpack.c.l.s4 1966171168
      %v3753 = vunpack.c.0.s8 %v3752
      %v3754 = vlaneseq
      %v3755 = vshrl.u32 %v3754, 7
      %v3756 = vsub.s32 %v3753, %v3755
      %v3757 = vrot.slane %v3747, %v3756
      %v3759 = vunpack.c.l.s4 1966171168
      %v3760 = vunpack.c.0.s8 %v3759
      %v3761 = vlaneseq
      %v3762 = vshrl.u32 %v3761, 7
      %v3763 = vsub.s32 %v3760, %v3762
      %v3764 = vrot.slane %v3748, %v3763
      %v3766 = vunpack.c.l.s4 1966171168
      %v3767 = vunpack.c.0.s8 %v3766
      %v3768 = vlaneseq
      %v3769 = vshrl.u32 %v3768, 7
      %v3770 = vsub.s32 %v3767, %v3769
      %v3771 = vrot.slane %v3749, %v3770
      %v3773 = vunpack.c.l.s4 1966171168
      %v3774 = vunpack.c.0.s8 %v3773
      %v3775 = vlaneseq
      %v3776 = vshrl.u32 %v3775, 7
      %v3777 = vsub.s32 %v3774, %v3776
      %v3778 = vrot.slane %v3750, %v3777
      %v3779 = vcombine.low %v3757, %v3764
      %v3780 = vcombine.low %v3771, %v3778
      %v3782 = vunpack.c.l.s4 1966171168
      %v3783 = vunpack.c.0.s8 %v3782
      %v3784 = vlaneseq
      %v3785 = vshrl.u32 %v3784, 7
      %v3786 = vsub.s32 %v3783, %v3785
      %v3787 = vrot.slane %v3779, %v3786
      %v3789 = vunpack.c.l.s4 1966171168
      %v3790 = vunpack.c.0.s8 %v3789
      %v3791 = vlaneseq
      %v3792 = vshrl.u32 %v3791, 7
      %v3793 = vsub.s32 %v3790, %v3792
      %v3794 = vrot.slane %v3780, %v3793
      %v3795 = vcombine.low %v3787, %v3794
      %v3796 = vcombine.low %v2299, %v2303
      %v3797 = vcombine.low %v2307, %v2311
      %v3798 = vcombine.low %v2315, %v2319
      %v3799 = vcombine.low %v2323, %v2327
      %v3801 = vunpack.c.l.s4 1966171168
      %v3802 = vunpack.c.0.s8 %v3801
      %v3803 = vlaneseq
      %v3804 = vshrl.u32 %v3803, 7
      %v3805 = vsub.s32 %v3802, %v3804
      %v3806 = vrot.slane %v3796, %v3805
      %v3808 = vunpack.c.l.s4 1966171168
      %v3809 = vunpack.c.0.s8 %v3808
      %v3810 = vlaneseq
      %v3811 = vshrl.u32 %v3810, 7
      %v3812 = vsub.s32 %v3809, %v3811
      %v3813 = vrot.slane %v3797, %v3812
      %v3815 = vunpack.c.l.s4 1966171168
      %v3816 = vunpack.c.0.s8 %v3815
      %v3817 = vlaneseq
      %v3818 = vshrl.u32 %v3817, 7
      %v3819 = vsub.s32 %v3816, %v3818
      %v3820 = vrot.slane %v3798, %v3819
      %v3822 = vunpack.c.l.s4 1966171168
      %v3823 = vunpack.c.0.s8 %v3822
      %v3824 = vlaneseq
      %v3825 = vshrl.u32 %v3824, 7
      %v3826 = vsub.s32 %v3823, %v3825
      %v3827 = vrot.slane %v3799, %v3826
      %v3828 = vcombine.low %v3806, %v3813
      %v3829 = vcombine.low %v3820, %v3827
      %v3831 = vunpack.c.l.s4 1966171168
      %v3832 = vunpack.c.0.s8 %v3831
      %v3833 = vlaneseq
      %v3834 = vshrl.u32 %v3833, 7
      %v3835 = vsub.s32 %v3832, %v3834
      %v3836 = vrot.slane %v3828, %v3835
      %v3838 = vunpack.c.l.s4 1966171168
      %v3839 = vunpack.c.0.s8 %v3838
      %v3840 = vlaneseq
      %v3841 = vshrl.u32 %v3840, 7
      %v3842 = vsub.s32 %v3839, %v3841
      %v3843 = vrot.slane %v3829, %v3842
      %v3844 = vcombine.low %v3836, %v3843
      %v3845 = vcombine.low %v2331, %v2335
      %v3846 = vcombine.low %v2339, %v2343
      %v3847 = vcombine.low %v2347, %v2351
      %v3848 = vcombine.low %v2355, %v2359
      %v3850 = vunpack.c.l.s4 1966171168
      %v3851 = vunpack.c.0.s8 %v3850
      %v3852 = vlaneseq
      %v3853 = vshrl.u32 %v3852, 7
      %v3854 = vsub.s32 %v3851, %v3853
      %v3855 = vrot.slane %v3845, %v3854
      %v3857 = vunpack.c.l.s4 1966171168
      %v3858 = vunpack.c.0.s8 %v3857
      %v3859 = vlaneseq
      %v3860 = vshrl.u32 %v3859, 7
      %v3861 = vsub.s32 %v3858, %v3860
      %v3862 = vrot.slane %v3846, %v3861
      %v3864 = vunpack.c.l.s4 1966171168
      %v3865 = vunpack.c.0.s8 %v3864
      %v3866 = vlaneseq
      %v3867 = vshrl.u32 %v3866, 7
      %v3868 = vsub.s32 %v3865, %v3867
      %v3869 = vrot.slane %v3847, %v3868
      %v3871 = vunpack.c.l.s4 1966171168
      %v3872 = vunpack.c.0.s8 %v3871
      %v3873 = vlaneseq
      %v3874 = vshrl.u32 %v3873, 7
      %v3875 = vsub.s32 %v3872, %v3874
      %v3876 = vrot.slane %v3848, %v3875
      %v3877 = vcombine.low %v3855, %v3862
      %v3878 = vcombine.low %v3869, %v3876
      %v3880 = vunpack.c.l.s4 1966171168
      %v3881 = vunpack.c.0.s8 %v3880
      %v3882 = vlaneseq
      %v3883 = vshrl.u32 %v3882, 7
      %v3884 = vsub.s32 %v3881, %v3883
      %v3885 = vrot.slane %v3877, %v3884
      %v3887 = vunpack.c.l.s4 1966171168
      %v3888 = vunpack.c.0.s8 %v3887
      %v3889 = vlaneseq
      %v3890 = vshrl.u32 %v3889, 7
      %v3891 = vsub.s32 %v3888, %v3890
      %v3892 = vrot.slane %v3878, %v3891
      %v3893 = vcombine.low %v3885, %v3892
      %v3894 = vcombine.low %v2363, %v2367
      %v3895 = vcombine.low %v2371, %v2375
      %v3896 = vcombine.low %v2379, %v2383
      %v3897 = vcombine.low %v2387, %v2391
      %v3899 = vunpack.c.l.s4 1966171168
      %v3900 = vunpack.c.0.s8 %v3899
      %v3901 = vlaneseq
      %v3902 = vshrl.u32 %v3901, 7
      %v3903 = vsub.s32 %v3900, %v3902
      %v3904 = vrot.slane %v3894, %v3903
      %v3906 = vunpack.c.l.s4 1966171168
      %v3907 = vunpack.c.0.s8 %v3906
      %v3908 = vlaneseq
      %v3909 = vshrl.u32 %v3908, 7
      %v3910 = vsub.s32 %v3907, %v3909
      %v3911 = vrot.slane %v3895, %v3910
      %v3913 = vunpack.c.l.s4 1966171168
      %v3914 = vunpack.c.0.s8 %v3913
      %v3915 = vlaneseq
      %v3916 = vshrl.u32 %v3915, 7
      %v3917 = vsub.s32 %v3914, %v3916
      %v3918 = vrot.slane %v3896, %v3917
      %v3920 = vunpack.c.l.s4 1966171168
      %v3921 = vunpack.c.0.s8 %v3920
      %v3922 = vlaneseq
      %v3923 = vshrl.u32 %v3922, 7
      %v3924 = vsub.s32 %v3921, %v3923
      %v3925 = vrot.slane %v3897, %v3924
      %v3926 = vcombine.low %v3904, %v3911
      %v3927 = vcombine.low %v3918, %v3925
      %v3929 = vunpack.c.l.s4 1966171168
      %v3930 = vunpack.c.0.s8 %v3929
      %v3931 = vlaneseq
      %v3932 = vshrl.u32 %v3931, 7
      %v3933 = vsub.s32 %v3930, %v3932
      %v3934 = vrot.slane %v3926, %v3933
      %v3936 = vunpack.c.l.s4 1966171168
      %v3937 = vunpack.c.0.s8 %v3936
      %v3938 = vlaneseq
      %v3939 = vshrl.u32 %v3938, 7
      %v3940 = vsub.s32 %v3937, %v3939
      %v3941 = vrot.slane %v3927, %v3940
      %v3942 = vcombine.low %v3934, %v3941
      %v3943 = vcombine.low %v2395, %v2399
      %v3944 = vcombine.low %v2403, %v2407
      %v3945 = vcombine.low %v2411, %v2415
      %v3946 = vcombine.low %v2419, %v2423
      %v3948 = vunpack.c.l.s4 1966171168
      %v3949 = vunpack.c.0.s8 %v3948
      %v3950 = vlaneseq
      %v3951 = vshrl.u32 %v3950, 7
      %v3952 = vsub.s32 %v3949, %v3951
      %v3953 = vrot.slane %v3943, %v3952
      %v3955 = vunpack.c.l.s4 1966171168
      %v3956 = vunpack.c.0.s8 %v3955
      %v3957 = vlaneseq
      %v3958 = vshrl.u32 %v3957, 7
      %v3959 = vsub.s32 %v3956, %v3958
      %v3960 = vrot.slane %v3944, %v3959
      %v3962 = vunpack.c.l.s4 1966171168
      %v3963 = vunpack.c.0.s8 %v3962
      %v3964 = vlaneseq
      %v3965 = vshrl.u32 %v3964, 7
      %v3966 = vsub.s32 %v3963, %v3965
      %v3967 = vrot.slane %v3945, %v3966
      %v3969 = vunpack.c.l.s4 1966171168
      %v3970 = vunpack.c.0.s8 %v3969
      %v3971 = vlaneseq
      %v3972 = vshrl.u32 %v3971, 7
      %v3973 = vsub.s32 %v3970, %v3972
      %v3974 = vrot.slane %v3946, %v3973
      %v3975 = vcombine.low %v3953, %v3960
      %v3976 = vcombine.low %v3967, %v3974
      %v3978 = vunpack.c.l.s4 1966171168
      %v3979 = vunpack.c.0.s8 %v3978
      %v3980 = vlaneseq
      %v3981 = vshrl.u32 %v3980, 7
      %v3982 = vsub.s32 %v3979, %v3981
      %v3983 = vrot.slane %v3975, %v3982
      %v3985 = vunpack.c.l.s4 1966171168
      %v3986 = vunpack.c.0.s8 %v3985
      %v3987 = vlaneseq
      %v3988 = vshrl.u32 %v3987, 7
      %v3989 = vsub.s32 %v3986, %v3988
      %v3990 = vrot.slane %v3976, %v3989
      %v3991 = vcombine.low %v3983, %v3990
      %3992 = vset.pattern.permute.xlu0 0
      %3993 = vperm.xlu0 %3992, %v2472
      %v3994 = vpop.permute.xlu0 %3993
      %3995 = vset.pattern.permute.xlu0 0
      %3996 = vperm.xlu0 %3995, %v2521
      %v3997 = vpop.permute.xlu0 %3996
      %3998 = vset.pattern.permute.xlu0 0
      %3999 = vperm.xlu0 %3998, %v2570
      %v4000 = vpop.permute.xlu0 %3999
      %4001 = vset.pattern.permute.xlu0 0
      %4002 = vperm.xlu0 %4001, %v2619
      %v4003 = vpop.permute.xlu0 %4002
      %4004 = vset.pattern.permute.xlu0 0
      %4005 = vperm.xlu0 %4004, %v2668
      %v4006 = vpop.permute.xlu0 %4005
      %4007 = vset.pattern.permute.xlu0 0
      %4008 = vperm.xlu0 %4007, %v2717
      %v4009 = vpop.permute.xlu0 %4008
      %4010 = vset.pattern.permute.xlu0 0
      %4011 = vperm.xlu0 %4010, %v2766
      %v4012 = vpop.permute.xlu0 %4011
      %4013 = vset.pattern.permute.xlu0 0
      %4014 = vperm.xlu0 %4013, %v2815
      %v4015 = vpop.permute.xlu0 %4014
      %4016 = vset.pattern.permute.xlu0 0
      %4017 = vperm.xlu0 %4016, %v2864
      %v4018 = vpop.permute.xlu0 %4017
      %4019 = vset.pattern.permute.xlu0 0
      %4020 = vperm.xlu0 %4019, %v2913
      %v4021 = vpop.permute.xlu0 %4020
      %4022 = vset.pattern.permute.xlu0 0
      %4023 = vperm.xlu0 %4022, %v2962
      %v4024 = vpop.permute.xlu0 %4023
      %4025 = vset.pattern.permute.xlu0 0
      %4026 = vperm.xlu0 %4025, %v3011
      %v4027 = vpop.permute.xlu0 %4026
      %4028 = vset.pattern.permute.xlu0 0
      %4029 = vperm.xlu0 %4028, %v3060
      %v4030 = vpop.permute.xlu0 %4029
      %4031 = vset.pattern.permute.xlu0 0
      %4032 = vperm.xlu0 %4031, %v3109
      %v4033 = vpop.permute.xlu0 %4032
      %4034 = vset.pattern.permute.xlu0 0
      %4035 = vperm.xlu0 %4034, %v3158
      %v4036 = vpop.permute.xlu0 %4035
      %4037 = vset.pattern.permute.xlu0 0
      %4038 = vperm.xlu0 %4037, %v3207
      %v4039 = vpop.permute.xlu0 %4038
      %4040 = vset.pattern.permute.xlu0 0
      %4041 = vperm.xlu0 %4040, %v3256
      %v4042 = vpop.permute.xlu0 %4041
      %4043 = vset.pattern.permute.xlu0 0
      %4044 = vperm.xlu0 %4043, %v3305
      %v4045 = vpop.permute.xlu0 %4044
      %4046 = vset.pattern.permute.xlu0 0
      %4047 = vperm.xlu0 %4046, %v3354
      %v4048 = vpop.permute.xlu0 %4047
      %4049 = vset.pattern.permute.xlu0 0
      %4050 = vperm.xlu0 %4049, %v3403
      %v4051 = vpop.permute.xlu0 %4050
      %4052 = vset.pattern.permute.xlu0 0
      %4053 = vperm.xlu0 %4052, %v3452
      %v4054 = vpop.permute.xlu0 %4053
      %4055 = vset.pattern.permute.xlu0 0
      %4056 = vperm.xlu0 %4055, %v3501
      %v4057 = vpop.permute.xlu0 %4056
      %4058 = vset.pattern.permute.xlu0 0
      %4059 = vperm.xlu0 %4058, %v3550
      %v4060 = vpop.permute.xlu0 %4059
      %4061 = vset.pattern.permute.xlu0 0
      %4062 = vperm.xlu0 %4061, %v3599
      %v4063 = vpop.permute.xlu0 %4062
      %4064 = vset.pattern.permute.xlu0 0
      %4065 = vperm.xlu0 %4064, %v3648
      %v4066 = vpop.permute.xlu0 %4065
      %4067 = vset.pattern.permute.xlu0 0
      %4068 = vperm.xlu0 %4067, %v3697
      %v4069 = vpop.permute.xlu0 %4068
      %4070 = vset.pattern.permute.xlu0 0
      %4071 = vperm.xlu0 %4070, %v3746
      %v4072 = vpop.permute.xlu0 %4071
      %4073 = vset.pattern.permute.xlu0 0
      %4074 = vperm.xlu0 %4073, %v3795
      %v4075 = vpop.permute.xlu0 %4074
      %4076 = vset.pattern.permute.xlu0 0
      %4077 = vperm.xlu0 %4076, %v3844
      %v4078 = vpop.permute.xlu0 %4077
      %4079 = vset.pattern.permute.xlu0 0
      %4080 = vperm.xlu0 %4079, %v3893
      %v4081 = vpop.permute.xlu0 %4080
      %4082 = vset.pattern.permute.xlu0 0
      %4083 = vperm.xlu0 %4082, %v3942
      %v4084 = vpop.permute.xlu0 %4083
      %4085 = vset.pattern.permute.xlu0 0
      %4086 = vperm.xlu0 %4085, %v3991
      %v4087 = vpop.permute.xlu0 %4086
      %v4088 = vlaneseq
      %v4089 = vand.u32 %v4088, 127
      %v4090 = vlaneseq
      %v4091 = vshrl.u32 %v4090, 7
      %v4092 = vsub.s32 %v4089, %v4091
      %v4093 = vrot.slane %v3994, %v4092
      %v4094 = vadd.s32 %v4089, 4294967288
      %v4095 = vlaneseq
      %v4096 = vshrl.u32 %v4095, 7
      %v4097 = vsub.s32 %v4094, %v4096
      %v4098 = vrot.slane %v3997, %v4097
      %vm4099 = vcmask 130112
      %v4100 = vsel %vm4099, %v4098, %v4093
      %v4101 = vadd.s32 %v4089, 4294967280
      %v4102 = vlaneseq
      %v4103 = vshrl.u32 %v4102, 7
      %v4104 = vsub.s32 %v4101, %v4103
      %v4105 = vrot.slane %v4000, %v4104
      %vm4106 = vcmask 195712
      %v4107 = vsel %vm4106, %v4105, %v4100
      %v4108 = vadd.s32 %v4089, 4294967272
      %v4109 = vlaneseq
      %v4110 = vshrl.u32 %v4109, 7
      %v4111 = vsub.s32 %v4108, %v4110
      %v4112 = vrot.slane %v4003, %v4111
      %vm4113 = vcmask 261312
      %v4114 = vsel %vm4113, %v4112, %v4107
      %v4115 = vadd.s32 %v4089, 4294967264
      %v4116 = vlaneseq
      %v4117 = vshrl.u32 %v4116, 7
      %v4118 = vsub.s32 %v4115, %v4117
      %v4119 = vrot.slane %v4006, %v4118
      %vm4120 = vcmask 326912
      %v4121 = vsel %vm4120, %v4119, %v4114
      %v4122 = vadd.s32 %v4089, 4294967256
      %v4123 = vlaneseq
      %v4124 = vshrl.u32 %v4123, 7
      %v4125 = vsub.s32 %v4122, %v4124
      %v4126 = vrot.slane %v4009, %v4125
      %vm4127 = vcmask 392512
      %v4128 = vsel %vm4127, %v4126, %v4121
      %v4129 = vadd.s32 %v4089, 4294967248
      %v4130 = vlaneseq
      %v4131 = vshrl.u32 %v4130, 7
      %v4132 = vsub.s32 %v4129, %v4131
      %v4133 = vrot.slane %v4012, %v4132
      %vm4134 = vcmask 458112
      %v4135 = vsel %vm4134, %v4133, %v4128
      %v4136 = vadd.s32 %v4089, 4294967240
      %v4137 = vlaneseq
      %v4138 = vshrl.u32 %v4137, 7
      %v4139 = vsub.s32 %v4136, %v4138
      %v4140 = vrot.slane %v4015, %v4139
      %vm4141 = vcmask 523712
      %v4142 = vsel %vm4141, %v4140, %v4135
      %v4143 = vadd.s32 %v4089, 4294967232
      %v4144 = vlaneseq
      %v4145 = vshrl.u32 %v4144, 7
      %v4146 = vsub.s32 %v4143, %v4145
      %v4147 = vrot.slane %v4018, %v4146
      %vm4148 = vcmask 589312
      %v4149 = vsel %vm4148, %v4147, %v4142
      %v4150 = vadd.s32 %v4089, 4294967224
      %v4151 = vlaneseq
      %v4152 = vshrl.u32 %v4151, 7
      %v4153 = vsub.s32 %v4150, %v4152
      %v4154 = vrot.slane %v4021, %v4153
      %vm4155 = vcmask 654912
      %v4156 = vsel %vm4155, %v4154, %v4149
      %v4157 = vadd.s32 %v4089, 4294967216
      %v4158 = vlaneseq
      %v4159 = vshrl.u32 %v4158, 7
      %v4160 = vsub.s32 %v4157, %v4159
      %v4161 = vrot.slane %v4024, %v4160
      %vm4162 = vcmask 720512
      %v4163 = vsel %vm4162, %v4161, %v4156
      %v4164 = vadd.s32 %v4089, 4294967208
      %v4165 = vlaneseq
      %v4166 = vshrl.u32 %v4165, 7
      %v4167 = vsub.s32 %v4164, %v4166
      %v4168 = vrot.slane %v4027, %v4167
      %vm4169 = vcmask 786112
      %v4170 = vsel %vm4169, %v4168, %v4163
      %v4171 = vadd.s32 %v4089, 4294967200
      %v4172 = vlaneseq
      %v4173 = vshrl.u32 %v4172, 7
      %v4174 = vsub.s32 %v4171, %v4173
      %v4175 = vrot.slane %v4030, %v4174
      %vm4176 = vcmask 851712
      %v4177 = vsel %vm4176, %v4175, %v4170
      %v4178 = vadd.s32 %v4089, 4294967192
      %v4179 = vlaneseq
      %v4180 = vshrl.u32 %v4179, 7
      %v4181 = vsub.s32 %v4178, %v4180
      %v4182 = vrot.slane %v4033, %v4181
      %vm4183 = vcmask 917312
      %v4184 = vsel %vm4183, %v4182, %v4177
      %v4185 = vadd.s32 %v4089, 4294967184
      %v4186 = vlaneseq
      %v4187 = vshrl.u32 %v4186, 7
      %v4188 = vsub.s32 %v4185, %v4187
      %v4189 = vrot.slane %v4036, %v4188
      %vm4190 = vcmask 982912
      %v4191 = vsel %vm4190, %v4189, %v4184
      %v4192 = vadd.s32 %v4089, 4294967176
      %v4193 = vlaneseq
      %v4194 = vshrl.u32 %v4193, 7
      %v4195 = vsub.s32 %v4192, %v4194
      %v4196 = vrot.slane %v4039, %v4195
      %vm4197 = vcmask 1048512
      %v4198 = vsel %vm4197, %v4196, %v4191
      %v4199 = vlaneseq
      %v4200 = vshrl.u32 %v4199, 7
      %v4201 = vsub.s32 %v4089, %v4200
      %v4202 = vrot.slane %v4042, %v4201
      %v4203 = vlaneseq
      %v4204 = vshrl.u32 %v4203, 7
      %v4205 = vsub.s32 %v4094, %v4204
      %v4206 = vrot.slane %v4045, %v4205
      %v4207 = vsel %vm4099, %v4206, %v4202
      %v4208 = vlaneseq
      %v4209 = vshrl.u32 %v4208, 7
      %v4210 = vsub.s32 %v4101, %v4209
      %v4211 = vrot.slane %v4048, %v4210
      %v4212 = vsel %vm4106, %v4211, %v4207
      %v4213 = vlaneseq
      %v4214 = vshrl.u32 %v4213, 7
      %v4215 = vsub.s32 %v4108, %v4214
      %v4216 = vrot.slane %v4051, %v4215
      %v4217 = vsel %vm4113, %v4216, %v4212
      %v4218 = vlaneseq
      %v4219 = vshrl.u32 %v4218, 7
      %v4220 = vsub.s32 %v4115, %v4219
      %v4221 = vrot.slane %v4054, %v4220
      %v4222 = vsel %vm4120, %v4221, %v4217
      %v4223 = vlaneseq
      %v4224 = vshrl.u32 %v4223, 7
      %v4225 = vsub.s32 %v4122, %v4224
      %v4226 = vrot.slane %v4057, %v4225
      %v4227 = vsel %vm4127, %v4226, %v4222
      %v4228 = vlaneseq
      %v4229 = vshrl.u32 %v4228, 7
      %v4230 = vsub.s32 %v4129, %v4229
      %v4231 = vrot.slane %v4060, %v4230
      %v4232 = vsel %vm4134, %v4231, %v4227
      %v4233 = vlaneseq
      %v4234 = vshrl.u32 %v4233, 7
      %v4235 = vsub.s32 %v4136, %v4234
      %v4236 = vrot.slane %v4063, %v4235
      %v4237 = vsel %vm4141, %v4236, %v4232
      %v4238 = vlaneseq
      %v4239 = vshrl.u32 %v4238, 7
      %v4240 = vsub.s32 %v4143, %v4239
      %v4241 = vrot.slane %v4066, %v4240
      %v4242 = vsel %vm4148, %v4241, %v4237
      %v4243 = vlaneseq
      %v4244 = vshrl.u32 %v4243, 7
      %v4245 = vsub.s32 %v4150, %v4244
      %v4246 = vrot.slane %v4069, %v4245
      %v4247 = vsel %vm4155, %v4246, %v4242
      %v4248 = vlaneseq
      %v4249 = vshrl.u32 %v4248, 7
      %v4250 = vsub.s32 %v4157, %v4249
      %v4251 = vrot.slane %v4072, %v4250
      %v4252 = vsel %vm4162, %v4251, %v4247
      %v4253 = vlaneseq
      %v4254 = vshrl.u32 %v4253, 7
      %v4255 = vsub.s32 %v4164, %v4254
      %v4256 = vrot.slane %v4075, %v4255
      %v4257 = vsel %vm4169, %v4256, %v4252
      %v4258 = vlaneseq
      %v4259 = vshrl.u32 %v4258, 7
      %v4260 = vsub.s32 %v4171, %v4259
      %v4261 = vrot.slane %v4078, %v4260
      %v4262 = vsel %vm4176, %v4261, %v4257
      %v4263 = vlaneseq
      %v4264 = vshrl.u32 %v4263, 7
      %v4265 = vsub.s32 %v4178, %v4264
      %v4266 = vrot.slane %v4081, %v4265
      %v4267 = vsel %vm4183, %v4266, %v4262
      %v4268 = vlaneseq
      %v4269 = vshrl.u32 %v4268, 7
      %v4270 = vsub.s32 %v4185, %v4269
      %v4271 = vrot.slane %v4084, %v4270
      %v4272 = vsel %vm4190, %v4271, %v4267
      %v4273 = vlaneseq
      %v4274 = vshrl.u32 %v4273, 7
      %v4275 = vsub.s32 %v4192, %v4274
      %v4276 = vrot.slane %v4087, %v4275
      %v4277 = vsel %vm4197, %v4276, %v4272
      %v4278 = vcombine.low %v4198, %v4277
      %v4280 = vunpack.c.l.s4 1966171168
      %v4281 = vunpack.c.0.s8 %v4280
      %v4282 = vlaneseq
      %v4283 = vshrl.u32 %v4282, 7
      %v4284 = vsub.s32 %v4281, %v4283
      %v4285 = vrot.slane %v4278, %v4284
      %v4287 = vunpack.c.l.s4 1966171168
      %v4288 = vunpack.c.0.s8 %v4287
      %v4289 = vlaneseq
      %v4290 = vshrl.u32 %v4289, 7
      %v4291 = vsub.s32 %v4288, %v4290
      %v4292 = vrot.slane %v4285, %v4291
      %v4294 = vadd.f32 %v1367, %v4292
      %v4295 = vlaneseq
      %vm4296 = vcmp.ge.s32.totalorder %v4295, 0
      %vm4297 = vcmp.lt.s32.totalorder %v4295, 256
      %vm4298 = vmand %vm4296, %vm4297
      %4299 = vst.msk [vmem:[%s341] sm:$0x3] %vm4298, %v4294
      %s4300 = smul.u32 2, %s22
      %p4301 = scmp.lt.s32.totalorder %s20, 1
      %s4302 = scalar_select %p4301, %s20, 1
      %p4303 = scmp.lt.s32.totalorder %s21, 2
      %s4304 = scalar_select %p4303, %s21, 2
      %p4305 = scmp.lt.s32.totalorder %s4300, 1
      %s4306 = scalar_select %p4305, %s4300, 1
      %s4307 = smul.addr %s4304, 2
      %s4308 = sadd.s32 %s4306, %s4307
      %s4309 = smul.addr %s4302, 6
      %s4310 = sadd.s32 %s4308, %s4309
      %s4311 = scalar_lea.vmem %s3, %s4310
      // Predicated region
      $region37: #{fecanet_forward.3} parent=31 // pred_check
        %p4312 = pneg %p152
      $region38: #{fecanet_forward.3} parent=31 // pred_check_branch
        %4314 = sbr.rel (%p4312) target = $region40
      $region39: #{fecanet_forward.3} parent=31 // pred_region
        %s4315 = smul.u32 2, %s22
      $region40: #{fecanet_forward.3} parent=31 // pred_fallthru
        _
    $region32: #{fecanet_forward.3} parent=5 // pred_fallthru
      _
    %p4316 = scmp.le.s32.totalorder 2, %s9
    // Predicated region
    $region41: #{fecanet_forward.3} parent=5 // pred_check
      %p4317 = pneg %p4316
    $region42: #{fecanet_forward.3} parent=5 // pred_check_branch
      %4319 = sbr.rel (%p4317) target = $region44
    $region43: #{fecanet_forward.3} parent=5 // pred_region
      %s4320 = ssub.s32 %s9, 2
      // Predicated region
      $region45: #{fecanet_forward.3} parent=43 // pred_check
        %p4321 = pneg %p158
      $region46: #{fecanet_forward.3} parent=43 // pred_check_branch
        %4323 = sbr.rel (%p4321) target = $region48
      $region47: #{fecanet_forward.3} parent=43 // pred_region
        %s4324 = smul.u32 2, %s26
        %p4325 = scmp.lt.s32.totalorder %s24, 1
        %s4326 = scalar_select %p4325, %s24, 1
        %p4327 = scmp.lt.s32.totalorder %s25, 2
        %s4328 = scalar_select %p4327, %s25, 2
        %p4329 = scmp.lt.s32.totalorder %s4324, 1
        %s4330 = scalar_select %p4329, %s4324, 1
        %s4331 = smul.addr %s4328, 2
        %s4332 = sadd.s32 %s4330, %s4331
        %s4333 = smul.addr %s4326, 6
        %s4334 = sadd.s32 %s4332, %s4333
        %s4335 = scalar_lea.vmem %s3, %s4334
      $region48: #{fecanet_forward.3} parent=43 // pred_fallthru
        _
    $region44: #{fecanet_forward.3} parent=5 // pred_fallthru
      _
  $region6: #{fecanet_forward.3} parent=0 // loop_footer
    %s13 = sadd.s32 1, %s9
  $region7: #{fecanet_forward.3} parent=0 // loop_footer_branch
    %8 = sbr.rel target = $region3
  $region8: #{fecanet_forward.3} parent=0 // loop_exit
    _

// kernel: fecanet_forward.4
$region0: #{fecanet_forward.4}
  #allocation0 [shape = 'u32[]', space=smem, size = 0x4, offset = 0x4, fixed_abs, tag = 'smem constant byte address 0x4 - core index']
  #allocation1 [shape = 'u32[144,128]{1,0:T(1,128)}', space=vmem, size = 0x12000, scoped, tag = 'internal scratch']
  %s0 = inlined_call_operand.vmem [shape: f32[2,3,64,64], index: 0, kind: input, shape index: {}]
  %s1 = inlined_call_operand.vmem [shape: f32[2,3,64,64], index: 1, kind: input, shape index: {}]
  %s2 = inlined_call_operand.vmem [shape: f32[2,3,1,64], index: 2, kind: input, shape index: {}]
  %s3 = inlined_call_operand.vmem [shape: f32[2,3,1,64], index: 3, kind: output, shape index: {}]
  %s4 = sld [smem:[#allocation0]]
  $region49: #{fecanet_forward.4} parent=0
    _
  %s6 = ssub.s32 1, %s4
  %s7 = scalar_select 0, %s6, %s4
  loop: start=0, step=1, limit=8
  $region2: #{fecanet_forward.4} parent=0 // loop_pre_header
    _
  $region3: #{fecanet_forward.4} parent=0 // loop_header
    %s9 = sphi 0, %s13
    %p10 = scmp.ge.s32.totalorder %s9, 8
    %s16 = sphi 0, %s42
    %s17 = sphi 0, %s38
    %s18 = sphi 0, %s34
    %s19 = sphi 0, %s30
    %s20 = sphi 0, %s16
    %s21 = sphi 0, %s17
    %s22 = sphi 0, %s18
    %s23 = sphi 0, %s19
    %s24 = sphi 0, %s20
    %s25 = sphi 0, %s21
    %s26 = sphi 0, %s22
    %s27 = sphi 0, %s23
    %s49 = sphi 0, %s51
    %s52 = sphi 0, %s49
    %s53 = sphi 0, %s52
    %s69 = sphi 0, %s53
    %s79 = sphi 0, %s81
    %s82 = sphi 0, %s79
    %s83 = sphi 0, %s82
    %s99 = sphi 0, %s83
    %s109 = sphi 0, %s111
    %s112 = sphi 0, %s109
    %s113 = sphi 0, %s112
    %s129 = sphi 0, %s113
    %s139 = sphi 0, %s141
    %s142 = sphi 0, %s139
    %s143 = sphi 0, %s142
    %s159 = sphi 0, %s143
  $region4: #{fecanet_forward.4} parent=0 // loop_header_branch
    %12 = sbr.rel (%p10) target = $region8
  $region5: #{fecanet_forward.4} parent=0 // loop_body
    %s14 = ssub.s32 %s9, 1
    %s15 = ssub.s32 %s9, 2
    %s28 = sadd.s32 1, %s19
    %p29 = scmp.ge.s32.totalorder %s28, 1
    %s30 = scalar_select %p29, 0, %s28
    %s31 = sadd.s32 1, %s18
    %s32 = scalar_select %p29, %s31, %s18
    %p33 = scmp.ge.s32.totalorder %s32, 1
    %s34 = scalar_select %p33, 0, %s32
    %s35 = sadd.s32 1, %s17
    %s36 = scalar_select %p33, %s35, %s17
    %p37 = scmp.ge.s32.totalorder %s36, 3
    %s38 = scalar_select %p37, 0, %s36
    %s39 = sadd.s32 1, %s16
    %s40 = scalar_select %p37, %s39, %s16
    %p41 = scmp.ge.s32.totalorder %s40, 2
    %s42 = scalar_select %p41, 0, %s40
    %s43 = ssub.s32 %s16, %s42
    %s44 = ssub.s32 %s17, %s38
    %s45 = sor.u32 %s43, %s44
    %s46 = ssub.s32 %s18, %s34
    %s47 = sor.u32 %s45, %s46
    %p48 = scmp.eq.s32.totalorder %s47, 0
    %s50 = sadd.s32 %s49, 1
    %s51 = scalar_select %p48, %s49, %s50
    %p54 = pneg %p48
    %p55 = scmp.eq.s32.totalorder %s9, 5
    %p56 = por %p54, %p55
    %p57 = scmp.ne.s32.totalorder %s49, %s52
    %p58 = scmp.eq.s32.totalorder %s9, 0
    %p59 = por %p57, %p58
    %p60 = scmp.ne.s32.totalorder %s49, %s52
    %p61 = scmp.eq.s32.totalorder %s14, 5
    %p62 = por %p60, %p61
    %p63 = scmp.ne.s32.totalorder %s52, %s53
    %p64 = scmp.eq.s32.totalorder %s14, 0
    %p65 = por %p63, %p64
    %p66 = scmp.ne.s32.totalorder %s52, %s53
    %p67 = scmp.eq.s32.totalorder %s15, 5
    %p68 = por %p66, %p67
    %p70 = scmp.ne.s32.totalorder %s53, %s69
    %p71 = scmp.eq.s32.totalorder %s15, 0
    %p72 = por %p70, %p71
    %s73 = ssub.s32 %s16, %s42
    %s74 = ssub.s32 %s17, %s38
    %s75 = sor.u32 %s73, %s74
    %s76 = ssub.s32 %s19, %s30
    %s77 = sor.u32 %s75, %s76
    %p78 = scmp.eq.s32.totalorder %s77, 0
    %s80 = sadd.s32 %s79, 1
    %s81 = scalar_select %p78, %s79, %s80
    %p84 = pneg %p78
    %p85 = scmp.eq.s32.totalorder %s9, 5
    %p86 = por %p84, %p85
    %p87 = scmp.ne.s32.totalorder %s79, %s82
    %p88 = scmp.eq.s32.totalorder %s9, 0
    %p89 = por %p87, %p88
    %p90 = scmp.ne.s32.totalorder %s79, %s82
    %p91 = scmp.eq.s32.totalorder %s14, 5
    %p92 = por %p90, %p91
    %p93 = scmp.ne.s32.totalorder %s82, %s83
    %p94 = scmp.eq.s32.totalorder %s14, 0
    %p95 = por %p93, %p94
    %p96 = scmp.ne.s32.totalorder %s82, %s83
    %p97 = scmp.eq.s32.totalorder %s15, 5
    %p98 = por %p96, %p97
    %p100 = scmp.ne.s32.totalorder %s83, %s99
    %p101 = scmp.eq.s32.totalorder %s15, 0
    %p102 = por %p100, %p101
    %s103 = ssub.s32 %s16, %s42
    %s104 = ssub.s32 %s17, %s38
    %s105 = sor.u32 %s103, %s104
    %s106 = ssub.s32 %s19, %s30
    %s107 = sor.u32 %s105, %s106
    %p108 = scmp.eq.s32.totalorder %s107, 0
    %s110 = sadd.s32 %s109, 1
    %s111 = scalar_select %p108, %s109, %s110
    %p114 = pneg %p108
    %p115 = scmp.eq.s32.totalorder %s9, 5
    %p116 = por %p114, %p115
    %p117 = scmp.ne.s32.totalorder %s109, %s112
    %p118 = scmp.eq.s32.totalorder %s9, 0
    %p119 = por %p117, %p118
    %p120 = scmp.ne.s32.totalorder %s109, %s112
    %p121 = scmp.eq.s32.totalorder %s14, 5
    %p122 = por %p120, %p121
    %p123 = scmp.ne.s32.totalorder %s112, %s113
    %p124 = scmp.eq.s32.totalorder %s14, 0
    %p125 = por %p123, %p124
    %p126 = scmp.ne.s32.totalorder %s112, %s113
    %p127 = scmp.eq.s32.totalorder %s15, 5
    %p128 = por %p126, %p127
    %p130 = scmp.ne.s32.totalorder %s113, %s129
    %p131 = scmp.eq.s32.totalorder %s15, 0
    %p132 = por %p130, %p131
    %s133 = ssub.s32 %s16, %s42
    %s134 = ssub.s32 %s17, %s38
    %s135 = sor.u32 %s133, %s134
    %s136 = ssub.s32 %s18, %s34
    %s137 = sor.u32 %s135, %s136
    %p138 = scmp.eq.s32.totalorder %s137, 0
    %s140 = sadd.s32 %s139, 1
    %s141 = scalar_select %p138, %s139, %s140
    %p144 = pneg %p138
    %p145 = scmp.eq.s32.totalorder %s9, 5
    %p146 = por %p144, %p145
    %p147 = scmp.ne.s32.totalorder %s139, %s142
    %p148 = scmp.eq.s32.totalorder %s9, 0
    %p149 = por %p147, %p148
    %p150 = scmp.ne.s32.totalorder %s139, %s142
    %p151 = scmp.eq.s32.totalorder %s14, 5
    %p152 = por %p150, %p151
    %p153 = scmp.ne.s32.totalorder %s142, %s143
    %p154 = scmp.eq.s32.totalorder %s14, 0
    %p155 = por %p153, %p154
    %p156 = scmp.ne.s32.totalorder %s142, %s143
    %p157 = scmp.eq.s32.totalorder %s15, 5
    %p158 = por %p156, %p157
    %p160 = scmp.ne.s32.totalorder %s143, %s159
    %p161 = scmp.eq.s32.totalorder %s15, 0
    %p162 = por %p160, %p161
    %p163 = scmp.le.s32.totalorder 1, %s9
    %p164 = scmp.lt.s32.totalorder %s9, 7
    %p165 = pnand %p163, %p164
    %p166 = pneg %p165
    // Predicated region
    $region9: #{fecanet_forward.4} parent=5 // pred_check
      _
    $region10: #{fecanet_forward.4} parent=5 // pred_check_branch
      %168 = sbr.rel (%p165) target = $region12
    $region11: #{fecanet_forward.4} parent=5 // pred_region
      %s169 = ssub.s32 %s9, 1
    $region12: #{fecanet_forward.4} parent=5 // pred_fallthru
      _
    %p170 = scmp.lt.s32.totalorder %s9, 6
    // Predicated region
    $region13: #{fecanet_forward.4} parent=5 // pred_check
      %p171 = pneg %p170
    $region14: #{fecanet_forward.4} parent=5 // pred_check_branch
      %173 = sbr.rel (%p171) target = $region16
    $region15: #{fecanet_forward.4} parent=5 // pred_region
      // Predicated region
      $region17: #{fecanet_forward.4} parent=15 // pred_check
        %p174 = pneg %p59
      $region18: #{fecanet_forward.4} parent=15 // pred_check_branch
        %176 = sbr.rel (%p174) target = $region20
      $region19: #{fecanet_forward.4} parent=15 // pred_region
        %s177 = smul.u32 8, %s18
        %p178 = scmp.lt.s32.totalorder %s16, 1
        %s179 = scalar_select %p178, %s16, 1
        %p180 = scmp.lt.s32.totalorder %s17, 2
        %s181 = scalar_select %p180, %s17, 2
        %p182 = scmp.lt.s32.totalorder %s177, 7
        %s183 = scalar_select %p182, %s177, 7
        %s184 = smul.addr %s181, 8
        %s185 = sadd.s32 %s183, %s184
        %s186 = smul.addr %s179, 24
        %s187 = sadd.s32 %s185, %s186
        %s188 = smul.addr %s187, 8
        %s189 = scalar_lea.vmem %s0, %s188
        %s190 = smul.u32 8, %s18
      $region20: #{fecanet_forward.4} parent=15 // pred_fallthru
        _
      // Predicated region
      $region21: #{fecanet_forward.4} parent=15 // pred_check
        %p191 = pneg %p89
      $region22: #{fecanet_forward.4} parent=15 // pred_check_branch
        %193 = sbr.rel (%p191) target = $region24
      $region23: #{fecanet_forward.4} parent=15 // pred_region
        %p194 = scmp.lt.s32.totalorder %s16, 1
        %s195 = scalar_select %p194, %s16, 1
        %p196 = scmp.lt.s32.totalorder %s17, 2
        %s197 = scalar_select %p196, %s17, 2
        %p198 = scmp.lt.s32.totalorder %s19, 0
        %s199 = scalar_select %p198, %s19, 0
        %s200 = smul.addr %s197, 8
        %s201 = sadd.s32 %s199, %s200
        %s202 = smul.addr %s195, 24
        %s203 = sadd.s32 %s201, %s202
        %s204 = smul.addr %s203, 8
        %s205 = scalar_lea.vmem %s1, %s204
      $region24: #{fecanet_forward.4} parent=15 // pred_fallthru
        _
      // Predicated region
      $region25: #{fecanet_forward.4} parent=15 // pred_check
        %p206 = pneg %p119
      $region26: #{fecanet_forward.4} parent=15 // pred_check_branch
        %208 = sbr.rel (%p206) target = $region28
      $region27: #{fecanet_forward.4} parent=15 // pred_region
        %p209 = scmp.lt.s32.totalorder %s16, 1
        %s210 = scalar_select %p209, %s16, 1
        %p211 = scmp.lt.s32.totalorder %s17, 2
        %s212 = scalar_select %p211, %s17, 2
        %p213 = scmp.lt.s32.totalorder %s19, 0
        %s214 = scalar_select %p213, %s19, 0
        %s215 = sadd.s32 %s214, %s212
        %s216 = smul.addr %s210, 3
        %s217 = sadd.s32 %s215, %s216
        %s218 = scalar_lea.vmem %s2, %s217
      $region28: #{fecanet_forward.4} parent=15 // pred_fallthru
        _
    $region16: #{fecanet_forward.4} parent=5 // pred_fallthru
      _
    %p219 = scmp.le.s32.totalorder 1, %s9
    %p220 = scmp.lt.s32.totalorder %s9, 7
    %p221 = pnand %p219, %p220
    %p222 = pneg %p221
    // Predicated region
    $region29: #{fecanet_forward.4} parent=5 // pred_check
      _
    $region30: #{fecanet_forward.4} parent=5 // pred_check_branch
      %224 = sbr.rel (%p221) target = $region32
    $region31: #{fecanet_forward.4} parent=5 // pred_region
      %s225 = ssub.s32 %s9, 1
      %s226 = smul.u32 8, %s22
      %p227 = scmp.lt.s32.totalorder %s20, 1
      %s228 = scalar_select %p227, %s20, 1
      %p229 = scmp.lt.s32.totalorder %s21, 2
      %s230 = scalar_select %p229, %s21, 2
      %p231 = scmp.lt.s32.totalorder %s226, 7
      %s232 = scalar_select %p231, %s226, 7
      %s233 = smul.addr %s230, 8
      %s234 = sadd.s32 %s232, %s233
      %s235 = smul.addr %s228, 24
      %s236 = sadd.s32 %s234, %s235
      %s237 = smul.addr %s236, 8
      %s238 = scalar_lea.vmem %s0, %s237
      %p239 = pneg %p65
      %p240 = pneg %p62
      %p241 = scmp.lt.s32.totalorder %s20, 1
      %s242 = scalar_select %p241, %s20, 1
      %p243 = scmp.lt.s32.totalorder %s21, 2
      %s244 = scalar_select %p243, %s21, 2
      %p245 = scmp.lt.s32.totalorder %s23, 0
      %s246 = scalar_select %p245, %s23, 0
      %s247 = smul.addr %s244, 8
      %s248 = sadd.s32 %s246, %s247
      %s249 = smul.addr %s242, 24
      %s250 = sadd.s32 %s248, %s249
      %s251 = smul.addr %s250, 8
      %s252 = scalar_lea.vmem %s1, %s251
      %p253 = pneg %p95
      %p254 = pneg %p92
      %p255 = scmp.lt.s32.totalorder %s20, 1
      %s256 = scalar_select %p255, %s20, 1
      %p257 = scmp.lt.s32.totalorder %s21, 2
      %s258 = scalar_select %p257, %s21, 2
      %p259 = scmp.lt.s32.totalorder %s23, 0
      %s260 = scalar_select %p259, %s23, 0
      %s261 = sadd.s32 %s260, %s258
      %s262 = smul.addr %s256, 3
      %s263 = sadd.s32 %s261, %s262
      %s264 = scalar_lea.vmem %s2, %s263
      %p265 = pneg %p125
      %p266 = pneg %p122
      %p267 = pneg %p155
      %p268 = pneg %p152
      %p269 = scmp.lt.s32.totalorder %s20, 1
      %s270 = scalar_select %p269, %s20, 1
      %p271 = scmp.lt.s32.totalorder %s21, 2
      %s272 = scalar_select %p271, %s21, 2
      %p273 = scmp.lt.s32.totalorder %s22, 0
      %s274 = scalar_select %p273, %s22, 0
      %s275 = sadd.s32 %s274, %s272
      %s276 = smul.addr %s270, 3
      %s277 = sadd.s32 %s275, %s276
      %s278 = scalar_lea.vmem %s3, %s277
      %s279 = smul.u32 8, %s22
      %p280 = scmp.lt.s32.totalorder %s20, 1
      %s281 = scalar_select %p280, %s20, 1
      %p282 = scmp.lt.s32.totalorder %s21, 2
      %s283 = scalar_select %p282, %s21, 2
      %p284 = scmp.lt.s32.totalorder %s279, 7
      %s285 = scalar_select %p284, %s279, 7
      %s286 = smul.addr %s283, 8
      %s287 = sadd.s32 %s285, %s286
      %s288 = smul.addr %s281, 24
      %s289 = sadd.s32 %s287, %s288
      %s290 = smul.addr %s289, 8
      %s291 = scalar_lea.vmem %s0, %s290
      %s292 = smul.u32 8, %s22
      %p293 = scmp.lt.s32.totalorder %s20, 1
      %s294 = scalar_select %p293, %s20, 1
      %p295 = scmp.lt.s32.totalorder %s21, 2
      %s296 = scalar_select %p295, %s21, 2
      %p297 = scmp.lt.s32.totalorder %s23, 0
      %s298 = scalar_select %p297, %s23, 0
      %s299 = smul.addr %s296, 8
      %s300 = sadd.s32 %s298, %s299
      %s301 = smul.addr %s294, 24
      %s302 = sadd.s32 %s300, %s301
      %s303 = smul.addr %s302, 8
      %s304 = scalar_lea.vmem %s1, %s303
      %p305 = scmp.lt.s32.totalorder %s20, 1
      %s306 = scalar_select %p305, %s20, 1
      %p307 = scmp.lt.s32.totalorder %s21, 2
      %s308 = scalar_select %p307, %s21, 2
      %p309 = scmp.lt.s32.totalorder %s23, 0
      %s310 = scalar_select %p309, %s23, 0
      %s311 = sadd.s32 %s310, %s308
      %s312 = smul.addr %s306, 3
      %s313 = sadd.s32 %s311, %s312
      %s314 = scalar_lea.vmem %s2, %s313
      %p315 = scmp.lt.s32.totalorder %s20, 1
      %s316 = scalar_select %p315, %s20, 1
      %p317 = scmp.lt.s32.totalorder %s21, 2
      %s318 = scalar_select %p317, %s21, 2
      %p319 = scmp.lt.s32.totalorder %s22, 0
      %s320 = scalar_select %p319, %s22, 0
      %s321 = sadd.s32 %s320, %s318
      %s322 = smul.addr %s316, 3
      %s323 = sadd.s32 %s321, %s322
      %s324 = scalar_lea.vmem %s3, %s323
      %v326 = vld [vmem:[%s291] sm:$0xff]
      %v327 = vld [vmem:[%s291 + $0x8] sm:$0xff]
      %v328 = vld [vmem:[%s291 + $0x10] sm:$0xff]
      %v329 = vld [vmem:[%s291 + $0x18] sm:$0xff]
      %v330 = vld [vmem:[%s291 + $0x20] sm:$0xff]
      %v331 = vld [vmem:[%s291 + $0x28] sm:$0xff]
      %v332 = vld [vmem:[%s291 + $0x30] sm:$0xff]
      %v333 = vld [vmem:[%s291 + $0x38] sm:$0xff]
      %v334 = vld [vmem:[%s304] sm:$0xff]
      %v335 = vld [vmem:[%s304 + $0x8] sm:$0xff]
      %v336 = vld [vmem:[%s304 + $0x10] sm:$0xff]
      %v337 = vld [vmem:[%s304 + $0x18] sm:$0xff]
      %v338 = vld [vmem:[%s304 + $0x20] sm:$0xff]
      %v339 = vld [vmem:[%s304 + $0x28] sm:$0xff]
      %v340 = vld [vmem:[%s304 + $0x30] sm:$0xff]
      %v341 = vld [vmem:[%s304 + $0x38] sm:$0xff]
      %v342 = vld [vmem:[%s314] sm:$0x1]
      %v344 = vlaneseq
      %v345 = vshrl.u32 %v344, 7
      %v346 = vsub.s32 0, %v345
      %v347 = vrot.slane %v342, %v346
      %v349 = vmul.f32 %v334, %v347
      %v350 = vmul.f32 %v335, %v347
      %v351 = vmul.f32 %v336, %v347
      %v352 = vmul.f32 %v337, %v347
      %v353 = vmul.f32 %v338, %v347
      %v354 = vmul.f32 %v339, %v347
      %v355 = vmul.f32 %v340, %v347
      %v356 = vmul.f32 %v341, %v347
      %v357 = vmul.f32 %v326, %v326
      %v358 = vmul.f32 %v327, %v327
      %v359 = vmul.f32 %v328, %v328
      %v360 = vmul.f32 %v329, %v329
      %v361 = vmul.f32 %v330, %v330
      %v362 = vmul.f32 %v331, %v331
      %v363 = vmul.f32 %v332, %v332
      %v364 = vmul.f32 %v333, %v333
      %vm365 = vcmask 523264
      %v366 = vsel %vm365, %v357, 0.0
      %367 = vadd.xlane.f32.xlu0 %v366
      %v368 = vpop.xlane.xlu0 %367
      %v369 = vsel %vm365, %v358, 0.0
      %370 = vadd.xlane.f32.xlu0 %v369
      %v371 = vpop.xlane.xlu0 %370
      %v372 = vsel %vm365, %v359, 0.0
      %373 = vadd.xlane.f32.xlu0 %v372
      %v374 = vpop.xlane.xlu0 %373
      %v375 = vsel %vm365, %v360, 0.0
      %376 = vadd.xlane.f32.xlu0 %v375
      %v377 = vpop.xlane.xlu0 %376
      %v378 = vsel %vm365, %v361, 0.0
      %379 = vadd.xlane.f32.xlu0 %v378
      %v380 = vpop.xlane.xlu0 %379
      %v381 = vsel %vm365, %v362, 0.0
      %382 = vadd.xlane.f32.xlu0 %v381
      %v383 = vpop.xlane.xlu0 %382
      %v384 = vsel %vm365, %v363, 0.0
      %385 = vadd.xlane.f32.xlu0 %v384
      %v386 = vpop.xlane.xlu0 %385
      %v387 = vsel %vm365, %v364, 0.0
      %388 = vadd.xlane.f32.xlu0 %v387
      %v389 = vpop.xlane.xlu0 %388
      %v390 = vrsqrt.pop %v368
      %v391 = vmul.f32 %v368, %v390
      %vm392 = vcmp.eq.f32.partialorder %v368, inf
      %v393 = vsel %vm392, %v368, %v391
      %vm394 = vcmp.eq.f32.partialorder %v368, 0.0
      %v395 = vand.u32 %v368, 2147483648
      %v396 = vsel %vm394, %v395, %v393
      %v397 = vrsqrt.pop %v371
      %v398 = vmul.f32 %v371, %v397
      %vm399 = vcmp.eq.f32.partialorder %v371, inf
      %v400 = vsel %vm399, %v371, %v398
      %vm401 = vcmp.eq.f32.partialorder %v371, 0.0
      %v402 = vand.u32 %v371, 2147483648
      %v403 = vsel %vm401, %v402, %v400
      %v404 = vrsqrt.pop %v374
      %v405 = vmul.f32 %v374, %v404
      %vm406 = vcmp.eq.f32.partialorder %v374, inf
      %v407 = vsel %vm406, %v374, %v405
      %vm408 = vcmp.eq.f32.partialorder %v374, 0.0
      %v409 = vand.u32 %v374, 2147483648
      %v410 = vsel %vm408, %v409, %v407
      %v411 = vrsqrt.pop %v377
      %v412 = vmul.f32 %v377, %v411
      %vm413 = vcmp.eq.f32.partialorder %v377, inf
      %v414 = vsel %vm413, %v377, %v412
      %vm415 = vcmp.eq.f32.partialorder %v377, 0.0
      %v416 = vand.u32 %v377, 2147483648
      %v417 = vsel %vm415, %v416, %v414
      %v418 = vrsqrt.pop %v380
      %v419 = vmul.f32 %v380, %v418
      %vm420 = vcmp.eq.f32.partialorder %v380, inf
      %v421 = vsel %vm420, %v380, %v419
      %vm422 = vcmp.eq.f32.partialorder %v380, 0.0
      %v423 = vand.u32 %v380, 2147483648
      %v424 = vsel %vm422, %v423, %v421
      %v425 = vrsqrt.pop %v383
      %v426 = vmul.f32 %v383, %v425
      %vm427 = vcmp.eq.f32.partialorder %v383, inf
      %v428 = vsel %vm427, %v383, %v426
      %vm429 = vcmp.eq.f32.partialorder %v383, 0.0
      %v430 = vand.u32 %v383, 2147483648
      %v431 = vsel %vm429, %v430, %v428
      %v432 = vrsqrt.pop %v386
      %v433 = vmul.f32 %v386, %v432
      %vm434 = vcmp.eq.f32.partialorder %v386, inf
      %v435 = vsel %vm434, %v386, %v433
      %vm436 = vcmp.eq.f32.partialorder %v386, 0.0
      %v437 = vand.u32 %v386, 2147483648
      %v438 = vsel %vm436, %v437, %v435
      %v439 = vrsqrt.pop %v389
      %v440 = vmul.f32 %v389, %v439
      %vm441 = vcmp.eq.f32.partialorder %v389, inf
      %v442 = vsel %vm441, %v389, %v440
      %vm443 = vcmp.eq.f32.partialorder %v389, 0.0
      %v444 = vand.u32 %v389, 2147483648
      %v445 = vsel %vm443, %v444, %v442
      %v446 = vadd.f32 %v396, 1e-05
      %v447 = vadd.f32 %v403, 1e-05
      %v448 = vadd.f32 %v410, 1e-05
      %v449 = vadd.f32 %v417, 1e-05
      %v450 = vadd.f32 %v424, 1e-05
      %v451 = vadd.f32 %v431, 1e-05
      %v452 = vadd.f32 %v438, 1e-05
      %v453 = vadd.f32 %v445, 1e-05
      %v454 = vrcp.pop %v446
      %v455 = vrcp.pop %v447
      %v456 = vrcp.pop %v448
      %v457 = vrcp.pop %v449
      %v458 = vrcp.pop %v450
      %v459 = vrcp.pop %v451
      %v460 = vrcp.pop %v452
      %v461 = vrcp.pop %v453
      %v462 = vmul.f32 %v349, %v349
      %v463 = vmul.f32 %v350, %v350
      %v464 = vmul.f32 %v351, %v351
      %v465 = vmul.f32 %v352, %v352
      %v466 = vmul.f32 %v353, %v353
      %v467 = vmul.f32 %v354, %v354
      %v468 = vmul.f32 %v355, %v355
      %v469 = vmul.f32 %v356, %v356
      %v470 = vsel %vm365, %v462, 0.0
      %v471 = vsel %vm365, %v463, 0.0
      %v472 = vadd.f32 %v470, %v471
      %v473 = vsel %vm365, %v464, 0.0
      %v474 = vadd.f32 %v472, %v473
      %v475 = vsel %vm365, %v465, 0.0
      %v476 = vadd.f32 %v474, %v475
      %v477 = vsel %vm365, %v466, 0.0
      %v478 = vadd.f32 %v476, %v477
      %v479 = vsel %vm365, %v467, 0.0
      %v480 = vadd.f32 %v478, %v479
      %v481 = vsel %vm365, %v468, 0.0
      %v482 = vadd.f32 %v480, %v481
      %v483 = vsel %vm365, %v469, 0.0
      %v484 = vadd.f32 %v482, %v483
      %v485 = vrot.slane %v484, 4
      %v486 = vadd.f32 %v484, %v485
      %v487 = vrot.slane %v486, 2
      %v488 = vadd.f32 %v486, %v487
      %v489 = vrot.slane %v488, 1
      %v490 = vadd.f32 %v488, %v489
      %v491 = vrsqrt.pop %v490
      %v492 = vmul.f32 %v490, %v491
      %vm493 = vcmp.eq.f32.partialorder %v490, inf
      %v494 = vsel %vm493, %v490, %v492
      %vm495 = vcmp.eq.f32.partialorder %v490, 0.0
      %v496 = vand.u32 %v490, 2147483648
      %v497 = vsel %vm495, %v496, %v494
      %v498 = vadd.f32 %v497, 1e-05
      %v499 = vrcp.pop %v498
      %v500 = vmul.f32 %v326, %v454
      %v501 = vmul.f32 %v327, %v455
      %v502 = vmul.f32 %v328, %v456
      %v503 = vmul.f32 %v329, %v457
      %v504 = vmul.f32 %v330, %v458
      %v505 = vmul.f32 %v331, %v459
      %v506 = vmul.f32 %v332, %v460
      %v507 = vmul.f32 %v333, %v461
      %v508 = vpack.c.bf16 %v501, %v500
      %v509 = vpack.c.bf16 %v503, %v502
      %v510 = vpack.c.bf16 %v505, %v504
      %v511 = vpack.c.bf16 %v507, %v506
      %v512 = vmul.f32 %v349, %v499
      %v513 = vmul.f32 %v350, %v499
      %v514 = vmul.f32 %v351, %v499
      %v515 = vmul.f32 %v352, %v499
      %v516 = vmul.f32 %v353, %v499
      %v517 = vmul.f32 %v354, %v499
      %v518 = vmul.f32 %v355, %v499
      %v519 = vmul.f32 %v356, %v499
      %v520 = vpack.c.bf16 %v513, %v512
      %v521 = vpack.c.bf16 %v515, %v514
      %v522 = vpack.c.bf16 %v517, %v516
      %v523 = vpack.c.bf16 %v519, %v518
      %v525 = vsel %vm365, %v508, 0
      %v528 = vsel %vm365, %v509, 0
      %v531 = vsel %vm365, %v510, 0
      %v534 = vsel %vm365, %v511, 0
      %536 = vmatprep.subr.bf16.mxu0 0
      %537 = vmatpush1.bf16.msra.mxu0 %v520
      %538 = vmatprep.subr.bf16.mxu0 0
      %539 = vmatpush1.bf16.msra.mxu0 %v521
      %540 = vmatprep.subr.bf16.mxu0 0
      %541 = vmatpush1.bf16.msra.mxu0 %v522
      %542 = vmatprep.subr.bf16.mxu0 0
      %543 = vmatpush1.bf16.msra.mxu0 %v523
      %544 = vmatprep.subr.bf16.mxu0 0
      %545 = vmatpush1.bf16.msra.mxu0 0
      %546 = vmatprep.subr.bf16.mxu0 0
      %547 = vmatpush1.bf16.msra.mxu0 0
      %548 = vmatprep.subr.bf16.mxu0 0
      %549 = vmatpush1.bf16.msra.mxu0 0
      %550 = vmatprep.subr.bf16.mxu0 0
      %551 = vmatpush1.bf16.msra.mxu0 0
      %552 = vmatprep.subr.bf16.mxu0 0
      %553 = vmatpush1.bf16.msra.mxu0 0
      %554 = vmatprep.subr.bf16.mxu0 0
      %555 = vmatpush1.bf16.msra.mxu0 0
      %556 = vmatprep.subr.bf16.mxu0 0
      %557 = vmatpush1.bf16.msra.mxu0 0
      %558 = vmatprep.subr.bf16.mxu0 0
      %559 = vmatpush1.bf16.msra.mxu0 0
      %560 = vmatprep.subr.bf16.mxu0 0
      %561 = vmatpush1.bf16.msra.mxu0 0
      %562 = vmatprep.subr.bf16.mxu0 0
      %563 = vmatpush1.bf16.msra.mxu0 0
      %564 = vmatprep.subr.bf16.mxu0 0
      %565 = vmatpush1.bf16.msra.mxu0 0
      %566 = vmatprep.subr.bf16.mxu0 0
      %567 = vmatpush1.bf16.msra.mxu0 0
      %568 = vmatprep.mubr.bf16.mxu0 0
      %569 = vmatmul.mubr.bf16.gmra.mrb[0].mxu0 %v525
      %v570 = vpop.f32.mrb[0].mxu0
      %v571 = vadd.f32 0.0, %v570
      %v572 = vpop.f32.mrb[0].mxu0
      %v573 = vpop.f32.mrb[0].mxu0
      %v574 = vadd.f32 0.0, %v573
      %v575 = vpop.f32.mrb[0].mxu0
      %576 = vmatprep.mubr.bf16.mxu0 0
      %577 = vmatmul.mubr.bf16.gmra.mrb[0].mxu0 %v528
      %v578 = vpop.f32.mrb[0].mxu0
      %v579 = vadd.f32 0.0, %v578
      %v580 = vpop.f32.mrb[0].mxu0
      %v581 = vpop.f32.mrb[0].mxu0
      %v582 = vadd.f32 0.0, %v581
      %v583 = vpop.f32.mrb[0].mxu0
      %584 = vmatprep.mubr.bf16.mxu0 0
      %585 = vmatmul.mubr.bf16.gmra.mrb[0].mxu0 %v531
      %v586 = vpop.f32.mrb[0].mxu0
      %v587 = vadd.f32 0.0, %v586
      %v588 = vpop.f32.mrb[0].mxu0
      %v589 = vpop.f32.mrb[0].mxu0
      %v590 = vadd.f32 0.0, %v589
      %v591 = vpop.f32.mrb[0].mxu0
      %592 = vmatprep.mubr.bf16.mxu0 0
      %593 = vmatmul.mubr.bf16.gmra.mrb[0].mxu0 %v534
      %v594 = vpop.f32.mrb[0].mxu0
      %v595 = vadd.f32 0.0, %v594
      %v596 = vpop.f32.mrb[0].mxu0
      %v597 = vpop.f32.mrb[0].mxu0
      %v598 = vadd.f32 0.0, %v597
      %v599 = vpop.f32.mrb[0].mxu0
      %600 = vdwg.mxu0
      %v601 = vmax.f32 %v571, 0.0
      %v602 = vmax.f32 %v574, 0.0
      %v603 = vmax.f32 %v579, 0.0
      %v604 = vmax.f32 %v582, 0.0
      %v605 = vmax.f32 %v587, 0.0
      %v606 = vmax.f32 %v590, 0.0
      %v607 = vmax.f32 %v595, 0.0
      %v608 = vmax.f32 %v598, 0.0
      %v609 = vsel %vm365, %v601, 0.0
      %610 = vadd.xlane.f32.xlu0 %v609
      %v611 = vpop.xlane.xlu0 %610
      %v612 = vsel %vm365, %v602, 0.0
      %613 = vadd.xlane.f32.xlu0 %v612
      %v614 = vpop.xlane.xlu0 %613
      %v615 = vsel %vm365, %v603, 0.0
      %616 = vadd.xlane.f32.xlu0 %v615
      %v617 = vpop.xlane.xlu0 %616
      %v618 = vsel %vm365, %v604, 0.0
      %619 = vadd.xlane.f32.xlu0 %v618
      %v620 = vpop.xlane.xlu0 %619
      %v621 = vsel %vm365, %v605, 0.0
      %622 = vadd.xlane.f32.xlu0 %v621
      %v623 = vpop.xlane.xlu0 %622
      %v624 = vsel %vm365, %v606, 0.0
      %625 = vadd.xlane.f32.xlu0 %v624
      %v626 = vpop.xlane.xlu0 %625
      %v627 = vsel %vm365, %v607, 0.0
      %628 = vadd.xlane.f32.xlu0 %v627
      %v629 = vpop.xlane.xlu0 %628
      %v630 = vsel %vm365, %v608, 0.0
      %631 = vadd.xlane.f32.xlu0 %v630
      %v632 = vpop.xlane.xlu0 %631
      %v633 = vmul.f32 %v611, 0.015625
      %v634 = vmul.f32 %v614, 0.015625
      %v635 = vmul.f32 %v617, 0.015625
      %v636 = vmul.f32 %v620, 0.015625
      %v637 = vmul.f32 %v623, 0.015625
      %v638 = vmul.f32 %v626, 0.015625
      %v639 = vmul.f32 %v629, 0.015625
      %v640 = vmul.f32 %v632, 0.015625
      %p641 = scmp.eq.s32.totalorder %s23, 0
      // Predicated region
      $region33: #{fecanet_forward.4} parent=31 // pred_check
        %p642 = pneg %p641
      $region34: #{fecanet_forward.4} parent=31 // pred_check_branch
        %644 = sbr.rel (%p642) target = $region36
      $region35: #{fecanet_forward.4} parent=31 // pred_region
        %vm645 = vcmask 516096
        %646 = vst.msk [vmem:[%s324] sm:$0x1] %vm645, 0.0
      $region36: #{fecanet_forward.4} parent=31 // pred_fallthru
        _
      %v647 = vld [vmem:[%s324] sm:$0x1]
      %v656 = vlaneseq
      %v657 = vshrl.u32 %v656, 7
      %v658 = vsub.s32 0, %v657
      %v659 = vrot.slane %v633, %v658
      %v660 = vlaneseq
      %v661 = vshrl.u32 %v660, 7
      %v662 = vsub.s32 1, %v661
      %v663 = vrot.slane %v633, %v662
      %v664 = vlaneseq
      %v665 = vshrl.u32 %v664, 7
      %v666 = vsub.s32 2, %v665
      %v667 = vrot.slane %v633, %v666
      %v668 = vlaneseq
      %v669 = vshrl.u32 %v668, 7
      %v670 = vsub.s32 3, %v669
      %v671 = vrot.slane %v633, %v670
      %v672 = vlaneseq
      %v673 = vshrl.u32 %v672, 7
      %v674 = vsub.s32 4, %v673
      %v675 = vrot.slane %v633, %v674
      %v676 = vlaneseq
      %v677 = vshrl.u32 %v676, 7
      %v678 = vsub.s32 5, %v677
      %v679 = vrot.slane %v633, %v678
      %v680 = vlaneseq
      %v681 = vshrl.u32 %v680, 7
      %v682 = vsub.s32 6, %v681
      %v683 = vrot.slane %v633, %v682
      %v684 = vlaneseq
      %v685 = vshrl.u32 %v684, 7
      %v686 = vsub.s32 7, %v685
      %v687 = vrot.slane %v633, %v686
      %v688 = vlaneseq
      %v689 = vshrl.u32 %v688, 7
      %v690 = vsub.s32 0, %v689
      %v691 = vrot.slane %v634, %v690
      %v692 = vlaneseq
      %v693 = vshrl.u32 %v692, 7
      %v694 = vsub.s32 1, %v693
      %v695 = vrot.slane %v634, %v694
      %v696 = vlaneseq
      %v697 = vshrl.u32 %v696, 7
      %v698 = vsub.s32 2, %v697
      %v699 = vrot.slane %v634, %v698
      %v700 = vlaneseq
      %v701 = vshrl.u32 %v700, 7
      %v702 = vsub.s32 3, %v701
      %v703 = vrot.slane %v634, %v702
      %v704 = vlaneseq
      %v705 = vshrl.u32 %v704, 7
      %v706 = vsub.s32 4, %v705
      %v707 = vrot.slane %v634, %v706
      %v708 = vlaneseq
      %v709 = vshrl.u32 %v708, 7
      %v710 = vsub.s32 5, %v709
      %v711 = vrot.slane %v634, %v710
      %v712 = vlaneseq
      %v713 = vshrl.u32 %v712, 7
      %v714 = vsub.s32 6, %v713
      %v715 = vrot.slane %v634, %v714
      %v716 = vlaneseq
      %v717 = vshrl.u32 %v716, 7
      %v718 = vsub.s32 7, %v717
      %v719 = vrot.slane %v634, %v718
      %v720 = vlaneseq
      %v721 = vshrl.u32 %v720, 7
      %v722 = vsub.s32 0, %v721
      %v723 = vrot.slane %v635, %v722
      %v724 = vlaneseq
      %v725 = vshrl.u32 %v724, 7
      %v726 = vsub.s32 1, %v725
      %v727 = vrot.slane %v635, %v726
      %v728 = vlaneseq
      %v729 = vshrl.u32 %v728, 7
      %v730 = vsub.s32 2, %v729
      %v731 = vrot.slane %v635, %v730
      %v732 = vlaneseq
      %v733 = vshrl.u32 %v732, 7
      %v734 = vsub.s32 3, %v733
      %v735 = vrot.slane %v635, %v734
      %v736 = vlaneseq
      %v737 = vshrl.u32 %v736, 7
      %v738 = vsub.s32 4, %v737
      %v739 = vrot.slane %v635, %v738
      %v740 = vlaneseq
      %v741 = vshrl.u32 %v740, 7
      %v742 = vsub.s32 5, %v741
      %v743 = vrot.slane %v635, %v742
      %v744 = vlaneseq
      %v745 = vshrl.u32 %v744, 7
      %v746 = vsub.s32 6, %v745
      %v747 = vrot.slane %v635, %v746
      %v748 = vlaneseq
      %v749 = vshrl.u32 %v748, 7
      %v750 = vsub.s32 7, %v749
      %v751 = vrot.slane %v635, %v750
      %v752 = vlaneseq
      %v753 = vshrl.u32 %v752, 7
      %v754 = vsub.s32 0, %v753
      %v755 = vrot.slane %v636, %v754
      %v756 = vlaneseq
      %v757 = vshrl.u32 %v756, 7
      %v758 = vsub.s32 1, %v757
      %v759 = vrot.slane %v636, %v758
      %v760 = vlaneseq
      %v761 = vshrl.u32 %v760, 7
      %v762 = vsub.s32 2, %v761
      %v763 = vrot.slane %v636, %v762
      %v764 = vlaneseq
      %v765 = vshrl.u32 %v764, 7
      %v766 = vsub.s32 3, %v765
      %v767 = vrot.slane %v636, %v766
      %v768 = vlaneseq
      %v769 = vshrl.u32 %v768, 7
      %v770 = vsub.s32 4, %v769
      %v771 = vrot.slane %v636, %v770
      %v772 = vlaneseq
      %v773 = vshrl.u32 %v772, 7
      %v774 = vsub.s32 5, %v773
      %v775 = vrot.slane %v636, %v774
      %v776 = vlaneseq
      %v777 = vshrl.u32 %v776, 7
      %v778 = vsub.s32 6, %v777
      %v779 = vrot.slane %v636, %v778
      %v780 = vlaneseq
      %v781 = vshrl.u32 %v780, 7
      %v782 = vsub.s32 7, %v781
      %v783 = vrot.slane %v636, %v782
      %v784 = vlaneseq
      %v785 = vshrl.u32 %v784, 7
      %v786 = vsub.s32 0, %v785
      %v787 = vrot.slane %v637, %v786
      %v788 = vlaneseq
      %v789 = vshrl.u32 %v788, 7
      %v790 = vsub.s32 1, %v789
      %v791 = vrot.slane %v637, %v790
      %v792 = vlaneseq
      %v793 = vshrl.u32 %v792, 7
      %v794 = vsub.s32 2, %v793
      %v795 = vrot.slane %v637, %v794
      %v796 = vlaneseq
      %v797 = vshrl.u32 %v796, 7
      %v798 = vsub.s32 3, %v797
      %v799 = vrot.slane %v637, %v798
      %v800 = vlaneseq
      %v801 = vshrl.u32 %v800, 7
      %v802 = vsub.s32 4, %v801
      %v803 = vrot.slane %v637, %v802
      %v804 = vlaneseq
      %v805 = vshrl.u32 %v804, 7
      %v806 = vsub.s32 5, %v805
      %v807 = vrot.slane %v637, %v806
      %v808 = vlaneseq
      %v809 = vshrl.u32 %v808, 7
      %v810 = vsub.s32 6, %v809
      %v811 = vrot.slane %v637, %v810
      %v812 = vlaneseq
      %v813 = vshrl.u32 %v812, 7
      %v814 = vsub.s32 7, %v813
      %v815 = vrot.slane %v637, %v814
      %v816 = vlaneseq
      %v817 = vshrl.u32 %v816, 7
      %v818 = vsub.s32 0, %v817
      %v819 = vrot.slane %v638, %v818
      %v820 = vlaneseq
      %v821 = vshrl.u32 %v820, 7
      %v822 = vsub.s32 1, %v821
      %v823 = vrot.slane %v638, %v822
      %v824 = vlaneseq
      %v825 = vshrl.u32 %v824, 7
      %v826 = vsub.s32 2, %v825
      %v827 = vrot.slane %v638, %v826
      %v828 = vlaneseq
      %v829 = vshrl.u32 %v828, 7
      %v830 = vsub.s32 3, %v829
      %v831 = vrot.slane %v638, %v830
      %v832 = vlaneseq
      %v833 = vshrl.u32 %v832, 7
      %v834 = vsub.s32 4, %v833
      %v835 = vrot.slane %v638, %v834
      %v836 = vlaneseq
      %v837 = vshrl.u32 %v836, 7
      %v838 = vsub.s32 5, %v837
      %v839 = vrot.slane %v638, %v838
      %v840 = vlaneseq
      %v841 = vshrl.u32 %v840, 7
      %v842 = vsub.s32 6, %v841
      %v843 = vrot.slane %v638, %v842
      %v844 = vlaneseq
      %v845 = vshrl.u32 %v844, 7
      %v846 = vsub.s32 7, %v845
      %v847 = vrot.slane %v638, %v846
      %v848 = vlaneseq
      %v849 = vshrl.u32 %v848, 7
      %v850 = vsub.s32 0, %v849
      %v851 = vrot.slane %v639, %v850
      %v852 = vlaneseq
      %v853 = vshrl.u32 %v852, 7
      %v854 = vsub.s32 1, %v853
      %v855 = vrot.slane %v639, %v854
      %v856 = vlaneseq
      %v857 = vshrl.u32 %v856, 7
      %v858 = vsub.s32 2, %v857
      %v859 = vrot.slane %v639, %v858
      %v860 = vlaneseq
      %v861 = vshrl.u32 %v860, 7
      %v862 = vsub.s32 3, %v861
      %v863 = vrot.slane %v639, %v862
      %v864 = vlaneseq
      %v865 = vshrl.u32 %v864, 7
      %v866 = vsub.s32 4, %v865
      %v867 = vrot.slane %v639, %v866
      %v868 = vlaneseq
      %v869 = vshrl.u32 %v868, 7
      %v870 = vsub.s32 5, %v869
      %v871 = vrot.slane %v639, %v870
      %v872 = vlaneseq
      %v873 = vshrl.u32 %v872, 7
      %v874 = vsub.s32 6, %v873
      %v875 = vrot.slane %v639, %v874
      %v876 = vlaneseq
      %v877 = vshrl.u32 %v876, 7
      %v878 = vsub.s32 7, %v877
      %v879 = vrot.slane %v639, %v878
      %v880 = vlaneseq
      %v881 = vshrl.u32 %v880, 7
      %v882 = vsub.s32 0, %v881
      %v883 = vrot.slane %v640, %v882
      %v884 = vlaneseq
      %v885 = vshrl.u32 %v884, 7
      %v886 = vsub.s32 1, %v885
      %v887 = vrot.slane %v640, %v886
      %v888 = vlaneseq
      %v889 = vshrl.u32 %v888, 7
      %v890 = vsub.s32 2, %v889
      %v891 = vrot.slane %v640, %v890
      %v892 = vlaneseq
      %v893 = vshrl.u32 %v892, 7
      %v894 = vsub.s32 3, %v893
      %v895 = vrot.slane %v640, %v894
      %v896 = vlaneseq
      %v897 = vshrl.u32 %v896, 7
      %v898 = vsub.s32 4, %v897
      %v899 = vrot.slane %v640, %v898
      %v900 = vlaneseq
      %v901 = vshrl.u32 %v900, 7
      %v902 = vsub.s32 5, %v901
      %v903 = vrot.slane %v640, %v902
      %v904 = vlaneseq
      %v905 = vshrl.u32 %v904, 7
      %v906 = vsub.s32 6, %v905
      %v907 = vrot.slane %v640, %v906
      %v908 = vlaneseq
      %v909 = vshrl.u32 %v908, 7
      %v910 = vsub.s32 7, %v909
      %v911 = vrot.slane %v640, %v910
      %v912 = vcombine.low %v659, %v663
      %v913 = vcombine.low %v667, %v671
      %v914 = vcombine.low %v675, %v679
      %v915 = vcombine.low %v683, %v687
      %v917 = vunpack.c.l.s4 1966171168
      %v918 = vunpack.c.0.s8 %v917
      %v919 = vlaneseq
      %v920 = vshrl.u32 %v919, 7
      %v921 = vsub.s32 %v918, %v920
      %v922 = vrot.slane %v912, %v921
      %v924 = vunpack.c.l.s4 1966171168
      %v925 = vunpack.c.0.s8 %v924
      %v926 = vlaneseq
      %v927 = vshrl.u32 %v926, 7
      %v928 = vsub.s32 %v925, %v927
      %v929 = vrot.slane %v913, %v928
      %v931 = vunpack.c.l.s4 1966171168
      %v932 = vunpack.c.0.s8 %v931
      %v933 = vlaneseq
      %v934 = vshrl.u32 %v933, 7
      %v935 = vsub.s32 %v932, %v934
      %v936 = vrot.slane %v914, %v935
      %v938 = vunpack.c.l.s4 1966171168
      %v939 = vunpack.c.0.s8 %v938
      %v940 = vlaneseq
      %v941 = vshrl.u32 %v940, 7
      %v942 = vsub.s32 %v939, %v941
      %v943 = vrot.slane %v915, %v942
      %v944 = vcombine.low %v922, %v929
      %v945 = vcombine.low %v936, %v943
      %v947 = vunpack.c.l.s4 1966171168
      %v948 = vunpack.c.0.s8 %v947
      %v949 = vlaneseq
      %v950 = vshrl.u32 %v949, 7
      %v951 = vsub.s32 %v948, %v950
      %v952 = vrot.slane %v944, %v951
      %v954 = vunpack.c.l.s4 1966171168
      %v955 = vunpack.c.0.s8 %v954
      %v956 = vlaneseq
      %v957 = vshrl.u32 %v956, 7
      %v958 = vsub.s32 %v955, %v957
      %v959 = vrot.slane %v945, %v958
      %v960 = vcombine.low %v952, %v959
      %v961 = vcombine.low %v691, %v695
      %v962 = vcombine.low %v699, %v703
      %v963 = vcombine.low %v707, %v711
      %v964 = vcombine.low %v715, %v719
      %v966 = vunpack.c.l.s4 1966171168
      %v967 = vunpack.c.0.s8 %v966
      %v968 = vlaneseq
      %v969 = vshrl.u32 %v968, 7
      %v970 = vsub.s32 %v967, %v969
      %v971 = vrot.slane %v961, %v970
      %v973 = vunpack.c.l.s4 1966171168
      %v974 = vunpack.c.0.s8 %v973
      %v975 = vlaneseq
      %v976 = vshrl.u32 %v975, 7
      %v977 = vsub.s32 %v974, %v976
      %v978 = vrot.slane %v962, %v977
      %v980 = vunpack.c.l.s4 1966171168
      %v981 = vunpack.c.0.s8 %v980
      %v982 = vlaneseq
      %v983 = vshrl.u32 %v982, 7
      %v984 = vsub.s32 %v981, %v983
      %v985 = vrot.slane %v963, %v984
      %v987 = vunpack.c.l.s4 1966171168
      %v988 = vunpack.c.0.s8 %v987
      %v989 = vlaneseq
      %v990 = vshrl.u32 %v989, 7
      %v991 = vsub.s32 %v988, %v990
      %v992 = vrot.slane %v964, %v991
      %v993 = vcombine.low %v971, %v978
      %v994 = vcombine.low %v985, %v992
      %v996 = vunpack.c.l.s4 1966171168
      %v997 = vunpack.c.0.s8 %v996
      %v998 = vlaneseq
      %v999 = vshrl.u32 %v998, 7
      %v1000 = vsub.s32 %v997, %v999
      %v1001 = vrot.slane %v993, %v1000
      %v1003 = vunpack.c.l.s4 1966171168
      %v1004 = vunpack.c.0.s8 %v1003
      %v1005 = vlaneseq
      %v1006 = vshrl.u32 %v1005, 7
      %v1007 = vsub.s32 %v1004, %v1006
      %v1008 = vrot.slane %v994, %v1007
      %v1009 = vcombine.low %v1001, %v1008
      %v1010 = vcombine.low %v723, %v727
      %v1011 = vcombine.low %v731, %v735
      %v1012 = vcombine.low %v739, %v743
      %v1013 = vcombine.low %v747, %v751
      %v1015 = vunpack.c.l.s4 1966171168
      %v1016 = vunpack.c.0.s8 %v1015
      %v1017 = vlaneseq
      %v1018 = vshrl.u32 %v1017, 7
      %v1019 = vsub.s32 %v1016, %v1018
      %v1020 = vrot.slane %v1010, %v1019
      %v1022 = vunpack.c.l.s4 1966171168
      %v1023 = vunpack.c.0.s8 %v1022
      %v1024 = vlaneseq
      %v1025 = vshrl.u32 %v1024, 7
      %v1026 = vsub.s32 %v1023, %v1025
      %v1027 = vrot.slane %v1011, %v1026
      %v1029 = vunpack.c.l.s4 1966171168
      %v1030 = vunpack.c.0.s8 %v1029
      %v1031 = vlaneseq
      %v1032 = vshrl.u32 %v1031, 7
      %v1033 = vsub.s32 %v1030, %v1032
      %v1034 = vrot.slane %v1012, %v1033
      %v1036 = vunpack.c.l.s4 1966171168
      %v1037 = vunpack.c.0.s8 %v1036
      %v1038 = vlaneseq
      %v1039 = vshrl.u32 %v1038, 7
      %v1040 = vsub.s32 %v1037, %v1039
      %v1041 = vrot.slane %v1013, %v1040
      %v1042 = vcombine.low %v1020, %v1027
      %v1043 = vcombine.low %v1034, %v1041
      %v1045 = vunpack.c.l.s4 1966171168
      %v1046 = vunpack.c.0.s8 %v1045
      %v1047 = vlaneseq
      %v1048 = vshrl.u32 %v1047, 7
      %v1049 = vsub.s32 %v1046, %v1048
      %v1050 = vrot.slane %v1042, %v1049
      %v1052 = vunpack.c.l.s4 1966171168
      %v1053 = vunpack.c.0.s8 %v1052
      %v1054 = vlaneseq
      %v1055 = vshrl.u32 %v1054, 7
      %v1056 = vsub.s32 %v1053, %v1055
      %v1057 = vrot.slane %v1043, %v1056
      %v1058 = vcombine.low %v1050, %v1057
      %v1059 = vcombine.low %v755, %v759
      %v1060 = vcombine.low %v763, %v767
      %v1061 = vcombine.low %v771, %v775
      %v1062 = vcombine.low %v779, %v783
      %v1064 = vunpack.c.l.s4 1966171168
      %v1065 = vunpack.c.0.s8 %v1064
      %v1066 = vlaneseq
      %v1067 = vshrl.u32 %v1066, 7
      %v1068 = vsub.s32 %v1065, %v1067
      %v1069 = vrot.slane %v1059, %v1068
      %v1071 = vunpack.c.l.s4 1966171168
      %v1072 = vunpack.c.0.s8 %v1071
      %v1073 = vlaneseq
      %v1074 = vshrl.u32 %v1073, 7
      %v1075 = vsub.s32 %v1072, %v1074
      %v1076 = vrot.slane %v1060, %v1075
      %v1078 = vunpack.c.l.s4 1966171168
      %v1079 = vunpack.c.0.s8 %v1078
      %v1080 = vlaneseq
      %v1081 = vshrl.u32 %v1080, 7
      %v1082 = vsub.s32 %v1079, %v1081
      %v1083 = vrot.slane %v1061, %v1082
      %v1085 = vunpack.c.l.s4 1966171168
      %v1086 = vunpack.c.0.s8 %v1085
      %v1087 = vlaneseq
      %v1088 = vshrl.u32 %v1087, 7
      %v1089 = vsub.s32 %v1086, %v1088
      %v1090 = vrot.slane %v1062, %v1089
      %v1091 = vcombine.low %v1069, %v1076
      %v1092 = vcombine.low %v1083, %v1090
      %v1094 = vunpack.c.l.s4 1966171168
      %v1095 = vunpack.c.0.s8 %v1094
      %v1096 = vlaneseq
      %v1097 = vshrl.u32 %v1096, 7
      %v1098 = vsub.s32 %v1095, %v1097
      %v1099 = vrot.slane %v1091, %v1098
      %v1101 = vunpack.c.l.s4 1966171168
      %v1102 = vunpack.c.0.s8 %v1101
      %v1103 = vlaneseq
      %v1104 = vshrl.u32 %v1103, 7
      %v1105 = vsub.s32 %v1102, %v1104
      %v1106 = vrot.slane %v1092, %v1105
      %v1107 = vcombine.low %v1099, %v1106
      %v1108 = vcombine.low %v787, %v791
      %v1109 = vcombine.low %v795, %v799
      %v1110 = vcombine.low %v803, %v807
      %v1111 = vcombine.low %v811, %v815
      %v1113 = vunpack.c.l.s4 1966171168
      %v1114 = vunpack.c.0.s8 %v1113
      %v1115 = vlaneseq
      %v1116 = vshrl.u32 %v1115, 7
      %v1117 = vsub.s32 %v1114, %v1116
      %v1118 = vrot.slane %v1108, %v1117
      %v1120 = vunpack.c.l.s4 1966171168
      %v1121 = vunpack.c.0.s8 %v1120
      %v1122 = vlaneseq
      %v1123 = vshrl.u32 %v1122, 7
      %v1124 = vsub.s32 %v1121, %v1123
      %v1125 = vrot.slane %v1109, %v1124
      %v1127 = vunpack.c.l.s4 1966171168
      %v1128 = vunpack.c.0.s8 %v1127
      %v1129 = vlaneseq
      %v1130 = vshrl.u32 %v1129, 7
      %v1131 = vsub.s32 %v1128, %v1130
      %v1132 = vrot.slane %v1110, %v1131
      %v1134 = vunpack.c.l.s4 1966171168
      %v1135 = vunpack.c.0.s8 %v1134
      %v1136 = vlaneseq
      %v1137 = vshrl.u32 %v1136, 7
      %v1138 = vsub.s32 %v1135, %v1137
      %v1139 = vrot.slane %v1111, %v1138
      %v1140 = vcombine.low %v1118, %v1125
      %v1141 = vcombine.low %v1132, %v1139
      %v1143 = vunpack.c.l.s4 1966171168
      %v1144 = vunpack.c.0.s8 %v1143
      %v1145 = vlaneseq
      %v1146 = vshrl.u32 %v1145, 7
      %v1147 = vsub.s32 %v1144, %v1146
      %v1148 = vrot.slane %v1140, %v1147
      %v1150 = vunpack.c.l.s4 1966171168
      %v1151 = vunpack.c.0.s8 %v1150
      %v1152 = vlaneseq
      %v1153 = vshrl.u32 %v1152, 7
      %v1154 = vsub.s32 %v1151, %v1153
      %v1155 = vrot.slane %v1141, %v1154
      %v1156 = vcombine.low %v1148, %v1155
      %v1157 = vcombine.low %v819, %v823
      %v1158 = vcombine.low %v827, %v831
      %v1159 = vcombine.low %v835, %v839
      %v1160 = vcombine.low %v843, %v847
      %v1162 = vunpack.c.l.s4 1966171168
      %v1163 = vunpack.c.0.s8 %v1162
      %v1164 = vlaneseq
      %v1165 = vshrl.u32 %v1164, 7
      %v1166 = vsub.s32 %v1163, %v1165
      %v1167 = vrot.slane %v1157, %v1166
      %v1169 = vunpack.c.l.s4 1966171168
      %v1170 = vunpack.c.0.s8 %v1169
      %v1171 = vlaneseq
      %v1172 = vshrl.u32 %v1171, 7
      %v1173 = vsub.s32 %v1170, %v1172
      %v1174 = vrot.slane %v1158, %v1173
      %v1176 = vunpack.c.l.s4 1966171168
      %v1177 = vunpack.c.0.s8 %v1176
      %v1178 = vlaneseq
      %v1179 = vshrl.u32 %v1178, 7
      %v1180 = vsub.s32 %v1177, %v1179
      %v1181 = vrot.slane %v1159, %v1180
      %v1183 = vunpack.c.l.s4 1966171168
      %v1184 = vunpack.c.0.s8 %v1183
      %v1185 = vlaneseq
      %v1186 = vshrl.u32 %v1185, 7
      %v1187 = vsub.s32 %v1184, %v1186
      %v1188 = vrot.slane %v1160, %v1187
      %v1189 = vcombine.low %v1167, %v1174
      %v1190 = vcombine.low %v1181, %v1188
      %v1192 = vunpack.c.l.s4 1966171168
      %v1193 = vunpack.c.0.s8 %v1192
      %v1194 = vlaneseq
      %v1195 = vshrl.u32 %v1194, 7
      %v1196 = vsub.s32 %v1193, %v1195
      %v1197 = vrot.slane %v1189, %v1196
      %v1199 = vunpack.c.l.s4 1966171168
      %v1200 = vunpack.c.0.s8 %v1199
      %v1201 = vlaneseq
      %v1202 = vshrl.u32 %v1201, 7
      %v1203 = vsub.s32 %v1200, %v1202
      %v1204 = vrot.slane %v1190, %v1203
      %v1205 = vcombine.low %v1197, %v1204
      %v1206 = vcombine.low %v851, %v855
      %v1207 = vcombine.low %v859, %v863
      %v1208 = vcombine.low %v867, %v871
      %v1209 = vcombine.low %v875, %v879
      %v1211 = vunpack.c.l.s4 1966171168
      %v1212 = vunpack.c.0.s8 %v1211
      %v1213 = vlaneseq
      %v1214 = vshrl.u32 %v1213, 7
      %v1215 = vsub.s32 %v1212, %v1214
      %v1216 = vrot.slane %v1206, %v1215
      %v1218 = vunpack.c.l.s4 1966171168
      %v1219 = vunpack.c.0.s8 %v1218
      %v1220 = vlaneseq
      %v1221 = vshrl.u32 %v1220, 7
      %v1222 = vsub.s32 %v1219, %v1221
      %v1223 = vrot.slane %v1207, %v1222
      %v1225 = vunpack.c.l.s4 1966171168
      %v1226 = vunpack.c.0.s8 %v1225
      %v1227 = vlaneseq
      %v1228 = vshrl.u32 %v1227, 7
      %v1229 = vsub.s32 %v1226, %v1228
      %v1230 = vrot.slane %v1208, %v1229
      %v1232 = vunpack.c.l.s4 1966171168
      %v1233 = vunpack.c.0.s8 %v1232
      %v1234 = vlaneseq
      %v1235 = vshrl.u32 %v1234, 7
      %v1236 = vsub.s32 %v1233, %v1235
      %v1237 = vrot.slane %v1209, %v1236
      %v1238 = vcombine.low %v1216, %v1223
      %v1239 = vcombine.low %v1230, %v1237
      %v1241 = vunpack.c.l.s4 1966171168
      %v1242 = vunpack.c.0.s8 %v1241
      %v1243 = vlaneseq
      %v1244 = vshrl.u32 %v1243, 7
      %v1245 = vsub.s32 %v1242, %v1244
      %v1246 = vrot.slane %v1238, %v1245
      %v1248 = vunpack.c.l.s4 1966171168
      %v1249 = vunpack.c.0.s8 %v1248
      %v1250 = vlaneseq
      %v1251 = vshrl.u32 %v1250, 7
      %v1252 = vsub.s32 %v1249, %v1251
      %v1253 = vrot.slane %v1239, %v1252
      %v1254 = vcombine.low %v1246, %v1253
      %v1255 = vcombine.low %v883, %v887
      %v1256 = vcombine.low %v891, %v895
      %v1257 = vcombine.low %v899, %v903
      %v1258 = vcombine.low %v907, %v911
      %v1260 = vunpack.c.l.s4 1966171168
      %v1261 = vunpack.c.0.s8 %v1260
      %v1262 = vlaneseq
      %v1263 = vshrl.u32 %v1262, 7
      %v1264 = vsub.s32 %v1261, %v1263
      %v1265 = vrot.slane %v1255, %v1264
      %v1267 = vunpack.c.l.s4 1966171168
      %v1268 = vunpack.c.0.s8 %v1267
      %v1269 = vlaneseq
      %v1270 = vshrl.u32 %v1269, 7
      %v1271 = vsub.s32 %v1268, %v1270
      %v1272 = vrot.slane %v1256, %v1271
      %v1274 = vunpack.c.l.s4 1966171168
      %v1275 = vunpack.c.0.s8 %v1274
      %v1276 = vlaneseq
      %v1277 = vshrl.u32 %v1276, 7
      %v1278 = vsub.s32 %v1275, %v1277
      %v1279 = vrot.slane %v1257, %v1278
      %v1281 = vunpack.c.l.s4 1966171168
      %v1282 = vunpack.c.0.s8 %v1281
      %v1283 = vlaneseq
      %v1284 = vshrl.u32 %v1283, 7
      %v1285 = vsub.s32 %v1282, %v1284
      %v1286 = vrot.slane %v1258, %v1285
      %v1287 = vcombine.low %v1265, %v1272
      %v1288 = vcombine.low %v1279, %v1286
      %v1290 = vunpack.c.l.s4 1966171168
      %v1291 = vunpack.c.0.s8 %v1290
      %v1292 = vlaneseq
      %v1293 = vshrl.u32 %v1292, 7
      %v1294 = vsub.s32 %v1291, %v1293
      %v1295 = vrot.slane %v1287, %v1294
      %v1297 = vunpack.c.l.s4 1966171168
      %v1298 = vunpack.c.0.s8 %v1297
      %v1299 = vlaneseq
      %v1300 = vshrl.u32 %v1299, 7
      %v1301 = vsub.s32 %v1298, %v1300
      %v1302 = vrot.slane %v1288, %v1301
      %v1303 = vcombine.low %v1295, %v1302
      %1304 = vset.pattern.permute.xlu0 0
      %1305 = vperm.xlu0 %1304, %v960
      %v1306 = vpop.permute.xlu0 %1305
      %1307 = vset.pattern.permute.xlu0 0
      %1308 = vperm.xlu0 %1307, %v1009
      %v1309 = vpop.permute.xlu0 %1308
      %1310 = vset.pattern.permute.xlu0 0
      %1311 = vperm.xlu0 %1310, %v1058
      %v1312 = vpop.permute.xlu0 %1311
      %1313 = vset.pattern.permute.xlu0 0
      %1314 = vperm.xlu0 %1313, %v1107
      %v1315 = vpop.permute.xlu0 %1314
      %1316 = vset.pattern.permute.xlu0 0
      %1317 = vperm.xlu0 %1316, %v1156
      %v1318 = vpop.permute.xlu0 %1317
      %1319 = vset.pattern.permute.xlu0 0
      %1320 = vperm.xlu0 %1319, %v1205
      %v1321 = vpop.permute.xlu0 %1320
      %1322 = vset.pattern.permute.xlu0 0
      %1323 = vperm.xlu0 %1322, %v1254
      %v1324 = vpop.permute.xlu0 %1323
      %1325 = vset.pattern.permute.xlu0 0
      %1326 = vperm.xlu0 %1325, %v1303
      %v1327 = vpop.permute.xlu0 %1326
      %v1328 = vlaneseq
      %v1329 = vand.u32 %v1328, 127
      %v1330 = vlaneseq
      %v1331 = vshrl.u32 %v1330, 7
      %v1332 = vsub.s32 %v1329, %v1331
      %v1333 = vrot.slane %v1306, %v1332
      %v1334 = vadd.s32 %v1329, 4294967288
      %v1335 = vlaneseq
      %v1336 = vshrl.u32 %v1335, 7
      %v1337 = vsub.s32 %v1334, %v1336
      %v1338 = vrot.slane %v1309, %v1337
      %vm1339 = vcmask 130112
      %v1340 = vsel %vm1339, %v1338, %v1333
      %v1341 = vadd.s32 %v1329, 4294967280
      %v1342 = vlaneseq
      %v1343 = vshrl.u32 %v1342, 7
      %v1344 = vsub.s32 %v1341, %v1343
      %v1345 = vrot.slane %v1312, %v1344
      %vm1346 = vcmask 195712
      %v1347 = vsel %vm1346, %v1345, %v1340
      %v1348 = vadd.s32 %v1329, 4294967272
      %v1349 = vlaneseq
      %v1350 = vshrl.u32 %v1349, 7
      %v1351 = vsub.s32 %v1348, %v1350
      %v1352 = vrot.slane %v1315, %v1351
      %vm1353 = vcmask 261312
      %v1354 = vsel %vm1353, %v1352, %v1347
      %v1355 = vadd.s32 %v1329, 4294967264
      %v1356 = vlaneseq
      %v1357 = vshrl.u32 %v1356, 7
      %v1358 = vsub.s32 %v1355, %v1357
      %v1359 = vrot.slane %v1318, %v1358
      %vm1360 = vcmask 326912
      %v1361 = vsel %vm1360, %v1359, %v1354
      %v1362 = vadd.s32 %v1329, 4294967256
      %v1363 = vlaneseq
      %v1364 = vshrl.u32 %v1363, 7
      %v1365 = vsub.s32 %v1362, %v1364
      %v1366 = vrot.slane %v1321, %v1365
      %vm1367 = vcmask 392512
      %v1368 = vsel %vm1367, %v1366, %v1361
      %v1369 = vadd.s32 %v1329, 4294967248
      %v1370 = vlaneseq
      %v1371 = vshrl.u32 %v1370, 7
      %v1372 = vsub.s32 %v1369, %v1371
      %v1373 = vrot.slane %v1324, %v1372
      %vm1374 = vcmask 458112
      %v1375 = vsel %vm1374, %v1373, %v1368
      %v1376 = vadd.s32 %v1329, 4294967240
      %v1377 = vlaneseq
      %v1378 = vshrl.u32 %v1377, 7
      %v1379 = vsub.s32 %v1376, %v1378
      %v1380 = vrot.slane %v1327, %v1379
      %vm1381 = vcmask 523712
      %v1382 = vsel %vm1381, %v1380, %v1375
      %v1384 = vunpack.c.l.s4 1966171168
      %v1385 = vunpack.c.0.s8 %v1384
      %v1386 = vlaneseq
      %v1387 = vshrl.u32 %v1386, 7
      %v1388 = vsub.s32 %v1385, %v1387
      %v1389 = vrot.slane %v1382, %v1388
      %v1391 = vunpack.c.l.s4 1966171168
      %v1392 = vunpack.c.0.s8 %v1391
      %v1393 = vlaneseq
      %v1394 = vshrl.u32 %v1393, 7
      %v1395 = vsub.s32 %v1392, %v1394
      %v1396 = vrot.slane %v1389, %v1395
      %v1398 = vadd.f32 %v647, %v1396
      %vm1399 = vcmask 516096
      %1400 = vst.msk [vmem:[%s324] sm:$0x1] %vm1399, %v1398
      %p1401 = scmp.lt.s32.totalorder %s20, 1
      %s1402 = scalar_select %p1401, %s20, 1
      %p1403 = scmp.lt.s32.totalorder %s21, 2
      %s1404 = scalar_select %p1403, %s21, 2
      %p1405 = scmp.lt.s32.totalorder %s22, 0
      %s1406 = scalar_select %p1405, %s22, 0
      %s1407 = sadd.s32 %s1406, %s1404
      %s1408 = smul.addr %s1402, 3
      %s1409 = sadd.s32 %s1407, %s1408
      %s1410 = scalar_lea.vmem %s3, %s1409
      // Predicated region
      $region37: #{fecanet_forward.4} parent=31 // pred_check
        %p1411 = pneg %p152
      $region38: #{fecanet_forward.4} parent=31 // pred_check_branch
        %1413 = sbr.rel (%p1411) target = $region40
      $region39: #{fecanet_forward.4} parent=31 // pred_region
        _
      $region40: #{fecanet_forward.4} parent=31 // pred_fallthru
        _
    $region32: #{fecanet_forward.4} parent=5 // pred_fallthru
      _
    %p1414 = scmp.le.s32.totalorder 2, %s9
    // Predicated region
    $region41: #{fecanet_forward.4} parent=5 // pred_check
      %p1415 = pneg %p1414
    $region42: #{fecanet_forward.4} parent=5 // pred_check_branch
      %1417 = sbr.rel (%p1415) target = $region44
    $region43: #{fecanet_forward.4} parent=5 // pred_region
      %s1418 = ssub.s32 %s9, 2
      // Predicated region
      $region45: #{fecanet_forward.4} parent=43 // pred_check
        %p1419 = pneg %p158
      $region46: #{fecanet_forward.4} parent=43 // pred_check_branch
        %1421 = sbr.rel (%p1419) target = $region48
      $region47: #{fecanet_forward.4} parent=43 // pred_region
        %p1422 = scmp.lt.s32.totalorder %s24, 1
        %s1423 = scalar_select %p1422, %s24, 1
        %p1424 = scmp.lt.s32.totalorder %s25, 2
        %s1425 = scalar_select %p1424, %s25, 2
        %p1426 = scmp.lt.s32.totalorder %s26, 0
        %s1427 = scalar_select %p1426, %s26, 0
        %s1428 = sadd.s32 %s1427, %s1425
        %s1429 = smul.addr %s1423, 3
        %s1430 = sadd.s32 %s1428, %s1429
        %s1431 = scalar_lea.vmem %s3, %s1430
      $region48: #{fecanet_forward.4} parent=43 // pred_fallthru
        _
    $region44: #{fecanet_forward.4} parent=5 // pred_fallthru
      _
  $region6: #{fecanet_forward.4} parent=0 // loop_footer
    %s13 = sadd.s32 1, %s9
  $region7: #{fecanet_forward.4} parent=0 // loop_footer_branch
    %8 = sbr.rel target = $region3
  $region8: #{fecanet_forward.4} parent=0 // loop_exit
    _

// kernel: fecanet_forward.5
$region0: #{fecanet_forward.5}
  #allocation0 [shape = 'u32[]', space=smem, size = 0x4, offset = 0x4, fixed_abs, tag = 'smem constant byte address 0x4 - core index']
  #allocation1 [shape = 'u32[144,128]{1,0:T(1,128)}', space=vmem, size = 0x12000, scoped, tag = 'internal scratch']
  %s0 = inlined_call_operand.vmem [shape: f32[2,3,16,64], index: 0, kind: input, shape index: {}]
  %s1 = inlined_call_operand.vmem [shape: f32[2,3,64,16], index: 1, kind: input, shape index: {}]
  %s2 = inlined_call_operand.vmem [shape: f32[2,3,1,16], index: 2, kind: input, shape index: {}]
  %s3 = inlined_call_operand.vmem [shape: f32[2,3,1,16], index: 3, kind: output, shape index: {}]
  %s4 = sld [smem:[#allocation0]]
  $region49: #{fecanet_forward.5} parent=0
    _
  %s6 = ssub.s32 1, %s4
  %s7 = scalar_select 0, %s6, %s4
  loop: start=0, step=1, limit=8
  $region2: #{fecanet_forward.5} parent=0 // loop_pre_header
    _
  $region3: #{fecanet_forward.5} parent=0 // loop_header
    %s9 = sphi 0, %s13
    %p10 = scmp.ge.s32.totalorder %s9, 8
    %s16 = sphi 0, %s42
    %s17 = sphi 0, %s38
    %s18 = sphi 0, %s34
    %s19 = sphi 0, %s30
    %s20 = sphi 0, %s16
    %s21 = sphi 0, %s17
    %s22 = sphi 0, %s18
    %s23 = sphi 0, %s19
    %s24 = sphi 0, %s20
    %s25 = sphi 0, %s21
    %s26 = sphi 0, %s22
    %s27 = sphi 0, %s23
    %s49 = sphi 0, %s51
    %s52 = sphi 0, %s49
    %s53 = sphi 0, %s52
    %s69 = sphi 0, %s53
    %s79 = sphi 0, %s81
    %s82 = sphi 0, %s79
    %s83 = sphi 0, %s82
    %s99 = sphi 0, %s83
    %s109 = sphi 0, %s111
    %s112 = sphi 0, %s109
    %s113 = sphi 0, %s112
    %s129 = sphi 0, %s113
    %s139 = sphi 0, %s141
    %s142 = sphi 0, %s139
    %s143 = sphi 0, %s142
    %s159 = sphi 0, %s143
  $region4: #{fecanet_forward.5} parent=0 // loop_header_branch
    %12 = sbr.rel (%p10) target = $region8
  $region5: #{fecanet_forward.5} parent=0 // loop_body
    %s14 = ssub.s32 %s9, 1
    %s15 = ssub.s32 %s9, 2
    %s28 = sadd.s32 1, %s19
    %p29 = scmp.ge.s32.totalorder %s28, 1
    %s30 = scalar_select %p29, 0, %s28
    %s31 = sadd.s32 1, %s18
    %s32 = scalar_select %p29, %s31, %s18
    %p33 = scmp.ge.s32.totalorder %s32, 1
    %s34 = scalar_select %p33, 0, %s32
    %s35 = sadd.s32 1, %s17
    %s36 = scalar_select %p33, %s35, %s17
    %p37 = scmp.ge.s32.totalorder %s36, 3
    %s38 = scalar_select %p37, 0, %s36
    %s39 = sadd.s32 1, %s16
    %s40 = scalar_select %p37, %s39, %s16
    %p41 = scmp.ge.s32.totalorder %s40, 2
    %s42 = scalar_select %p41, 0, %s40
    %s43 = ssub.s32 %s16, %s42
    %s44 = ssub.s32 %s17, %s38
    %s45 = sor.u32 %s43, %s44
    %s46 = ssub.s32 %s18, %s34
    %s47 = sor.u32 %s45, %s46
    %p48 = scmp.eq.s32.totalorder %s47, 0
    %s50 = sadd.s32 %s49, 1
    %s51 = scalar_select %p48, %s49, %s50
    %p54 = pneg %p48
    %p55 = scmp.eq.s32.totalorder %s9, 5
    %p56 = por %p54, %p55
    %p57 = scmp.ne.s32.totalorder %s49, %s52
    %p58 = scmp.eq.s32.totalorder %s9, 0
    %p59 = por %p57, %p58
    %p60 = scmp.ne.s32.totalorder %s49, %s52
    %p61 = scmp.eq.s32.totalorder %s14, 5
    %p62 = por %p60, %p61
    %p63 = scmp.ne.s32.totalorder %s52, %s53
    %p64 = scmp.eq.s32.totalorder %s14, 0
    %p65 = por %p63, %p64
    %p66 = scmp.ne.s32.totalorder %s52, %s53
    %p67 = scmp.eq.s32.totalorder %s15, 5
    %p68 = por %p66, %p67
    %p70 = scmp.ne.s32.totalorder %s53, %s69
    %p71 = scmp.eq.s32.totalorder %s15, 0
    %p72 = por %p70, %p71
    %s73 = ssub.s32 %s16, %s42
    %s74 = ssub.s32 %s17, %s38
    %s75 = sor.u32 %s73, %s74
    %s76 = ssub.s32 %s19, %s30
    %s77 = sor.u32 %s75, %s76
    %p78 = scmp.eq.s32.totalorder %s77, 0
    %s80 = sadd.s32 %s79, 1
    %s81 = scalar_select %p78, %s79, %s80
    %p84 = pneg %p78
    %p85 = scmp.eq.s32.totalorder %s9, 5
    %p86 = por %p84, %p85
    %p87 = scmp.ne.s32.totalorder %s79, %s82
    %p88 = scmp.eq.s32.totalorder %s9, 0
    %p89 = por %p87, %p88
    %p90 = scmp.ne.s32.totalorder %s79, %s82
    %p91 = scmp.eq.s32.totalorder %s14, 5
    %p92 = por %p90, %p91
    %p93 = scmp.ne.s32.totalorder %s82, %s83
    %p94 = scmp.eq.s32.totalorder %s14, 0
    %p95 = por %p93, %p94
    %p96 = scmp.ne.s32.totalorder %s82, %s83
    %p97 = scmp.eq.s32.totalorder %s15, 5
    %p98 = por %p96, %p97
    %p100 = scmp.ne.s32.totalorder %s83, %s99
    %p101 = scmp.eq.s32.totalorder %s15, 0
    %p102 = por %p100, %p101
    %s103 = ssub.s32 %s16, %s42
    %s104 = ssub.s32 %s17, %s38
    %s105 = sor.u32 %s103, %s104
    %s106 = ssub.s32 %s19, %s30
    %s107 = sor.u32 %s105, %s106
    %p108 = scmp.eq.s32.totalorder %s107, 0
    %s110 = sadd.s32 %s109, 1
    %s111 = scalar_select %p108, %s109, %s110
    %p114 = pneg %p108
    %p115 = scmp.eq.s32.totalorder %s9, 5
    %p116 = por %p114, %p115
    %p117 = scmp.ne.s32.totalorder %s109, %s112
    %p118 = scmp.eq.s32.totalorder %s9, 0
    %p119 = por %p117, %p118
    %p120 = scmp.ne.s32.totalorder %s109, %s112
    %p121 = scmp.eq.s32.totalorder %s14, 5
    %p122 = por %p120, %p121
    %p123 = scmp.ne.s32.totalorder %s112, %s113
    %p124 = scmp.eq.s32.totalorder %s14, 0
    %p125 = por %p123, %p124
    %p126 = scmp.ne.s32.totalorder %s112, %s113
    %p127 = scmp.eq.s32.totalorder %s15, 5
    %p128 = por %p126, %p127
    %p130 = scmp.ne.s32.totalorder %s113, %s129
    %p131 = scmp.eq.s32.totalorder %s15, 0
    %p132 = por %p130, %p131
    %s133 = ssub.s32 %s16, %s42
    %s134 = ssub.s32 %s17, %s38
    %s135 = sor.u32 %s133, %s134
    %s136 = ssub.s32 %s18, %s34
    %s137 = sor.u32 %s135, %s136
    %p138 = scmp.eq.s32.totalorder %s137, 0
    %s140 = sadd.s32 %s139, 1
    %s141 = scalar_select %p138, %s139, %s140
    %p144 = pneg %p138
    %p145 = scmp.eq.s32.totalorder %s9, 5
    %p146 = por %p144, %p145
    %p147 = scmp.ne.s32.totalorder %s139, %s142
    %p148 = scmp.eq.s32.totalorder %s9, 0
    %p149 = por %p147, %p148
    %p150 = scmp.ne.s32.totalorder %s139, %s142
    %p151 = scmp.eq.s32.totalorder %s14, 5
    %p152 = por %p150, %p151
    %p153 = scmp.ne.s32.totalorder %s142, %s143
    %p154 = scmp.eq.s32.totalorder %s14, 0
    %p155 = por %p153, %p154
    %p156 = scmp.ne.s32.totalorder %s142, %s143
    %p157 = scmp.eq.s32.totalorder %s15, 5
    %p158 = por %p156, %p157
    %p160 = scmp.ne.s32.totalorder %s143, %s159
    %p161 = scmp.eq.s32.totalorder %s15, 0
    %p162 = por %p160, %p161
    %p163 = scmp.le.s32.totalorder 1, %s9
    %p164 = scmp.lt.s32.totalorder %s9, 7
    %p165 = pnand %p163, %p164
    %p166 = pneg %p165
    // Predicated region
    $region9: #{fecanet_forward.5} parent=5 // pred_check
      _
    $region10: #{fecanet_forward.5} parent=5 // pred_check_branch
      %168 = sbr.rel (%p165) target = $region12
    $region11: #{fecanet_forward.5} parent=5 // pred_region
      %s169 = ssub.s32 %s9, 1
    $region12: #{fecanet_forward.5} parent=5 // pred_fallthru
      _
    %p170 = scmp.lt.s32.totalorder %s9, 6
    // Predicated region
    $region13: #{fecanet_forward.5} parent=5 // pred_check
      %p171 = pneg %p170
    $region14: #{fecanet_forward.5} parent=5 // pred_check_branch
      %173 = sbr.rel (%p171) target = $region16
    $region15: #{fecanet_forward.5} parent=5 // pred_region
      // Predicated region
      $region17: #{fecanet_forward.5} parent=15 // pred_check
        %p174 = pneg %p59
      $region18: #{fecanet_forward.5} parent=15 // pred_check_branch
        %176 = sbr.rel (%p174) target = $region20
      $region19: #{fecanet_forward.5} parent=15 // pred_region
        %s177 = smul.u32 2, %s18
        %p178 = scmp.lt.s32.totalorder %s16, 1
        %s179 = scalar_select %p178, %s16, 1
        %p180 = scmp.lt.s32.totalorder %s17, 2
        %s181 = scalar_select %p180, %s17, 2
        %p182 = scmp.lt.s32.totalorder %s177, 1
        %s183 = scalar_select %p182, %s177, 1
        %s184 = smul.addr %s181, 2
        %s185 = sadd.s32 %s183, %s184
        %s186 = smul.addr %s179, 6
        %s187 = sadd.s32 %s185, %s186
        %s188 = smul.addr %s187, 8
        %s189 = scalar_lea.vmem %s0, %s188
        %s190 = smul.u32 2, %s18
      $region20: #{fecanet_forward.5} parent=15 // pred_fallthru
        _
      // Predicated region
      $region21: #{fecanet_forward.5} parent=15 // pred_check
        %p191 = pneg %p89
      $region22: #{fecanet_forward.5} parent=15 // pred_check_branch
        %193 = sbr.rel (%p191) target = $region24
      $region23: #{fecanet_forward.5} parent=15 // pred_region
        %p194 = scmp.lt.s32.totalorder %s16, 1
        %s195 = scalar_select %p194, %s16, 1
        %p196 = scmp.lt.s32.totalorder %s17, 2
        %s197 = scalar_select %p196, %s17, 2
        %p198 = scmp.lt.s32.totalorder %s19, 0
        %s199 = scalar_select %p198, %s19, 0
        %s200 = smul.addr %s197, 8
        %s201 = sadd.s32 %s199, %s200
        %s202 = smul.addr %s195, 24
        %s203 = sadd.s32 %s201, %s202
        %s204 = smul.addr %s203, 8
        %s205 = scalar_lea.vmem %s1, %s204
      $region24: #{fecanet_forward.5} parent=15 // pred_fallthru
        _
      // Predicated region
      $region25: #{fecanet_forward.5} parent=15 // pred_check
        %p206 = pneg %p119
      $region26: #{fecanet_forward.5} parent=15 // pred_check_branch
        %208 = sbr.rel (%p206) target = $region28
      $region27: #{fecanet_forward.5} parent=15 // pred_region
        %p209 = scmp.lt.s32.totalorder %s16, 1
        %s210 = scalar_select %p209, %s16, 1
        %p211 = scmp.lt.s32.totalorder %s17, 2
        %s212 = scalar_select %p211, %s17, 2
        %p213 = scmp.lt.s32.totalorder %s19, 0
        %s214 = scalar_select %p213, %s19, 0
        %s215 = sadd.s32 %s214, %s212
        %s216 = smul.addr %s210, 3
        %s217 = sadd.s32 %s215, %s216
        %s218 = scalar_lea.vmem %s2, %s217
      $region28: #{fecanet_forward.5} parent=15 // pred_fallthru
        _
    $region16: #{fecanet_forward.5} parent=5 // pred_fallthru
      _
    %p219 = scmp.le.s32.totalorder 1, %s9
    %p220 = scmp.lt.s32.totalorder %s9, 7
    %p221 = pnand %p219, %p220
    %p222 = pneg %p221
    // Predicated region
    $region29: #{fecanet_forward.5} parent=5 // pred_check
      _
    $region30: #{fecanet_forward.5} parent=5 // pred_check_branch
      %224 = sbr.rel (%p221) target = $region32
    $region31: #{fecanet_forward.5} parent=5 // pred_region
      %s225 = ssub.s32 %s9, 1
      %s226 = smul.u32 2, %s22
      %p227 = scmp.lt.s32.totalorder %s20, 1
      %s228 = scalar_select %p227, %s20, 1
      %p229 = scmp.lt.s32.totalorder %s21, 2
      %s230 = scalar_select %p229, %s21, 2
      %p231 = scmp.lt.s32.totalorder %s226, 1
      %s232 = scalar_select %p231, %s226, 1
      %s233 = smul.addr %s230, 2
      %s234 = sadd.s32 %s232, %s233
      %s235 = smul.addr %s228, 6
      %s236 = sadd.s32 %s234, %s235
      %s237 = smul.addr %s236, 8
      %s238 = scalar_lea.vmem %s0, %s237
      %p239 = pneg %p65
      %p240 = pneg %p62
      %p241 = scmp.lt.s32.totalorder %s20, 1
      %s242 = scalar_select %p241, %s20, 1
      %p243 = scmp.lt.s32.totalorder %s21, 2
      %s244 = scalar_select %p243, %s21, 2
      %p245 = scmp.lt.s32.totalorder %s23, 0
      %s246 = scalar_select %p245, %s23, 0
      %s247 = smul.addr %s244, 8
      %s248 = sadd.s32 %s246, %s247
      %s249 = smul.addr %s242, 24
      %s250 = sadd.s32 %s248, %s249
      %s251 = smul.addr %s250, 8
      %s252 = scalar_lea.vmem %s1, %s251
      %p253 = pneg %p95
      %p254 = pneg %p92
      %p255 = scmp.lt.s32.totalorder %s20, 1
      %s256 = scalar_select %p255, %s20, 1
      %p257 = scmp.lt.s32.totalorder %s21, 2
      %s258 = scalar_select %p257, %s21, 2
      %p259 = scmp.lt.s32.totalorder %s23, 0
      %s260 = scalar_select %p259, %s23, 0
      %s261 = sadd.s32 %s260, %s258
      %s262 = smul.addr %s256, 3
      %s263 = sadd.s32 %s261, %s262
      %s264 = scalar_lea.vmem %s2, %s263
      %p265 = pneg %p125
      %p266 = pneg %p122
      %p267 = pneg %p155
      %p268 = pneg %p152
      %p269 = scmp.lt.s32.totalorder %s20, 1
      %s270 = scalar_select %p269, %s20, 1
      %p271 = scmp.lt.s32.totalorder %s21, 2
      %s272 = scalar_select %p271, %s21, 2
      %p273 = scmp.lt.s32.totalorder %s22, 0
      %s274 = scalar_select %p273, %s22, 0
      %s275 = sadd.s32 %s274, %s272
      %s276 = smul.addr %s270, 3
      %s277 = sadd.s32 %s275, %s276
      %s278 = scalar_lea.vmem %s3, %s277
      %s279 = smul.u32 2, %s22
      %p280 = scmp.lt.s32.totalorder %s20, 1
      %s281 = scalar_select %p280, %s20, 1
      %p282 = scmp.lt.s32.totalorder %s21, 2
      %s283 = scalar_select %p282, %s21, 2
      %p284 = scmp.lt.s32.totalorder %s279, 1
      %s285 = scalar_select %p284, %s279, 1
      %s286 = smul.addr %s283, 2
      %s287 = sadd.s32 %s285, %s286
      %s288 = smul.addr %s281, 6
      %s289 = sadd.s32 %s287, %s288
      %s290 = smul.addr %s289, 8
      %s291 = scalar_lea.vmem %s0, %s290
      %s292 = smul.u32 2, %s22
      %p293 = scmp.lt.s32.totalorder %s20, 1
      %s294 = scalar_select %p293, %s20, 1
      %p295 = scmp.lt.s32.totalorder %s21, 2
      %s296 = scalar_select %p295, %s21, 2
      %p297 = scmp.lt.s32.totalorder %s23, 0
      %s298 = scalar_select %p297, %s23, 0
      %s299 = smul.addr %s296, 8
      %s300 = sadd.s32 %s298, %s299
      %s301 = smul.addr %s294, 24
      %s302 = sadd.s32 %s300, %s301
      %s303 = smul.addr %s302, 8
      %s304 = scalar_lea.vmem %s1, %s303
      %p305 = scmp.lt.s32.totalorder %s20, 1
      %s306 = scalar_select %p305, %s20, 1
      %p307 = scmp.lt.s32.totalorder %s21, 2
      %s308 = scalar_select %p307, %s21, 2
      %p309 = scmp.lt.s32.totalorder %s23, 0
      %s310 = scalar_select %p309, %s23, 0
      %s311 = sadd.s32 %s310, %s308
      %s312 = smul.addr %s306, 3
      %s313 = sadd.s32 %s311, %s312
      %s314 = scalar_lea.vmem %s2, %s313
      %p315 = scmp.lt.s32.totalorder %s20, 1
      %s316 = scalar_select %p315, %s20, 1
      %p317 = scmp.lt.s32.totalorder %s21, 2
      %s318 = scalar_select %p317, %s21, 2
      %p319 = scmp.lt.s32.totalorder %s22, 0
      %s320 = scalar_select %p319, %s22, 0
      %s321 = sadd.s32 %s320, %s318
      %s322 = smul.addr %s316, 3
      %s323 = sadd.s32 %s321, %s322
      %s324 = scalar_lea.vmem %s3, %s323
      %v326 = vld [vmem:[%s291] sm:$0xff]
      %v327 = vld [vmem:[%s291 + $0x8] sm:$0xff]
      %v328 = vld [vmem:[%s304] sm:$0xff]
      %v329 = vld [vmem:[%s304 + $0x8] sm:$0xff]
      %v330 = vld [vmem:[%s304 + $0x10] sm:$0xff]
      %v331 = vld [vmem:[%s304 + $0x18] sm:$0xff]
      %v332 = vld [vmem:[%s304 + $0x20] sm:$0xff]
      %v333 = vld [vmem:[%s304 + $0x28] sm:$0xff]
      %v334 = vld [vmem:[%s304 + $0x30] sm:$0xff]
      %v335 = vld [vmem:[%s304 + $0x38] sm:$0xff]
      %v336 = vld [vmem:[%s314] sm:$0x1]
      %v338 = vlaneseq
      %v339 = vshrl.u32 %v338, 7
      %v340 = vsub.s32 0, %v339
      %v341 = vrot.slane %v336, %v340
      %v343 = vmul.f32 %v328, %v341
      %v344 = vmul.f32 %v329, %v341
      %v345 = vmul.f32 %v330, %v341
      %v346 = vmul.f32 %v331, %v341
      %v347 = vmul.f32 %v332, %v341
      %v348 = vmul.f32 %v333, %v341
      %v349 = vmul.f32 %v334, %v341
      %v350 = vmul.f32 %v335, %v341
      %v351 = vmul.f32 %v326, %v326
      %v352 = vmul.f32 %v327, %v327
      %vm353 = vcmask 523264
      %v354 = vsel %vm353, %v351, 0.0
      %355 = vadd.xlane.f32.xlu0 %v354
      %v356 = vpop.xlane.xlu0 %355
      %v357 = vsel %vm353, %v352, 0.0
      %358 = vadd.xlane.f32.xlu0 %v357
      %v359 = vpop.xlane.xlu0 %358
      %v360 = vrsqrt.pop %v356
      %v361 = vmul.f32 %v356, %v360
      %vm362 = vcmp.eq.f32.partialorder %v356, inf
      %v363 = vsel %vm362, %v356, %v361
      %vm364 = vcmp.eq.f32.partialorder %v356, 0.0
      %v365 = vand.u32 %v356, 2147483648
      %v366 = vsel %vm364, %v365, %v363
      %v367 = vrsqrt.pop %v359
      %v368 = vmul.f32 %v359, %v367
      %vm369 = vcmp.eq.f32.partialorder %v359, inf
      %v370 = vsel %vm369, %v359, %v368
      %vm371 = vcmp.eq.f32.partialorder %v359, 0.0
      %v372 = vand.u32 %v359, 2147483648
      %v373 = vsel %vm371, %v372, %v370
      %v374 = vadd.f32 %v366, 1e-05
      %v375 = vadd.f32 %v373, 1e-05
      %v376 = vrcp.pop %v374
      %v377 = vrcp.pop %v375
      %v378 = vmul.f32 %v343, %v343
      %v379 = vmul.f32 %v344, %v344
      %v380 = vmul.f32 %v345, %v345
      %v381 = vmul.f32 %v346, %v346
      %v382 = vmul.f32 %v347, %v347
      %v383 = vmul.f32 %v348, %v348
      %v384 = vmul.f32 %v349, %v349
      %v385 = vmul.f32 %v350, %v350
      %vm386 = vcmask 130048
      %v387 = vsel %vm386, %v378, 0.0
      %v388 = vsel %vm386, %v379, 0.0
      %v389 = vadd.f32 %v387, %v388
      %v390 = vsel %vm386, %v380, 0.0
      %v391 = vadd.f32 %v389, %v390
      %v392 = vsel %vm386, %v381, 0.0
      %v393 = vadd.f32 %v391, %v392
      %v394 = vsel %vm386, %v382, 0.0
      %v395 = vadd.f32 %v393, %v394
      %v396 = vsel %vm386, %v383, 0.0
      %v397 = vadd.f32 %v395, %v396
      %v398 = vsel %vm386, %v384, 0.0
      %v399 = vadd.f32 %v397, %v398
      %v400 = vsel %vm386, %v385, 0.0
      %v401 = vadd.f32 %v399, %v400
      %v402 = vrot.slane %v401, 4
      %v403 = vadd.f32 %v401, %v402
      %v404 = vrot.slane %v403, 2
      %v405 = vadd.f32 %v403, %v404
      %v406 = vrot.slane %v405, 1
      %v407 = vadd.f32 %v405, %v406
      %v408 = vrsqrt.pop %v407
      %v409 = vmul.f32 %v407, %v408
      %vm410 = vcmp.eq.f32.partialorder %v407, inf
      %v411 = vsel %vm410, %v407, %v409
      %vm412 = vcmp.eq.f32.partialorder %v407, 0.0
      %v413 = vand.u32 %v407, 2147483648
      %v414 = vsel %vm412, %v413, %v411
      %v415 = vadd.f32 %v414, 1e-05
      %v416 = vrcp.pop %v415
      %v417 = vmul.f32 %v326, %v376
      %v418 = vmul.f32 %v327, %v377
      %v419 = vpack.c.bf16 %v418, %v417
      %v420 = vmul.f32 %v343, %v416
      %v421 = vmul.f32 %v344, %v416
      %v422 = vmul.f32 %v345, %v416
      %v423 = vmul.f32 %v346, %v416
      %v424 = vmul.f32 %v347, %v416
      %v425 = vmul.f32 %v348, %v416
      %v426 = vmul.f32 %v349, %v416
      %v427 = vmul.f32 %v350, %v416
      %v428 = vpack.c.bf16 %v421, %v420
      %v429 = vpack.c.bf16 %v423, %v422
      %v430 = vpack.c.bf16 %v425, %v424
      %v431 = vpack.c.bf16 %v427, %v426
      %v433 = vsel %vm353, %v419, 0
      %435 = vmatprep.subr.bf16.mxu0 0
      %436 = vmatpush1.bf16.msra.mxu0 %v428
      %437 = vmatprep.subr.bf16.mxu0 0
      %438 = vmatpush1.bf16.msra.mxu0 %v429
      %439 = vmatprep.subr.bf16.mxu0 0
      %440 = vmatpush1.bf16.msra.mxu0 %v430
      %441 = vmatprep.subr.bf16.mxu0 0
      %442 = vmatpush1.bf16.msra.mxu0 %v431
      %443 = vmatprep.subr.bf16.mxu0 0
      %444 = vmatpush1.bf16.msra.mxu0 0
      %445 = vmatprep.subr.bf16.mxu0 0
      %446 = vmatpush1.bf16.msra.mxu0 0
      %447 = vmatprep.subr.bf16.mxu0 0
      %448 = vmatpush1.bf16.msra.mxu0 0
      %449 = vmatprep.subr.bf16.mxu0 0
      %450 = vmatpush1.bf16.msra.mxu0 0
      %451 = vmatprep.subr.bf16.mxu0 0
      %452 = vmatpush1.bf16.msra.mxu0 0
      %453 = vmatprep.subr.bf16.mxu0 0
      %454 = vmatpush1.bf16.msra.mxu0 0
      %455 = vmatprep.subr.bf16.mxu0 0
      %456 = vmatpush1.bf16.msra.mxu0 0
      %457 = vmatprep.subr.bf16.mxu0 0
      %458 = vmatpush1.bf16.msra.mxu0 0
      %459 = vmatprep.subr.bf16.mxu0 0
      %460 = vmatpush1.bf16.msra.mxu0 0
      %461 = vmatprep.subr.bf16.mxu0 0
      %462 = vmatpush1.bf16.msra.mxu0 0
      %463 = vmatprep.subr.bf16.mxu0 0
      %464 = vmatpush1.bf16.msra.mxu0 0
      %465 = vmatprep.subr.bf16.mxu0 0
      %466 = vmatpush1.bf16.msra.mxu0 0
      %467 = vmatprep.mubr.bf16.mxu0 0
      %468 = vmatmul.mubr.bf16.gmra.mrb[0].mxu0 %v433
      %v469 = vpop.f32.mrb[0].mxu0
      %v470 = vadd.f32 0.0, %v469
      %v471 = vpop.f32.mrb[0].mxu0
      %v472 = vpop.f32.mrb[0].mxu0
      %v473 = vadd.f32 0.0, %v472
      %v474 = vpop.f32.mrb[0].mxu0
      %475 = vdwg.mxu0
      %v476 = vmax.f32 %v470, 0.0
      %v477 = vmax.f32 %v473, 0.0
      %v478 = vsel %vm386, %v476, 0.0
      %479 = vadd.xlane.f32.xlu0 %v478
      %v480 = vpop.xlane.xlu0 %479
      %v481 = vsel %vm386, %v477, 0.0
      %482 = vadd.xlane.f32.xlu0 %v481
      %v483 = vpop.xlane.xlu0 %482
      %v484 = vmul.f32 %v480, 0.0625
      %v485 = vmul.f32 %v483, 0.0625
      %p486 = scmp.eq.s32.totalorder %s23, 0
      // Predicated region
      $region33: #{fecanet_forward.5} parent=31 // pred_check
        %p487 = pneg %p486
      $region34: #{fecanet_forward.5} parent=31 // pred_check_branch
        %489 = sbr.rel (%p487) target = $region36
      $region35: #{fecanet_forward.5} parent=31 // pred_region
        %vm490 = vcmask 122880
        %491 = vst.msk [vmem:[%s324] sm:$0x1] %vm490, 0.0
      $region36: #{fecanet_forward.5} parent=31 // pred_fallthru
        _
      %v492 = vld [vmem:[%s324] sm:$0x1]
      %v495 = vlaneseq
      %v496 = vshrl.u32 %v495, 7
      %v497 = vsub.s32 0, %v496
      %v498 = vrot.slane %v484, %v497
      %v499 = vlaneseq
      %v500 = vshrl.u32 %v499, 7
      %v501 = vsub.s32 1, %v500
      %v502 = vrot.slane %v484, %v501
      %v503 = vlaneseq
      %v504 = vshrl.u32 %v503, 7
      %v505 = vsub.s32 2, %v504
      %v506 = vrot.slane %v484, %v505
      %v507 = vlaneseq
      %v508 = vshrl.u32 %v507, 7
      %v509 = vsub.s32 3, %v508
      %v510 = vrot.slane %v484, %v509
      %v511 = vlaneseq
      %v512 = vshrl.u32 %v511, 7
      %v513 = vsub.s32 4, %v512
      %v514 = vrot.slane %v484, %v513
      %v515 = vlaneseq
      %v516 = vshrl.u32 %v515, 7
      %v517 = vsub.s32 5, %v516
      %v518 = vrot.slane %v484, %v517
      %v519 = vlaneseq
      %v520 = vshrl.u32 %v519, 7
      %v521 = vsub.s32 6, %v520
      %v522 = vrot.slane %v484, %v521
      %v523 = vlaneseq
      %v524 = vshrl.u32 %v523, 7
      %v525 = vsub.s32 7, %v524
      %v526 = vrot.slane %v484, %v525
      %v527 = vlaneseq
      %v528 = vshrl.u32 %v527, 7
      %v529 = vsub.s32 0, %v528
      %v530 = vrot.slane %v485, %v529
      %v531 = vlaneseq
      %v532 = vshrl.u32 %v531, 7
      %v533 = vsub.s32 1, %v532
      %v534 = vrot.slane %v485, %v533
      %v535 = vlaneseq
      %v536 = vshrl.u32 %v535, 7
      %v537 = vsub.s32 2, %v536
      %v538 = vrot.slane %v485, %v537
      %v539 = vlaneseq
      %v540 = vshrl.u32 %v539, 7
      %v541 = vsub.s32 3, %v540
      %v542 = vrot.slane %v485, %v541
      %v543 = vlaneseq
      %v544 = vshrl.u32 %v543, 7
      %v545 = vsub.s32 4, %v544
      %v546 = vrot.slane %v485, %v545
      %v547 = vlaneseq
      %v548 = vshrl.u32 %v547, 7
      %v549 = vsub.s32 5, %v548
      %v550 = vrot.slane %v485, %v549
      %v551 = vlaneseq
      %v552 = vshrl.u32 %v551, 7
      %v553 = vsub.s32 6, %v552
      %v554 = vrot.slane %v485, %v553
      %v555 = vlaneseq
      %v556 = vshrl.u32 %v555, 7
      %v557 = vsub.s32 7, %v556
      %v558 = vrot.slane %v485, %v557
      %v559 = vcombine.low %v498, %v502
      %v560 = vcombine.low %v506, %v510
      %v561 = vcombine.low %v514, %v518
      %v562 = vcombine.low %v522, %v526
      %v564 = vunpack.c.l.s4 1966171168
      %v565 = vunpack.c.0.s8 %v564
      %v566 = vlaneseq
      %v567 = vshrl.u32 %v566, 7
      %v568 = vsub.s32 %v565, %v567
      %v569 = vrot.slane %v559, %v568
      %v571 = vunpack.c.l.s4 1966171168
      %v572 = vunpack.c.0.s8 %v571
      %v573 = vlaneseq
      %v574 = vshrl.u32 %v573, 7
      %v575 = vsub.s32 %v572, %v574
      %v576 = vrot.slane %v560, %v575
      %v578 = vunpack.c.l.s4 1966171168
      %v579 = vunpack.c.0.s8 %v578
      %v580 = vlaneseq
      %v581 = vshrl.u32 %v580, 7
      %v582 = vsub.s32 %v579, %v581
      %v583 = vrot.slane %v561, %v582
      %v585 = vunpack.c.l.s4 1966171168
      %v586 = vunpack.c.0.s8 %v585
      %v587 = vlaneseq
      %v588 = vshrl.u32 %v587, 7
      %v589 = vsub.s32 %v586, %v588
      %v590 = vrot.slane %v562, %v589
      %v591 = vcombine.low %v569, %v576
      %v592 = vcombine.low %v583, %v590
      %v594 = vunpack.c.l.s4 1966171168
      %v595 = vunpack.c.0.s8 %v594
      %v596 = vlaneseq
      %v597 = vshrl.u32 %v596, 7
      %v598 = vsub.s32 %v595, %v597
      %v599 = vrot.slane %v591, %v598
      %v601 = vunpack.c.l.s4 1966171168
      %v602 = vunpack.c.0.s8 %v601
      %v603 = vlaneseq
      %v604 = vshrl.u32 %v603, 7
      %v605 = vsub.s32 %v602, %v604
      %v606 = vrot.slane %v592, %v605
      %v607 = vcombine.low %v599, %v606
      %v608 = vcombine.low %v530, %v534
      %v609 = vcombine.low %v538, %v542
      %v610 = vcombine.low %v546, %v550
      %v611 = vcombine.low %v554, %v558
      %v613 = vunpack.c.l.s4 1966171168
      %v614 = vunpack.c.0.s8 %v613
      %v615 = vlaneseq
      %v616 = vshrl.u32 %v615, 7
      %v617 = vsub.s32 %v614, %v616
      %v618 = vrot.slane %v608, %v617
      %v620 = vunpack.c.l.s4 1966171168
      %v621 = vunpack.c.0.s8 %v620
      %v622 = vlaneseq
      %v623 = vshrl.u32 %v622, 7
      %v624 = vsub.s32 %v621, %v623
      %v625 = vrot.slane %v609, %v624
      %v627 = vunpack.c.l.s4 1966171168
      %v628 = vunpack.c.0.s8 %v627
      %v629 = vlaneseq
      %v630 = vshrl.u32 %v629, 7
      %v631 = vsub.s32 %v628, %v630
      %v632 = vrot.slane %v610, %v631
      %v634 = vunpack.c.l.s4 1966171168
      %v635 = vunpack.c.0.s8 %v634
      %v636 = vlaneseq
      %v637 = vshrl.u32 %v636, 7
      %v638 = vsub.s32 %v635, %v637
      %v639 = vrot.slane %v611, %v638
      %v640 = vcombine.low %v618, %v625
      %v641 = vcombine.low %v632, %v639
      %v643 = vunpack.c.l.s4 1966171168
      %v644 = vunpack.c.0.s8 %v643
      %v645 = vlaneseq
      %v646 = vshrl.u32 %v645, 7
      %v647 = vsub.s32 %v644, %v646
      %v648 = vrot.slane %v640, %v647
      %v650 = vunpack.c.l.s4 1966171168
      %v651 = vunpack.c.0.s8 %v650
      %v652 = vlaneseq
      %v653 = vshrl.u32 %v652, 7
      %v654 = vsub.s32 %v651, %v653
      %v655 = vrot.slane %v641, %v654
      %v656 = vcombine.low %v648, %v655
      %657 = vset.pattern.permute.xlu0 0
      %658 = vperm.xlu0 %657, %v607
      %v659 = vpop.permute.xlu0 %658
      %660 = vset.pattern.permute.xlu0 0
      %661 = vperm.xlu0 %660, %v656
      %v662 = vpop.permute.xlu0 %661
      %v663 = vlaneseq
      %v664 = vand.u32 %v663, 127
      %v665 = vlaneseq
      %v666 = vshrl.u32 %v665, 7
      %v667 = vsub.s32 %v664, %v666
      %v668 = vrot.slane %v659, %v667
      %v669 = vadd.s32 %v664, 4294967288
      %v670 = vlaneseq
      %v671 = vshrl.u32 %v670, 7
      %v672 = vsub.s32 %v669, %v671
      %v673 = vrot.slane %v662, %v672
      %vm674 = vcmask 130112
      %v675 = vsel %vm674, %v673, %v668
      %v677 = vunpack.c.l.s4 1966171168
      %v678 = vunpack.c.0.s8 %v677
      %v679 = vlaneseq
      %v680 = vshrl.u32 %v679, 7
      %v681 = vsub.s32 %v678, %v680
      %v682 = vrot.slane %v675, %v681
      %v684 = vunpack.c.l.s4 1966171168
      %v685 = vunpack.c.0.s8 %v684
      %v686 = vlaneseq
      %v687 = vshrl.u32 %v686, 7
      %v688 = vsub.s32 %v685, %v687
      %v689 = vrot.slane %v682, %v688
      %v691 = vadd.f32 %v492, %v689
      %vm692 = vcmask 122880
      %693 = vst.msk [vmem:[%s324] sm:$0x1] %vm692, %v691
      %p694 = scmp.lt.s32.totalorder %s20, 1
      %s695 = scalar_select %p694, %s20, 1
      %p696 = scmp.lt.s32.totalorder %s21, 2
      %s697 = scalar_select %p696, %s21, 2
      %p698 = scmp.lt.s32.totalorder %s22, 0
      %s699 = scalar_select %p698, %s22, 0
      %s700 = sadd.s32 %s699, %s697
      %s701 = smul.addr %s695, 3
      %s702 = sadd.s32 %s700, %s701
      %s703 = scalar_lea.vmem %s3, %s702
      // Predicated region
      $region37: #{fecanet_forward.5} parent=31 // pred_check
        %p704 = pneg %p152
      $region38: #{fecanet_forward.5} parent=31 // pred_check_branch
        %706 = sbr.rel (%p704) target = $region40
      $region39: #{fecanet_forward.5} parent=31 // pred_region
        _
      $region40: #{fecanet_forward.5} parent=31 // pred_fallthru
        _
    $region32: #{fecanet_forward.5} parent=5 // pred_fallthru
      _
    %p707 = scmp.le.s32.totalorder 2, %s9
    // Predicated region
    $region41: #{fecanet_forward.5} parent=5 // pred_check
      %p708 = pneg %p707
    $region42: #{fecanet_forward.5} parent=5 // pred_check_branch
      %710 = sbr.rel (%p708) target = $region44
    $region43: #{fecanet_forward.5} parent=5 // pred_region
      %s711 = ssub.s32 %s9, 2
      // Predicated region
      $region45: #{fecanet_forward.5} parent=43 // pred_check
        %p712 = pneg %p158
      $region46: #{fecanet_forward.5} parent=43 // pred_check_branch
        %714 = sbr.rel (%p712) target = $region48
      $region47: #{fecanet_forward.5} parent=43 // pred_region
        %p715 = scmp.lt.s32.totalorder %s24, 1
        %s716 = scalar_select %p715, %s24, 1
        %p717 = scmp.lt.s32.totalorder %s25, 2
        %s718 = scalar_select %p717, %s25, 2
        %p719 = scmp.lt.s32.totalorder %s26, 0
        %s720 = scalar_select %p719, %s26, 0
        %s721 = sadd.s32 %s720, %s718
        %s722 = smul.addr %s716, 3
        %s723 = sadd.s32 %s721, %s722
        %s724 = scalar_lea.vmem %s3, %s723
      $region48: #{fecanet_forward.5} parent=43 // pred_fallthru
        _
    $region44: #{fecanet_forward.5} parent=5 // pred_fallthru
      _
  $region6: #{fecanet_forward.5} parent=0 // loop_footer
    %s13 = sadd.s32 1, %s9
  $region7: #{fecanet_forward.5} parent=0 // loop_footer_branch
    %8 = sbr.rel target = $region3
  $region8: #{fecanet_forward.5} parent=0 // loop_exit
    _

</llo_original>
